<compile_context>
chip_gen: v5e
topology: v5e:2x2
jax: 0.10.0
libtpu: 0.0.40
codegen_flags: <defaults>
</compile_context>

<pallas_src>
import math
import jax
import jax.numpy as jnp
from jax.experimental import pallas as pl
from jax.experimental.pallas import tpu as pltpu

# ---- small synthetic "BERT" configuration (stands in for bert-base) --------
# Chosen so the last two dims of every block are (8,128)-friendly.
B, S, H, NH, I, L = 2, 16, 128, 2, 256, 2   # batch, seq, hidden, heads, ffn, layers
DH = H // NH
VOCAB, MAXPOS = 64, 32
EPS = 1e-12


# ---------------------------------------------------------------------------
# LayerNorm helper (used both host-side for embeddings and inside the kernel)
# ---------------------------------------------------------------------------
def _layernorm(x, g, b):
    mu = jnp.mean(x, axis=-1, keepdims=True)
    var = jnp.mean((x - mu) ** 2, axis=-1, keepdims=True)
    return (x - mu) * jax.lax.rsqrt(var + EPS) * g + b


# ---------------------------------------------------------------------------
# Pallas kernel: the FULL transformer stack.  grid=(L,); one layer per step.
# The residual activation lives in the (resident) seq_ref output block.
# ---------------------------------------------------------------------------
def encoder_kernel(x_ref, bias_ref,
                   wqkv_ref, bqkv_ref, wo_ref, bo_ref, ln1_ref,
                   w1_ref, b1_ref, w2_ref, b2_ref, ln2_ref,
                   seq_ref, pooled_ref):
    layer = pl.program_id(0)

    # Initialize the resident activation from the embedding output.
    @pl.when(layer == 0)
    def _():
        seq_ref[...] = x_ref[...]

    x = seq_ref[...].astype(jnp.float32)               # (B, S, H), resident
    xf = x.reshape(B * S, H)

    # ---- self-attention -----------------------------------------------------
    # fused QKV projection: one (B*S, H) @ (H, 3H) MXU matmul (bf16 in, f32 acc)
    qkv = jnp.dot(xf.astype(jnp.bfloat16), wqkv_ref[0],
                  preferred_element_type=jnp.float32) + bqkv_ref[0]   # (B*S, 3H)
    q = qkv[:, 0:H].reshape(B, S, H)
    k = qkv[:, H:2 * H].reshape(B, S, H)
    v = qkv[:, 2 * H:3 * H].reshape(B, S, H)

    bias = bias_ref[...]                                # (B, 1, S) f32, hoisted
    scale = 1.0 / math.sqrt(DH)
    wo = wo_ref[0]                                      # (H, H) bf16

    # Per-head attention (static unroll); context is accumulated directly
    # through Wo's row slices -> no lane-axis concatenate.
    attn = jnp.zeros((B * S, H), jnp.float32)
    for h in range(NH):
        sl = slice(h * DH, (h + 1) * DH)
        qh = q[..., sl].astype(jnp.bfloat16)            # (B, S, DH)
        kh = k[..., sl].astype(jnp.bfloat16)
        vh = v[..., sl].astype(jnp.bfloat16)
        s = jnp.einsum('bqd,bkd->bqk', qh, kh,
                       preferred_element_type=jnp.float32) * scale + bias
        s = s - jnp.max(s, axis=-1, keepdims=True)
        p = jnp.exp(s)
        p = p * pl.reciprocal(jnp.sum(p, axis=-1, keepdims=True), approx=True)
        ctx = jnp.einsum('bqk,bkd->bqd', p.astype(jnp.bfloat16), vh,
                         preferred_element_type=jnp.float32)          # (B, S, DH)
        attn = attn + jnp.dot(ctx.reshape(B * S, DH).astype(jnp.bfloat16),
                              wo[sl, :], preferred_element_type=jnp.float32)
    attn = attn + bo_ref[0]

    ln1 = ln1_ref[0]                                    # (2, H) f32
    x1 = _layernorm(xf + attn, ln1[0:1, :], ln1[1:2, :])

    # ---- feed-forward -------------------------------------------------------
    hmid = jnp.dot(x1.astype(jnp.bfloat16), w1_ref[0],
                   preferred_element_type=jnp.float32) + b1_ref[0]
    # TODO(synk): HF BERT uses exact erf-GELU; tanh-approx GELU used for robust TPU lowering.
    hmid = jax.nn.gelu(hmid, approximate=True)
    ffn = jnp.dot(hmid.astype(jnp.bfloat16), w2_ref[0],
                  preferred_element_type=jnp.float32) + b2_ref[0]
    ln2 = ln2_ref[0]
    x2 = _layernorm(x1 + ffn, ln2[0:1, :], ln2[1:2, :])

    x2 = x2.reshape(B, S, H)
    seq_ref[...] = x2.astype(seq_ref.dtype)             # stays resident in VMEM

    # Pooled (CLS) output written once at the last layer.
    @pl.when(layer == pl.num_programs(0) - 1)
    def _():
        pooled_ref[...] = x2[:, 0:1, :].astype(pooled_ref.dtype)


def bert_encoder(x, attn_bias, params):
    """Runs the full L-layer stack in one pallas_call; returns (seq, pooled)."""
    const3 = lambda l: (0, 0, 0)      # resident activation / mask blocks
    per_layer = lambda l: (l, 0, 0)   # one layer's weights per grid step

    in_specs = [
        pl.BlockSpec((B, S, H), const3),                 # x (embeddings)
        pl.BlockSpec((B, 1, S), const3),                 # attention bias
        pl.BlockSpec((1, H, 3 * H), per_layer),          # Wqkv
        pl.BlockSpec((1, 1, 3 * H), per_layer),          # bqkv
        pl.BlockSpec((1, H, H), per_layer),              # Wo
        pl.BlockSpec((1, 1, H), per_layer),              # bo
        pl.BlockSpec((1, 2, H), per_layer),              # LN1 (gamma, beta)
        pl.BlockSpec((1, H, I), per_layer),              # W1
        pl.BlockSpec((1, 1, I), per_layer),              # b1
        pl.BlockSpec((1, I, H), per_layer),              # W2
        pl.BlockSpec((1, 1, H), per_layer),              # b2
        pl.BlockSpec((1, 2, H), per_layer),              # LN2 (gamma, beta)
    ]
    out_specs = (
        pl.BlockSpec((B, S, H), const3),                 # sequence output (resident)
        pl.BlockSpec((B, 1, H), const3),                 # pooled (CLS) output
    )
    seq_out, pooled = pl.pallas_call(
        encoder_kernel,
        out_shape=(jax.ShapeDtypeStruct((B, S, H), jnp.float32),
                   jax.ShapeDtypeStruct((B, 1, H), jnp.float32)),
        grid=(L,),
        in_specs=in_specs,
        out_specs=out_specs,
        compiler_params=pltpu.CompilerParams(
            # Layer axis carries the residual -> must be "arbitrary".
            # (For real batch sizes, add a leading "parallel" batch-tile axis
            #  so v7x megacore can shard; at B=2/S=16 one block is optimal.)
            dimension_semantics=("arbitrary",),
            vmem_limit_bytes=48 * 1024 * 1024,
        ),
    )(x, attn_bias,
      params["wqkv"], params["bqkv"], params["wo"], params["bo"], params["ln1"],
      params["w1"], params["b1"], params["w2"], params["b2"], params["ln2"])
    return seq_out, pooled[:, 0, :]


# ---------------------------------------------------------------------------
# Parameter init (deterministic, synthetic BERT weights; matmul weights bf16)
# ---------------------------------------------------------------------------
def init_encoder_params(key):
    keys = jax.random.split(key, 7)

    def nrm(k, shape):
        return 0.02 * jax.random.normal(k, shape, jnp.float32)

    ones_lh = jnp.ones((L, H), jnp.float32)
    zeros_lh = jnp.zeros((L, H), jnp.float32)
    return {
        "word": nrm(keys[0], (VOCAB, H)),
        "pos": nrm(keys[1], (MAXPOS, H)),
        "type": nrm(keys[2], (2, H)),
        "emb_ln_g": jnp.ones((1, H), jnp.float32),
        "emb_ln_b": jnp.zeros((1, H), jnp.float32),
        # stacked per-layer weights; MXU operands stored in bf16
        "wqkv": nrm(keys[3], (L, H, 3 * H)).astype(jnp.bfloat16),
        "bqkv": jnp.zeros((L, 1, 3 * H), jnp.float32),
        "wo": nrm(keys[4], (L, H, H)).astype(jnp.bfloat16),
        "bo": jnp.zeros((L, 1, H), jnp.float32),
        "ln1": jnp.stack([ones_lh, zeros_lh], axis=1),        # (L, 2, H)
        "w1": nrm(keys[5], (L, H, I)).astype(jnp.bfloat16),
        "b1": jnp.zeros((L, 1, I), jnp.float32),
        "w2": nrm(keys[6], (L, I, H)).astype(jnp.bfloat16),
        "b2": jnp.zeros((L, 1, H), jnp.float32),
        "ln2": jnp.stack([ones_lh, zeros_lh], axis=1),        # (L, 2, H)
    }


# ---------------------------------------------------------------------------
# HFBertEncoder.forward equivalent: returns (sequence_output, pooled_output)
#   pooled_output = sequence_output[:, 0, :]   (pooler dense+tanh never used)
# ---------------------------------------------------------------------------
def encode(params, input_ids, attention_mask):
    bsz, seq = input_ids.shape
    # embedding lookups (gather) + embedding LayerNorm: plain-JAX glue
    emb = (params["word"][input_ids]
           + params["pos"][jnp.arange(seq)][None, :, :]
           + params["type"][0][None, None, :])
    x = _layernorm(emb, params["emb_ln_g"], params["emb_ln_b"])
    # dropout is identity in eval mode
    # extended attention mask bias, hoisted out of the per-layer kernel body
    attn_bias = ((1.0 - attention_mask.astype(jnp.float32)) * -10000.0)[:, None, :]
    seq_out, pooled = bert_encoder(x.astype(jnp.float32), attn_bias, params)
    return seq_out, pooled


# ---------------------------------------------------------------------------
# Contrastive loss (plain JAX per perf review: ~B*H elements of VPU work;
# a dedicated pallas_call is dominated by launch/DMA overhead).
#   logits = [sum(q*a,-1), sum(q*b,-1)]; loss = mean(-log_softmax(logits)[:,0])
# ---------------------------------------------------------------------------
def biencoder_loss(q_embs, a_embs, b_embs):
    sa = jnp.sum(q_embs * a_embs, axis=-1)
    sb = jnp.sum(q_embs * b_embs, axis=-1)
    m = jnp.maximum(sa, sb)
    lse = m + jnp.log(jnp.exp(sa - m) + jnp.exp(sb - m))
    return jnp.mean(lse - sa)          # mean(-log_softmax(logits)[:, 0])


# ---------------------------------------------------------------------------
# BiEncoder.forward
# ---------------------------------------------------------------------------
def biencoder_forward(q_params, c_params, query_ids, attention_mask_q,
                      input_ids_a=None, attention_mask_a=None,
                      input_ids_b=None, attention_mask_b=None, is_query=True):
    query_emb = lambda ids, m: encode(q_params, ids, m)[1]
    body_emb = lambda ids, m: encode(c_params, ids, m)[1]
    if input_ids_b is None:
        if input_ids_a is None:
            return (query_emb(query_ids, attention_mask_q) if is_query
                    else body_emb(query_ids, attention_mask_q))
        return (query_emb(query_ids, attention_mask_q),
                body_emb(input_ids_a, attention_mask_a))
    q_embs = query_emb(query_ids, attention_mask_q)
    a_embs = body_emb(input_ids_a, attention_mask_a)
    b_embs = body_emb(input_ids_b, attention_mask_b)
    return (biencoder_loss(q_embs, a_embs, b_embs),)


@jax.jit
def loss_path(q_params, c_params, qi, mq, ia, ma, ib, mb):
    return biencoder_forward(q_params, c_params, qi, mq, ia, ma, ib, mb)


@jax.jit
def query_path(q_params, c_params, qi, mq):
    return biencoder_forward(q_params, c_params, qi, mq)


if __name__ == "__main__":
    root = jax.random.PRNGKey(0)
    k_q, k_c, k_ids = jax.random.split(root, 3)
    q_params = init_encoder_params(k_q)
    c_params = init_encoder_params(k_c)

    kq, ka, kb = jax.random.split(k_ids, 3)
    query_ids = jax.random.randint(kq, (B, S), 0, VOCAB)
    input_ids_a = jax.random.randint(ka, (B, S), 0, VOCAB)
    input_ids_b = jax.random.randint(kb, (B, S), 0, VOCAB)
    # second example has three padding positions
    attention_mask = (jnp.arange(S)[None, :]
                      < jnp.array([[S], [S - 3]])).astype(jnp.float32)

    # full contrastive path (query + positive + negative -> scalar loss)
    (loss,) = loss_path(q_params, c_params,
                        query_ids, attention_mask,
                        input_ids_a, attention_mask,
                        input_ids_b, attention_mask)
    jax.block_until_ready(loss)

    # query-only embedding path also exercises the encoder kernel
    q_only = query_path(q_params, c_params, query_ids, attention_mask)
    jax.block_until_ready(q_only)

    print("KERNEL_OK")
</pallas_src>

<mosaic_0001>
module attributes {stable_mosaic.version = 11 : i64} {
  func.func @encoder_kernel(%arg0: i32, %arg1: memref<2x16x128xf32, #tpu.memory_space<vmem>>, %arg2: memref<2x1x16xf32, #tpu.memory_space<vmem>>, %arg3: memref<1x128x384xbf16, #tpu.memory_space<vmem>>, %arg4: memref<1x1x384xf32, #tpu.memory_space<vmem>>, %arg5: memref<1x128x128xbf16, #tpu.memory_space<vmem>>, %arg6: memref<1x1x128xf32, #tpu.memory_space<vmem>>, %arg7: memref<1x2x128xf32, #tpu.memory_space<vmem>>, %arg8: memref<1x128x256xbf16, #tpu.memory_space<vmem>>, %arg9: memref<1x1x256xf32, #tpu.memory_space<vmem>>, %arg10: memref<1x256x128xbf16, #tpu.memory_space<vmem>>, %arg11: memref<1x1x128xf32, #tpu.memory_space<vmem>>, %arg12: memref<1x2x128xf32, #tpu.memory_space<vmem>>, %arg13: memref<2x16x128xf32, #tpu.memory_space<vmem>>, %arg14: memref<2x1x128xf32, #tpu.memory_space<vmem>>) attributes {dimension_semantics = [#tpu.dimension_semantics<arbitrary>], iteration_bounds = array<i64: 2>, scalar_prefetch = 0 : i64, scratch_operands = 0 : i64, tpu.core_type = #tpu.core_type<tc>, window_params = [{pipeline_mode = #tpu.pipeline_mode<synchronous>, transform_indices = @transform_0, window_bounds = array<i64: 2, 16, 128>}, {pipeline_mode = #tpu.pipeline_mode<synchronous>, transform_indices = @transform_1, window_bounds = array<i64: 2, 1, 16>}, {transform_indices = @transform_2, window_bounds = array<i64: 1, 128, 384>}, {transform_indices = @transform_3, window_bounds = array<i64: 1, 1, 384>}, {transform_indices = @transform_4, window_bounds = array<i64: 1, 128, 128>}, {transform_indices = @transform_5, window_bounds = array<i64: 1, 1, 128>}, {transform_indices = @transform_6, window_bounds = array<i64: 1, 2, 128>}, {transform_indices = @transform_7, window_bounds = array<i64: 1, 128, 256>}, {transform_indices = @transform_8, window_bounds = array<i64: 1, 1, 256>}, {transform_indices = @transform_9, window_bounds = array<i64: 1, 256, 128>}, {transform_indices = @transform_10, window_bounds = array<i64: 1, 1, 128>}, {transform_indices = @transform_11, window_bounds = array<i64: 1, 2, 128>}, {pipeline_mode = #tpu.pipeline_mode<synchronous>, transform_indices = @transform_12, window_bounds = array<i64: 2, 16, 128>}, {pipeline_mode = #tpu.pipeline_mode<synchronous>, transform_indices = @transform_13, window_bounds = array<i64: 2, 1, 128>}]} {
    %c0_i32 = arith.constant 0 : i32
    %0 = arith.cmpi eq, %arg0, %c0_i32 : i32
    %1 = arith.extui %0 : i1 to i32
    %c0_i32_0 = arith.constant 0 : i32
    %2 = arith.cmpi ne, %1, %c0_i32_0 : i32
    scf.if %2 {
      %c0_69 = arith.constant 0 : index
      %c0_70 = arith.constant 0 : index
      %c0_71 = arith.constant 0 : index
      %171 = vector.load %arg1[%c0_69, %c0_70, %c0_71] : memref<2x16x128xf32, #tpu.memory_space<vmem>>, vector<2x16x128xf32>
      %c0_72 = arith.constant 0 : index
      %c0_73 = arith.constant 0 : index
      %c0_74 = arith.constant 0 : index
      %172 = vector.load %arg13[%c0_72, %c0_73, %c0_74] : memref<2x16x128xf32, #tpu.memory_space<vmem>>, vector<2x16x128xf32>
      tpu.vector_store %arg13[%c0_72, %c0_73, %c0_74], %171 {strides = array<i32>} : memref<2x16x128xf32, #tpu.memory_space<vmem>>, vector<2x16x128xf32>,
    } else {
    }
    %c0 = arith.constant 0 : index
    %c0_1 = arith.constant 0 : index
    %c0_2 = arith.constant 0 : index
    %3 = vector.load %arg13[%c0, %c0_1, %c0_2] : memref<2x16x128xf32, #tpu.memory_space<vmem>>, vector<2x16x128xf32>
    %4 = vector.shape_cast %3 : vector<2x16x128xf32> to vector<32x128xf32>
    %5 = arith.truncf %4 : vector<32x128xf32> to vector<32x128xbf16>
    %c0_3 = arith.constant 0 : index
    %c0_4 = arith.constant 0 : index
    %c0_5 = arith.constant 0 : index
    %6 = vector.load %arg3[%c0_3, %c0_4, %c0_5] : memref<1x128x384xbf16, #tpu.memory_space<vmem>>, vector<1x128x384xbf16>
    %7 = vector.shape_cast %6 : vector<1x128x384xbf16> to vector<128x384xbf16>
    %cst = arith.constant dense<0.000000e+00> : vector<32x384xf32>
    %8 = tpu.matmul %5, %7, %cst {dimension_numbers = #tpu.dot_dimension_numbers<[1], [0], [0], [1], [0, 0, 1, 1], [], []>} : vector<32x128xbf16>, vector<128x384xbf16>, vector<32x384xf32> -> vector<32x384xf32>
    %c0_6 = arith.constant 0 : index
    %c0_7 = arith.constant 0 : index
    %c0_8 = arith.constant 0 : index
    %9 = vector.load %arg4[%c0_6, %c0_7, %c0_8] : memref<1x1x384xf32, #tpu.memory_space<vmem>>, vector<1x1x384xf32>
    %10 = vector.shape_cast %9 : vector<1x1x384xf32> to vector<1x384xf32>
    %11 = vector.broadcast %10 : vector<1x384xf32> to vector<32x384xf32>
    %12 = arith.addf %8, %11 : vector<32x384xf32>
    %13 = vector.extract_strided_slice %12 {offsets = [0, 0], sizes = [32, 128], strides = [1, 1]} : vector<32x384xf32> to vector<32x128xf32>
    %14 = vector.shape_cast %13 : vector<32x128xf32> to vector<2x16x128xf32>
    %15 = vector.extract_strided_slice %12 {offsets = [0, 128], sizes = [32, 128], strides = [1, 1]} : vector<32x384xf32> to vector<32x128xf32>
    %16 = vector.shape_cast %15 : vector<32x128xf32> to vector<2x16x128xf32>
    %17 = vector.extract_strided_slice %12 {offsets = [0, 256], sizes = [32, 128], strides = [1, 1]} : vector<32x384xf32> to vector<32x128xf32>
    %18 = vector.shape_cast %17 : vector<32x128xf32> to vector<2x16x128xf32>
    %c0_9 = arith.constant 0 : index
    %c0_10 = arith.constant 0 : index
    %c0_11 = arith.constant 0 : index
    %19 = vector.load %arg2[%c0_9, %c0_10, %c0_11] : memref<2x1x16xf32, #tpu.memory_space<vmem>>, vector<2x1x16xf32>
    %c0_12 = arith.constant 0 : index
    %c0_13 = arith.constant 0 : index
    %c0_14 = arith.constant 0 : index
    %20 = vector.load %arg5[%c0_12, %c0_13, %c0_14] : memref<1x128x128xbf16, #tpu.memory_space<vmem>>, vector<1x128x128xbf16>
    %21 = vector.shape_cast %20 : vector<1x128x128xbf16> to vector<128x128xbf16>
    %cst_15 = arith.constant 0.000000e+00 : f32
    %22 = vector.broadcast %cst_15 : f32 to vector<32x128xf32>
    %23 = vector.extract_strided_slice %14 {offsets = [0, 0, 0], sizes = [2, 16, 64], strides = [1, 1, 1]} : vector<2x16x128xf32> to vector<2x16x64xf32>
    %24 = arith.truncf %23 : vector<2x16x64xf32> to vector<2x16x64xbf16>
    %25 = vector.extract_strided_slice %16 {offsets = [0, 0, 0], sizes = [2, 16, 64], strides = [1, 1, 1]} : vector<2x16x128xf32> to vector<2x16x64xf32>
    %26 = arith.truncf %25 : vector<2x16x64xf32> to vector<2x16x64xbf16>
    %27 = vector.extract_strided_slice %18 {offsets = [0, 0, 0], sizes = [2, 16, 64], strides = [1, 1, 1]} : vector<2x16x128xf32> to vector<2x16x64xf32>
    %28 = arith.truncf %27 : vector<2x16x64xf32> to vector<2x16x64xbf16>
    "tpu.trace_start"() <{level = 10 : i32, message = "bqd,bkd->bqk"}> : () -> ()
    %cst_16 = arith.constant dense<0.000000e+00> : vector<2x16x16xf32>
    %29 = tpu.matmul %24, %26, %cst_16 {dimension_numbers = #tpu.dot_dimension_numbers<[2], [2], [1], [1], [0, 0, 0, 1, 1, 1], [0], [0]>} : vector<2x16x64xbf16>, vector<2x16x64xbf16>, vector<2x16x16xf32> -> vector<2x16x16xf32>
    "tpu.trace_stop"() : () -> ()
    %cst_17 = arith.constant 1.250000e-01 : f32
    %30 = vector.broadcast %cst_17 : f32 to vector<2x16x16xf32>
    %31 = arith.mulf %29, %30 : vector<2x16x16xf32>
    %32 = vector.broadcast %19 : vector<2x1x16xf32> to vector<2x16x16xf32>
    %33 = arith.addf %31, %32 : vector<2x16x16xf32>
    %cst_18 = arith.constant dense<0xFF800000> : vector<2x16xf32>
    %34 = vector.multi_reduction <maximumf>, %33, %cst_18 [2] : vector<2x16x16xf32> to vector<2x16xf32>
    %35 = vector.shape_cast %34 : vector<2x16xf32> to vector<2x16x1xf32>
    %36 = vector.broadcast %35 : vector<2x16x1xf32> to vector<2x16x16xf32>
    %37 = arith.subf %33, %36 : vector<2x16x16xf32>
    %38 = math.exp %37 : vector<2x16x16xf32>
    %cst_19 = arith.constant dense<0.000000e+00> : vector<2x16xf32>
    %39 = vector.multi_reduction <add>, %38, %cst_19 [2] : vector<2x16x16xf32> to vector<2x16xf32>
    %40 = vector.shape_cast %39 : vector<2x16xf32> to vector<2x16x1xf32>
    %41 = tpu.reciprocal %40 {approx = true} : vector<2x16x1xf32> -> vector<2x16x1xf32>
    %42 = vector.broadcast %41 : vector<2x16x1xf32> to vector<2x16x16xf32>
    %43 = arith.mulf %38, %42 : vector<2x16x16xf32>
    %44 = arith.truncf %43 : vector<2x16x16xf32> to vector<2x16x16xbf16>
    "tpu.trace_start"() <{level = 10 : i32, message = "bqk,bkd->bqd"}> : () -> ()
    %cst_20 = arith.constant dense<0.000000e+00> : vector<2x16x64xf32>
    %45 = tpu.matmul %44, %28, %cst_20 {dimension_numbers = #tpu.dot_dimension_numbers<[2], [1], [1], [2], [0, 0, 0, 1, 1, 2], [0], [0]>} : vector<2x16x16xbf16>, vector<2x16x64xbf16>, vector<2x16x64xf32> -> vector<2x16x64xf32>
    "tpu.trace_stop"() : () -> ()
    %46 = vector.shape_cast %45 : vector<2x16x64xf32> to vector<32x64xf32>
    %47 = arith.truncf %46 : vector<32x64xf32> to vector<32x64xbf16>
    %48 = vector.extract_strided_slice %21 {offsets = [0, 0], sizes = [64, 128], strides = [1, 1]} : vector<128x128xbf16> to vector<64x128xbf16>
    %cst_21 = arith.constant dense<0.000000e+00> : vector<32x128xf32>
    %49 = tpu.matmul %47, %48, %cst_21 {dimension_numbers = #tpu.dot_dimension_numbers<[1], [0], [0], [1], [0, 0, 1, 1], [], []>} : vector<32x64xbf16>, vector<64x128xbf16>, vector<32x128xf32> -> vector<32x128xf32>
    %50 = arith.addf %22, %49 : vector<32x128xf32>
    %51 = vector.extract_strided_slice %14 {offsets = [0, 0, 64], sizes = [2, 16, 64], strides = [1, 1, 1]} : vector<2x16x128xf32> to vector<2x16x64xf32>
    %52 = arith.truncf %51 : vector<2x16x64xf32> to vector<2x16x64xbf16>
    %53 = vector.extract_strided_slice %16 {offsets = [0, 0, 64], sizes = [2, 16, 64], strides = [1, 1, 1]} : vector<2x16x128xf32> to vector<2x16x64xf32>
    %54 = arith.truncf %53 : vector<2x16x64xf32> to vector<2x16x64xbf16>
    %55 = vector.extract_strided_slice %18 {offsets = [0, 0, 64], sizes = [2, 16, 64], strides = [1, 1, 1]} : vector<2x16x128xf32> to vector<2x16x64xf32>
    %56 = arith.truncf %55 : vector<2x16x64xf32> to vector<2x16x64xbf16>
    "tpu.trace_start"() <{level = 10 : i32, message = "bqd,bkd->bqk"}> : () -> ()
    %cst_22 = arith.constant dense<0.000000e+00> : vector<2x16x16xf32>
    %57 = tpu.matmul %52, %54, %cst_22 {dimension_numbers = #tpu.dot_dimension_numbers<[2], [2], [1], [1], [0, 0, 0, 1, 1, 1], [0], [0]>} : vector<2x16x64xbf16>, vector<2x16x64xbf16>, vector<2x16x16xf32> -> vector<2x16x16xf32>
    "tpu.trace_stop"() : () -> ()
    %cst_23 = arith.constant 1.250000e-01 : f32
    %58 = vector.broadcast %cst_23 : f32 to vector<2x16x16xf32>
    %59 = arith.mulf %57, %58 : vector<2x16x16xf32>
    %60 = vector.broadcast %19 : vector<2x1x16xf32> to vector<2x16x16xf32>
    %61 = arith.addf %59, %60 : vector<2x16x16xf32>
    %cst_24 = arith.constant dense<0xFF800000> : vector<2x16xf32>
    %62 = vector.multi_reduction <maximumf>, %61, %cst_24 [2] : vector<2x16x16xf32> to vector<2x16xf32>
    %63 = vector.shape_cast %62 : vector<2x16xf32> to vector<2x16x1xf32>
    %64 = vector.broadcast %63 : vector<2x16x1xf32> to vector<2x16x16xf32>
    %65 = arith.subf %61, %64 : vector<2x16x16xf32>
    %66 = math.exp %65 : vector<2x16x16xf32>
    %cst_25 = arith.constant dense<0.000000e+00> : vector<2x16xf32>
    %67 = vector.multi_reduction <add>, %66, %cst_25 [2] : vector<2x16x16xf32> to vector<2x16xf32>
    %68 = vector.shape_cast %67 : vector<2x16xf32> to vector<2x16x1xf32>
    %69 = tpu.reciprocal %68 {approx = true} : vector<2x16x1xf32> -> vector<2x16x1xf32>
    %70 = vector.broadcast %69 : vector<2x16x1xf32> to vector<2x16x16xf32>
    %71 = arith.mulf %66, %70 : vector<2x16x16xf32>
    %72 = arith.truncf %71 : vector<2x16x16xf32> to vector<2x16x16xbf16>
    "tpu.trace_start"() <{level = 10 : i32, message = "bqk,bkd->bqd"}> : () -> ()
    %cst_26 = arith.constant dense<0.000000e+00> : vector<2x16x64xf32>
    %73 = tpu.matmul %72, %56, %cst_26 {dimension_numbers = #tpu.dot_dimension_numbers<[2], [1], [1], [2], [0, 0, 0, 1, 1, 2], [0], [0]>} : vector<2x16x16xbf16>, vector<2x16x64xbf16>, vector<2x16x64xf32> -> vector<2x16x64xf32>
    "tpu.trace_stop"() : () -> ()
    %74 = vector.shape_cast %73 : vector<2x16x64xf32> to vector<32x64xf32>
    %75 = arith.truncf %74 : vector<32x64xf32> to vector<32x64xbf16>
    %76 = vector.extract_strided_slice %21 {offsets = [64, 0], sizes = [64, 128], strides = [1, 1]} : vector<128x128xbf16> to vector<64x128xbf16>
    %cst_27 = arith.constant dense<0.000000e+00> : vector<32x128xf32>
    %77 = tpu.matmul %75, %76, %cst_27 {dimension_numbers = #tpu.dot_dimension_numbers<[1], [0], [0], [1], [0, 0, 1, 1], [], []>} : vector<32x64xbf16>, vector<64x128xbf16>, vector<32x128xf32> -> vector<32x128xf32>
    %78 = arith.addf %50, %77 : vector<32x128xf32>
    %c0_28 = arith.constant 0 : index
    %c0_29 = arith.constant 0 : index
    %c0_30 = arith.constant 0 : index
    %79 = vector.load %arg6[%c0_28, %c0_29, %c0_30] : memref<1x1x128xf32, #tpu.memory_space<vmem>>, vector<1x1x128xf32>
    %80 = vector.shape_cast %79 : vector<1x1x128xf32> to vector<1x128xf32>
    %81 = vector.broadcast %80 : vector<1x128xf32> to vector<32x128xf32>
    %82 = arith.addf %78, %81 : vector<32x128xf32>
    %c0_31 = arith.constant 0 : index
    %c0_32 = arith.constant 0 : index
    %c0_33 = arith.constant 0 : index
    %83 = vector.load %arg7[%c0_31, %c0_32, %c0_33] : memref<1x2x128xf32, #tpu.memory_space<vmem>>, vector<1x2x128xf32>
    %84 = vector.shape_cast %83 : vector<1x2x128xf32> to vector<2x128xf32>
    %85 = arith.addf %4, %82 : vector<32x128xf32>
    %86 = vector.extract_strided_slice %84 {offsets = [0, 0], sizes = [1, 128], strides = [1, 1]} : vector<2x128xf32> to vector<1x128xf32>
    %87 = vector.extract_strided_slice %84 {offsets = [1, 0], sizes = [1, 128], strides = [1, 1]} : vector<2x128xf32> to vector<1x128xf32>
    %cst_34 = arith.constant dense<0.000000e+00> : vector<32xf32>
    %88 = vector.multi_reduction <add>, %85, %cst_34 [1] : vector<32x128xf32> to vector<32xf32>
    %89 = vector.shape_cast %88 : vector<32xf32> to vector<32x1xf32>
    %cst_35 = arith.constant 1.280000e+02 : f32
    %90 = vector.broadcast %cst_35 : f32 to vector<32x1xf32>
    %91 = arith.divf %89, %90 : vector<32x1xf32>
    %92 = vector.broadcast %91 : vector<32x1xf32> to vector<32x128xf32>
    %93 = arith.subf %85, %92 : vector<32x128xf32>
    %94 = arith.mulf %93, %93 : vector<32x128xf32>
    %cst_36 = arith.constant dense<0.000000e+00> : vector<32xf32>
    %95 = vector.multi_reduction <add>, %94, %cst_36 [1] : vector<32x128xf32> to vector<32xf32>
    %96 = vector.shape_cast %95 : vector<32xf32> to vector<32x1xf32>
    %cst_37 = arith.constant 1.280000e+02 : f32
    %97 = vector.broadcast %cst_37 : f32 to vector<32x1xf32>
    %98 = arith.divf %96, %97 : vector<32x1xf32>
    %99 = vector.broadcast %91 : vector<32x1xf32> to vector<32x128xf32>
    %100 = arith.subf %85, %99 : vector<32x128xf32>
    %cst_38 = arith.constant 9.99999996E-13 : f32
    %101 = vector.broadcast %cst_38 : f32 to vector<32x1xf32>
    %102 = arith.addf %98, %101 : vector<32x1xf32>
    %103 = math.rsqrt %102 : vector<32x1xf32>
    %104 = vector.broadcast %103 : vector<32x1xf32> to vector<32x128xf32>
    %105 = arith.mulf %100, %104 : vector<32x128xf32>
    %106 = vector.broadcast %86 : vector<1x128xf32> to vector<32x128xf32>
    %107 = arith.mulf %105, %106 : vector<32x128xf32>
    %108 = vector.broadcast %87 : vector<1x128xf32> to vector<32x128xf32>
    %109 = arith.addf %107, %108 : vector<32x128xf32>
    %110 = arith.truncf %109 : vector<32x128xf32> to vector<32x128xbf16>
    %c0_39 = arith.constant 0 : index
    %c0_40 = arith.constant 0 : index
    %c0_41 = arith.constant 0 : index
    %111 = vector.load %arg8[%c0_39, %c0_40, %c0_41] : memref<1x128x256xbf16, #tpu.memory_space<vmem>>, vector<1x128x256xbf16>
    %112 = vector.shape_cast %111 : vector<1x128x256xbf16> to vector<128x256xbf16>
    %cst_42 = arith.constant dense<0.000000e+00> : vector<32x256xf32>
    %113 = tpu.matmul %110, %112, %cst_42 {dimension_numbers = #tpu.dot_dimension_numbers<[1], [0], [0], [1], [0, 0, 1, 1], [], []>} : vector<32x128xbf16>, vector<128x256xbf16>, vector<32x256xf32> -> vector<32x256xf32>
    %c0_43 = arith.constant 0 : index
    %c0_44 = arith.constant 0 : index
    %c0_45 = arith.constant 0 : index
    %114 = vector.load %arg9[%c0_43, %c0_44, %c0_45] : memref<1x1x256xf32, #tpu.memory_space<vmem>>, vector<1x1x256xf32>
    %115 = vector.shape_cast %114 : vector<1x1x256xf32> to vector<1x256xf32>
    %116 = vector.broadcast %115 : vector<1x256xf32> to vector<32x256xf32>
    %117 = arith.addf %113, %116 : vector<32x256xf32>
    %118 = arith.mulf %117, %117 : vector<32x256xf32>
    %119 = arith.mulf %117, %118 : vector<32x256xf32>
    %cst_46 = arith.constant 4.471500e-02 : f32
    %120 = vector.broadcast %cst_46 : f32 to vector<32x256xf32>
    %121 = arith.mulf %120, %119 : vector<32x256xf32>
    %122 = arith.addf %117, %121 : vector<32x256xf32>
    %cst_47 = arith.constant 0.797884583 : f32
    %123 = vector.broadcast %cst_47 : f32 to vector<32x256xf32>
    %124 = arith.mulf %123, %122 : vector<32x256xf32>
    %125 = math.tanh %124 : vector<32x256xf32>
    %cst_48 = arith.constant 1.000000e+00 : f32
    %126 = vector.broadcast %cst_48 : f32 to vector<32x256xf32>
    %127 = arith.addf %126, %125 : vector<32x256xf32>
    %cst_49 = arith.constant 5.000000e-01 : f32
    %128 = vector.broadcast %cst_49 : f32 to vector<32x256xf32>
    %129 = arith.mulf %128, %127 : vector<32x256xf32>
    %130 = arith.mulf %117, %129 : vector<32x256xf32>
    %131 = arith.truncf %130 : vector<32x256xf32> to vector<32x256xbf16>
    %c0_50 = arith.constant 0 : index
    %c0_51 = arith.constant 0 : index
    %c0_52 = arith.constant 0 : index
    %132 = vector.load %arg10[%c0_50, %c0_51, %c0_52] : memref<1x256x128xbf16, #tpu.memory_space<vmem>>, vector<1x256x128xbf16>
    %133 = vector.shape_cast %132 : vector<1x256x128xbf16> to vector<256x128xbf16>
    %cst_53 = arith.constant dense<0.000000e+00> : vector<32x128xf32>
    %134 = tpu.matmul %131, %133, %cst_53 {dimension_numbers = #tpu.dot_dimension_numbers<[1], [0], [0], [1], [0, 0, 1, 1], [], []>} : vector<32x256xbf16>, vector<256x128xbf16>, vector<32x128xf32> -> vector<32x128xf32>
    %c0_54 = arith.constant 0 : index
    %c0_55 = arith.constant 0 : index
    %c0_56 = arith.constant 0 : index
    %135 = vector.load %arg11[%c0_54, %c0_55, %c0_56] : memref<1x1x128xf32, #tpu.memory_space<vmem>>, vector<1x1x128xf32>
    %136 = vector.shape_cast %135 : vector<1x1x128xf32> to vector<1x128xf32>
    %137 = vector.broadcast %136 : vector<1x128xf32> to vector<32x128xf32>
    %138 = arith.addf %134, %137 : vector<32x128xf32>
    %c0_57 = arith.constant 0 : index
    %c0_58 = arith.constant 0 : index
    %c0_59 = arith.constant 0 : index
    %139 = vector.load %arg12[%c0_57, %c0_58, %c0_59] : memref<1x2x128xf32, #tpu.memory_space<vmem>>, vector<1x2x128xf32>
    %140 = vector.shape_cast %139 : vector<1x2x128xf32> to vector<2x128xf32>
    %141 = arith.addf %109, %138 : vector<32x128xf32>
    %142 = vector.extract_strided_slice %140 {offsets = [0, 0], sizes = [1, 128], strides = [1, 1]} : vector<2x128xf32> to vector<1x128xf32>
    %143 = vector.extract_strided_slice %140 {offsets = [1, 0], sizes = [1, 128], strides = [1, 1]} : vector<2x128xf32> to vector<1x128xf32>
    %cst_60 = arith.constant dense<0.000000e+00> : vector<32xf32>
    %144 = vector.multi_reduction <add>, %141, %cst_60 [1] : vector<32x128xf32> to vector<32xf32>
    %145 = vector.shape_cast %144 : vector<32xf32> to vector<32x1xf32>
    %cst_61 = arith.constant 1.280000e+02 : f32
    %146 = vector.broadcast %cst_61 : f32 to vector<32x1xf32>
    %147 = arith.divf %145, %146 : vector<32x1xf32>
    %148 = vector.broadcast %147 : vector<32x1xf32> to vector<32x128xf32>
    %149 = arith.subf %141, %148 : vector<32x128xf32>
    %150 = arith.mulf %149, %149 : vector<32x128xf32>
    %cst_62 = arith.constant dense<0.000000e+00> : vector<32xf32>
    %151 = vector.multi_reduction <add>, %150, %cst_62 [1] : vector<32x128xf32> to vector<32xf32>
    %152 = vector.shape_cast %151 : vector<32xf32> to vector<32x1xf32>
    %cst_63 = arith.constant 1.280000e+02 : f32
    %153 = vector.broadcast %cst_63 : f32 to vector<32x1xf32>
    %154 = arith.divf %152, %153 : vector<32x1xf32>
    %155 = vector.broadcast %147 : vector<32x1xf32> to vector<32x128xf32>
    %156 = arith.subf %141, %155 : vector<32x128xf32>
    %cst_64 = arith.constant 9.99999996E-13 : f32
    %157 = vector.broadcast %cst_64 : f32 to vector<32x1xf32>
    %158 = arith.addf %154, %157 : vector<32x1xf32>
    %159 = math.rsqrt %158 : vector<32x1xf32>
    %160 = vector.broadcast %159 : vector<32x1xf32> to vector<32x128xf32>
    %161 = arith.mulf %156, %160 : vector<32x128xf32>
    %162 = vector.broadcast %142 : vector<1x128xf32> to vector<32x128xf32>
    %163 = arith.mulf %161, %162 : vector<32x128xf32>
    %164 = vector.broadcast %143 : vector<1x128xf32> to vector<32x128xf32>
    %165 = arith.addf %163, %164 : vector<32x128xf32>
    %166 = vector.shape_cast %165 : vector<32x128xf32> to vector<2x16x128xf32>
    %c0_65 = arith.constant 0 : index
    %c0_66 = arith.constant 0 : index
    %c0_67 = arith.constant 0 : index
    %167 = vector.load %arg13[%c0_65, %c0_66, %c0_67] : memref<2x16x128xf32, #tpu.memory_space<vmem>>, vector<2x16x128xf32>
    tpu.vector_store %arg13[%c0_65, %c0_66, %c0_67], %166 {strides = array<i32>} : memref<2x16x128xf32, #tpu.memory_space<vmem>>, vector<2x16x128xf32>,
    %c1_i32 = arith.constant 1 : i32
    %168 = arith.cmpi eq, %arg0, %c1_i32 : i32
    %169 = arith.extui %168 : i1 to i32
    %c0_i32_68 = arith.constant 0 : i32
    %170 = arith.cmpi ne, %169, %c0_i32_68 : i32
    scf.if %170 {
      %171 = vector.extract_strided_slice %166 {offsets = [0, 0, 0], sizes = [2, 1, 128], strides = [1, 1, 1]} : vector<2x16x128xf32> to vector<2x1x128xf32>
      %c0_69 = arith.constant 0 : index
      %c0_70 = arith.constant 0 : index
      %c0_71 = arith.constant 0 : index
      %172 = vector.load %arg14[%c0_69, %c0_70, %c0_71] : memref<2x1x128xf32, #tpu.memory_space<vmem>>, vector<2x1x128xf32>
      tpu.vector_store %arg14[%c0_69, %c0_70, %c0_71], %171 {strides = array<i32>} : memref<2x1x128xf32, #tpu.memory_space<vmem>>, vector<2x1x128xf32>,
    } else {
    }
    return
  }
  func.func @transform_0(%arg0: i32) -> (i32, i32, i32) {
    %c0_i32 = arith.constant 0 : i32
    %c0_i32_0 = arith.constant 0 : i32
    %c0_i32_1 = arith.constant 0 : i32
    %c0_i32_2 = arith.constant 0 : i32
    return %c0_i32, %c0_i32_0, %c0_i32_1 : i32, i32, i32
  }
  func.func @transform_1(%arg0: i32) -> (i32, i32, i32) {
    %c0_i32 = arith.constant 0 : i32
    %c0_i32_0 = arith.constant 0 : i32
    %c0_i32_1 = arith.constant 0 : i32
    %c0_i32_2 = arith.constant 0 : i32
    return %c0_i32, %c0_i32_0, %c0_i32_1 : i32, i32, i32
  }
  func.func @transform_2(%arg0: i32) -> (i32, i32, i32) {
    %c0_i32 = arith.constant 0 : i32
    %c0_i32_0 = arith.constant 0 : i32
    %c0_i32_1 = arith.constant 0 : i32
    return %arg0, %c0_i32, %c0_i32_0 : i32, i32, i32
  }
  func.func @transform_3(%arg0: i32) -> (i32, i32, i32) {
    %c0_i32 = arith.constant 0 : i32
    %c0_i32_0 = arith.constant 0 : i32
    %c0_i32_1 = arith.constant 0 : i32
    return %arg0, %c0_i32, %c0_i32_0 : i32, i32, i32
  }
  func.func @transform_4(%arg0: i32) -> (i32, i32, i32) {
    %c0_i32 = arith.constant 0 : i32
    %c0_i32_0 = arith.constant 0 : i32
    %c0_i32_1 = arith.constant 0 : i32
    return %arg0, %c0_i32, %c0_i32_0 : i32, i32, i32
  }
  func.func @transform_5(%arg0: i32) -> (i32, i32, i32) {
    %c0_i32 = arith.constant 0 : i32
    %c0_i32_0 = arith.constant 0 : i32
    %c0_i32_1 = arith.constant 0 : i32
    return %arg0, %c0_i32, %c0_i32_0 : i32, i32, i32
  }
  func.func @transform_6(%arg0: i32) -> (i32, i32, i32) {
    %c0_i32 = arith.constant 0 : i32
    %c0_i32_0 = arith.constant 0 : i32
    %c0_i32_1 = arith.constant 0 : i32
    return %arg0, %c0_i32, %c0_i32_0 : i32, i32, i32
  }
  func.func @transform_7(%arg0: i32) -> (i32, i32, i32) {
    %c0_i32 = arith.constant 0 : i32
    %c0_i32_0 = arith.constant 0 : i32
    %c0_i32_1 = arith.constant 0 : i32
    return %arg0, %c0_i32, %c0_i32_0 : i32, i32, i32
  }
  func.func @transform_8(%arg0: i32) -> (i32, i32, i32) {
    %c0_i32 = arith.constant 0 : i32
    %c0_i32_0 = arith.constant 0 : i32
    %c0_i32_1 = arith.constant 0 : i32
    return %arg0, %c0_i32, %c0_i32_0 : i32, i32, i32
  }
  func.func @transform_9(%arg0: i32) -> (i32, i32, i32) {
    %c0_i32 = arith.constant 0 : i32
    %c0_i32_0 = arith.constant 0 : i32
    %c0_i32_1 = arith.constant 0 : i32
    return %arg0, %c0_i32, %c0_i32_0 : i32, i32, i32
  }
  func.func @transform_10(%arg0: i32) -> (i32, i32, i32) {
    %c0_i32 = arith.constant 0 : i32
    %c0_i32_0 = arith.constant 0 : i32
    %c0_i32_1 = arith.constant 0 : i32
    return %arg0, %c0_i32, %c0_i32_0 : i32, i32, i32
  }
  func.func @transform_11(%arg0: i32) -> (i32, i32, i32) {
    %c0_i32 = arith.constant 0 : i32
    %c0_i32_0 = arith.constant 0 : i32
    %c0_i32_1 = arith.constant 0 : i32
    return %arg0, %c0_i32, %c0_i32_0 : i32, i32, i32
  }
  func.func @transform_12(%arg0: i32) -> (i32, i32, i32) {
    %c0_i32 = arith.constant 0 : i32
    %c0_i32_0 = arith.constant 0 : i32
    %c0_i32_1 = arith.constant 0 : i32
    %c0_i32_2 = arith.constant 0 : i32
    return %c0_i32, %c0_i32_0, %c0_i32_1 : i32, i32, i32
  }
  func.func @transform_13(%arg0: i32) -> (i32, i32, i32) {
    %c0_i32 = arith.constant 0 : i32
    %c0_i32_0 = arith.constant 0 : i32
    %c0_i32_1 = arith.constant 0 : i32
    %c0_i32_2 = arith.constant 0 : i32
    return %c0_i32, %c0_i32_0, %c0_i32_1 : i32, i32, i32
  }
}

module attributes {stable_mosaic.version = 11 : i64} {
  func.func @encoder_kernel(%arg0: i32, %arg1: memref<2x16x128xf32, #tpu.memory_space<vmem>>, %arg2: memref<2x1x16xf32, #tpu.memory_space<vmem>>, %arg3: memref<1x128x384xbf16, #tpu.memory_space<vmem>>, %arg4: memref<1x1x384xf32, #tpu.memory_space<vmem>>, %arg5: memref<1x128x128xbf16, #tpu.memory_space<vmem>>, %arg6: memref<1x1x128xf32, #tpu.memory_space<vmem>>, %arg7: memref<1x2x128xf32, #tpu.memory_space<vmem>>, %arg8: memref<1x128x256xbf16, #tpu.memory_space<vmem>>, %arg9: memref<1x1x256xf32, #tpu.memory_space<vmem>>, %arg10: memref<1x256x128xbf16, #tpu.memory_space<vmem>>, %arg11: memref<1x1x128xf32, #tpu.memory_space<vmem>>, %arg12: memref<1x2x128xf32, #tpu.memory_space<vmem>>, %arg13: memref<2x16x128xf32, #tpu.memory_space<vmem>>, %arg14: memref<2x1x128xf32, #tpu.memory_space<vmem>>) attributes {dimension_semantics = [#tpu.dimension_semantics<arbitrary>], iteration_bounds = array<i64: 2>, scalar_prefetch = 0 : i64, scratch_operands = 0 : i64, tpu.core_type = #tpu.core_type<tc>, window_params = [{pipeline_mode = #tpu.pipeline_mode<synchronous>, transform_indices = @transform_0, window_bounds = array<i64: 2, 16, 128>}, {pipeline_mode = #tpu.pipeline_mode<synchronous>, transform_indices = @transform_1, window_bounds = array<i64: 2, 1, 16>}, {transform_indices = @transform_2, window_bounds = array<i64: 1, 128, 384>}, {transform_indices = @transform_3, window_bounds = array<i64: 1, 1, 384>}, {transform_indices = @transform_4, window_bounds = array<i64: 1, 128, 128>}, {transform_indices = @transform_5, window_bounds = array<i64: 1, 1, 128>}, {transform_indices = @transform_6, window_bounds = array<i64: 1, 2, 128>}, {transform_indices = @transform_7, window_bounds = array<i64: 1, 128, 256>}, {transform_indices = @transform_8, window_bounds = array<i64: 1, 1, 256>}, {transform_indices = @transform_9, window_bounds = array<i64: 1, 256, 128>}, {transform_indices = @transform_10, window_bounds = array<i64: 1, 1, 128>}, {transform_indices = @transform_11, window_bounds = array<i64: 1, 2, 128>}, {pipeline_mode = #tpu.pipeline_mode<synchronous>, transform_indices = @transform_12, window_bounds = array<i64: 2, 16, 128>}, {pipeline_mode = #tpu.pipeline_mode<synchronous>, transform_indices = @transform_13, window_bounds = array<i64: 2, 1, 128>}]} {
    %c0_i32 = arith.constant 0 : i32
    %0 = arith.cmpi eq, %arg0, %c0_i32 : i32
    %1 = arith.extui %0 : i1 to i32
    %c0_i32_0 = arith.constant 0 : i32
    %2 = arith.cmpi ne, %1, %c0_i32_0 : i32
    scf.if %2 {
      %c0_69 = arith.constant 0 : index
      %c0_70 = arith.constant 0 : index
      %c0_71 = arith.constant 0 : index
      %171 = vector.load %arg1[%c0_69, %c0_70, %c0_71] : memref<2x16x128xf32, #tpu.memory_space<vmem>>, vector<2x16x128xf32>
      %c0_72 = arith.constant 0 : index
      %c0_73 = arith.constant 0 : index
      %c0_74 = arith.constant 0 : index
      %172 = vector.load %arg13[%c0_72, %c0_73, %c0_74] : memref<2x16x128xf32, #tpu.memory_space<vmem>>, vector<2x16x128xf32>
      tpu.vector_store %arg13[%c0_72, %c0_73, %c0_74], %171 {strides = array<i32>} : memref<2x16x128xf32, #tpu.memory_space<vmem>>, vector<2x16x128xf32>,
    } else {
    }
    %c0 = arith.constant 0 : index
    %c0_1 = arith.constant 0 : index
    %c0_2 = arith.constant 0 : index
    %3 = vector.load %arg13[%c0, %c0_1, %c0_2] : memref<2x16x128xf32, #tpu.memory_space<vmem>>, vector<2x16x128xf32>
    %4 = vector.shape_cast %3 : vector<2x16x128xf32> to vector<32x128xf32>
    %5 = arith.truncf %4 : vector<32x128xf32> to vector<32x128xbf16>
    %c0_3 = arith.constant 0 : index
    %c0_4 = arith.constant 0 : index
    %c0_5 = arith.constant 0 : index
    %6 = vector.load %arg3[%c0_3, %c0_4, %c0_5] : memref<1x128x384xbf16, #tpu.memory_space<vmem>>, vector<1x128x384xbf16>
    %7 = vector.shape_cast %6 : vector<1x128x384xbf16> to vector<128x384xbf16>
    %cst = arith.constant dense<0.000000e+00> : vector<32x384xf32>
    %8 = tpu.matmul %5, %7, %cst {dimension_numbers = #tpu.dot_dimension_numbers<[1], [0], [0], [1], [0, 0, 1, 1], [], []>} : vector<32x128xbf16>, vector<128x384xbf16>, vector<32x384xf32> -> vector<32x384xf32>
    %c0_6 = arith.constant 0 : index
    %c0_7 = arith.constant 0 : index
    %c0_8 = arith.constant 0 : index
    %9 = vector.load %arg4[%c0_6, %c0_7, %c0_8] : memref<1x1x384xf32, #tpu.memory_space<vmem>>, vector<1x1x384xf32>
    %10 = vector.shape_cast %9 : vector<1x1x384xf32> to vector<1x384xf32>
    %11 = vector.broadcast %10 : vector<1x384xf32> to vector<32x384xf32>
    %12 = arith.addf %8, %11 : vector<32x384xf32>
    %13 = vector.extract_strided_slice %12 {offsets = [0, 0], sizes = [32, 128], strides = [1, 1]} : vector<32x384xf32> to vector<32x128xf32>
    %14 = vector.shape_cast %13 : vector<32x128xf32> to vector<2x16x128xf32>
    %15 = vector.extract_strided_slice %12 {offsets = [0, 128], sizes = [32, 128], strides = [1, 1]} : vector<32x384xf32> to vector<32x128xf32>
    %16 = vector.shape_cast %15 : vector<32x128xf32> to vector<2x16x128xf32>
    %17 = vector.extract_strided_slice %12 {offsets = [0, 256], sizes = [32, 128], strides = [1, 1]} : vector<32x384xf32> to vector<32x128xf32>
    %18 = vector.shape_cast %17 : vector<32x128xf32> to vector<2x16x128xf32>
    %c0_9 = arith.constant 0 : index
    %c0_10 = arith.constant 0 : index
    %c0_11 = arith.constant 0 : index
    %19 = vector.load %arg2[%c0_9, %c0_10, %c0_11] : memref<2x1x16xf32, #tpu.memory_space<vmem>>, vector<2x1x16xf32>
    %c0_12 = arith.constant 0 : index
    %c0_13 = arith.constant 0 : index
    %c0_14 = arith.constant 0 : index
    %20 = vector.load %arg5[%c0_12, %c0_13, %c0_14] : memref<1x128x128xbf16, #tpu.memory_space<vmem>>, vector<1x128x128xbf16>
    %21 = vector.shape_cast %20 : vector<1x128x128xbf16> to vector<128x128xbf16>
    %cst_15 = arith.constant 0.000000e+00 : f32
    %22 = vector.broadcast %cst_15 : f32 to vector<32x128xf32>
    %23 = vector.extract_strided_slice %14 {offsets = [0, 0, 0], sizes = [2, 16, 64], strides = [1, 1, 1]} : vector<2x16x128xf32> to vector<2x16x64xf32>
    %24 = arith.truncf %23 : vector<2x16x64xf32> to vector<2x16x64xbf16>
    %25 = vector.extract_strided_slice %16 {offsets = [0, 0, 0], sizes = [2, 16, 64], strides = [1, 1, 1]} : vector<2x16x128xf32> to vector<2x16x64xf32>
    %26 = arith.truncf %25 : vector<2x16x64xf32> to vector<2x16x64xbf16>
    %27 = vector.extract_strided_slice %18 {offsets = [0, 0, 0], sizes = [2, 16, 64], strides = [1, 1, 1]} : vector<2x16x128xf32> to vector<2x16x64xf32>
    %28 = arith.truncf %27 : vector<2x16x64xf32> to vector<2x16x64xbf16>
    "tpu.trace_start"() <{level = 10 : i32, message = "bqd,bkd->bqk"}> : () -> ()
    %cst_16 = arith.constant dense<0.000000e+00> : vector<2x16x16xf32>
    %29 = tpu.matmul %24, %26, %cst_16 {dimension_numbers = #tpu.dot_dimension_numbers<[2], [2], [1], [1], [0, 0, 0, 1, 1, 1], [0], [0]>} : vector<2x16x64xbf16>, vector<2x16x64xbf16>, vector<2x16x16xf32> -> vector<2x16x16xf32>
    "tpu.trace_stop"() : () -> ()
    %cst_17 = arith.constant 1.250000e-01 : f32
    %30 = vector.broadcast %cst_17 : f32 to vector<2x16x16xf32>
    %31 = arith.mulf %29, %30 : vector<2x16x16xf32>
    %32 = vector.broadcast %19 : vector<2x1x16xf32> to vector<2x16x16xf32>
    %33 = arith.addf %31, %32 : vector<2x16x16xf32>
    %cst_18 = arith.constant dense<0xFF800000> : vector<2x16xf32>
    %34 = vector.multi_reduction <maximumf>, %33, %cst_18 [2] : vector<2x16x16xf32> to vector<2x16xf32>
    %35 = vector.shape_cast %34 : vector<2x16xf32> to vector<2x16x1xf32>
    %36 = vector.broadcast %35 : vector<2x16x1xf32> to vector<2x16x16xf32>
    %37 = arith.subf %33, %36 : vector<2x16x16xf32>
    %38 = math.exp %37 : vector<2x16x16xf32>
    %cst_19 = arith.constant dense<0.000000e+00> : vector<2x16xf32>
    %39 = vector.multi_reduction <add>, %38, %cst_19 [2] : vector<2x16x16xf32> to vector<2x16xf32>
    %40 = vector.shape_cast %39 : vector<2x16xf32> to vector<2x16x1xf32>
    %41 = tpu.reciprocal %40 {approx = true} : vector<2x16x1xf32> -> vector<2x16x1xf32>
    %42 = vector.broadcast %41 : vector<2x16x1xf32> to vector<2x16x16xf32>
    %43 = arith.mulf %38, %42 : vector<2x16x16xf32>
    %44 = arith.truncf %43 : vector<2x16x16xf32> to vector<2x16x16xbf16>
    "tpu.trace_start"() <{level = 10 : i32, message = "bqk,bkd->bqd"}> : () -> ()
    %cst_20 = arith.constant dense<0.000000e+00> : vector<2x16x64xf32>
    %45 = tpu.matmul %44, %28, %cst_20 {dimension_numbers = #tpu.dot_dimension_numbers<[2], [1], [1], [2], [0, 0, 0, 1, 1, 2], [0], [0]>} : vector<2x16x16xbf16>, vector<2x16x64xbf16>, vector<2x16x64xf32> -> vector<2x16x64xf32>
    "tpu.trace_stop"() : () -> ()
    %46 = vector.shape_cast %45 : vector<2x16x64xf32> to vector<32x64xf32>
    %47 = arith.truncf %46 : vector<32x64xf32> to vector<32x64xbf16>
    %48 = vector.extract_strided_slice %21 {offsets = [0, 0], sizes = [64, 128], strides = [1, 1]} : vector<128x128xbf16> to vector<64x128xbf16>
    %cst_21 = arith.constant dense<0.000000e+00> : vector<32x128xf32>
    %49 = tpu.matmul %47, %48, %cst_21 {dimension_numbers = #tpu.dot_dimension_numbers<[1], [0], [0], [1], [0, 0, 1, 1], [], []>} : vector<32x64xbf16>, vector<64x128xbf16>, vector<32x128xf32> -> vector<32x128xf32>
    %50 = arith.addf %22, %49 : vector<32x128xf32>
    %51 = vector.extract_strided_slice %14 {offsets = [0, 0, 64], sizes = [2, 16, 64], strides = [1, 1, 1]} : vector<2x16x128xf32> to vector<2x16x64xf32>
    %52 = arith.truncf %51 : vector<2x16x64xf32> to vector<2x16x64xbf16>
    %53 = vector.extract_strided_slice %16 {offsets = [0, 0, 64], sizes = [2, 16, 64], strides = [1, 1, 1]} : vector<2x16x128xf32> to vector<2x16x64xf32>
    %54 = arith.truncf %53 : vector<2x16x64xf32> to vector<2x16x64xbf16>
    %55 = vector.extract_strided_slice %18 {offsets = [0, 0, 64], sizes = [2, 16, 64], strides = [1, 1, 1]} : vector<2x16x128xf32> to vector<2x16x64xf32>
    %56 = arith.truncf %55 : vector<2x16x64xf32> to vector<2x16x64xbf16>
    "tpu.trace_start"() <{level = 10 : i32, message = "bqd,bkd->bqk"}> : () -> ()
    %cst_22 = arith.constant dense<0.000000e+00> : vector<2x16x16xf32>
    %57 = tpu.matmul %52, %54, %cst_22 {dimension_numbers = #tpu.dot_dimension_numbers<[2], [2], [1], [1], [0, 0, 0, 1, 1, 1], [0], [0]>} : vector<2x16x64xbf16>, vector<2x16x64xbf16>, vector<2x16x16xf32> -> vector<2x16x16xf32>
    "tpu.trace_stop"() : () -> ()
    %cst_23 = arith.constant 1.250000e-01 : f32
    %58 = vector.broadcast %cst_23 : f32 to vector<2x16x16xf32>
    %59 = arith.mulf %57, %58 : vector<2x16x16xf32>
    %60 = vector.broadcast %19 : vector<2x1x16xf32> to vector<2x16x16xf32>
    %61 = arith.addf %59, %60 : vector<2x16x16xf32>
    %cst_24 = arith.constant dense<0xFF800000> : vector<2x16xf32>
    %62 = vector.multi_reduction <maximumf>, %61, %cst_24 [2] : vector<2x16x16xf32> to vector<2x16xf32>
    %63 = vector.shape_cast %62 : vector<2x16xf32> to vector<2x16x1xf32>
    %64 = vector.broadcast %63 : vector<2x16x1xf32> to vector<2x16x16xf32>
    %65 = arith.subf %61, %64 : vector<2x16x16xf32>
    %66 = math.exp %65 : vector<2x16x16xf32>
    %cst_25 = arith.constant dense<0.000000e+00> : vector<2x16xf32>
    %67 = vector.multi_reduction <add>, %66, %cst_25 [2] : vector<2x16x16xf32> to vector<2x16xf32>
    %68 = vector.shape_cast %67 : vector<2x16xf32> to vector<2x16x1xf32>
    %69 = tpu.reciprocal %68 {approx = true} : vector<2x16x1xf32> -> vector<2x16x1xf32>
    %70 = vector.broadcast %69 : vector<2x16x1xf32> to vector<2x16x16xf32>
    %71 = arith.mulf %66, %70 : vector<2x16x16xf32>
    %72 = arith.truncf %71 : vector<2x16x16xf32> to vector<2x16x16xbf16>
    "tpu.trace_start"() <{level = 10 : i32, message = "bqk,bkd->bqd"}> : () -> ()
    %cst_26 = arith.constant dense<0.000000e+00> : vector<2x16x64xf32>
    %73 = tpu.matmul %72, %56, %cst_26 {dimension_numbers = #tpu.dot_dimension_numbers<[2], [1], [1], [2], [0, 0, 0, 1, 1, 2], [0], [0]>} : vector<2x16x16xbf16>, vector<2x16x64xbf16>, vector<2x16x64xf32> -> vector<2x16x64xf32>
    "tpu.trace_stop"() : () -> ()
    %74 = vector.shape_cast %73 : vector<2x16x64xf32> to vector<32x64xf32>
    %75 = arith.truncf %74 : vector<32x64xf32> to vector<32x64xbf16>
    %76 = vector.extract_strided_slice %21 {offsets = [64, 0], sizes = [64, 128], strides = [1, 1]} : vector<128x128xbf16> to vector<64x128xbf16>
    %cst_27 = arith.constant dense<0.000000e+00> : vector<32x128xf32>
    %77 = tpu.matmul %75, %76, %cst_27 {dimension_numbers = #tpu.dot_dimension_numbers<[1], [0], [0], [1], [0, 0, 1, 1], [], []>} : vector<32x64xbf16>, vector<64x128xbf16>, vector<32x128xf32> -> vector<32x128xf32>
    %78 = arith.addf %50, %77 : vector<32x128xf32>
    %c0_28 = arith.constant 0 : index
    %c0_29 = arith.constant 0 : index
    %c0_30 = arith.constant 0 : index
    %79 = vector.load %arg6[%c0_28, %c0_29, %c0_30] : memref<1x1x128xf32, #tpu.memory_space<vmem>>, vector<1x1x128xf32>
    %80 = vector.shape_cast %79 : vector<1x1x128xf32> to vector<1x128xf32>
    %81 = vector.broadcast %80 : vector<1x128xf32> to vector<32x128xf32>
    %82 = arith.addf %78, %81 : vector<32x128xf32>
    %c0_31 = arith.constant 0 : index
    %c0_32 = arith.constant 0 : index
    %c0_33 = arith.constant 0 : index
    %83 = vector.load %arg7[%c0_31, %c0_32, %c0_33] : memref<1x2x128xf32, #tpu.memory_space<vmem>>, vector<1x2x128xf32>
    %84 = vector.shape_cast %83 : vector<1x2x128xf32> to vector<2x128xf32>
    %85 = arith.addf %4, %82 : vector<32x128xf32>
    %86 = vector.extract_strided_slice %84 {offsets = [0, 0], sizes = [1, 128], strides = [1, 1]} : vector<2x128xf32> to vector<1x128xf32>
    %87 = vector.extract_strided_slice %84 {offsets = [1, 0], sizes = [1, 128], strides = [1, 1]} : vector<2x128xf32> to vector<1x128xf32>
    %cst_34 = arith.constant dense<0.000000e+00> : vector<32xf32>
    %88 = vector.multi_reduction <add>, %85, %cst_34 [1] : vector<32x128xf32> to vector<32xf32>
    %89 = vector.shape_cast %88 : vector<32xf32> to vector<32x1xf32>
    %cst_35 = arith.constant 1.280000e+02 : f32
    %90 = vector.broadcast %cst_35 : f32 to vector<32x1xf32>
    %91 = arith.divf %89, %90 : vector<32x1xf32>
    %92 = vector.broadcast %91 : vector<32x1xf32> to vector<32x128xf32>
    %93 = arith.subf %85, %92 : vector<32x128xf32>
    %94 = arith.mulf %93, %93 : vector<32x128xf32>
    %cst_36 = arith.constant dense<0.000000e+00> : vector<32xf32>
    %95 = vector.multi_reduction <add>, %94, %cst_36 [1] : vector<32x128xf32> to vector<32xf32>
    %96 = vector.shape_cast %95 : vector<32xf32> to vector<32x1xf32>
    %cst_37 = arith.constant 1.280000e+02 : f32
    %97 = vector.broadcast %cst_37 : f32 to vector<32x1xf32>
    %98 = arith.divf %96, %97 : vector<32x1xf32>
    %99 = vector.broadcast %91 : vector<32x1xf32> to vector<32x128xf32>
    %100 = arith.subf %85, %99 : vector<32x128xf32>
    %cst_38 = arith.constant 9.99999996E-13 : f32
    %101 = vector.broadcast %cst_38 : f32 to vector<32x1xf32>
    %102 = arith.addf %98, %101 : vector<32x1xf32>
    %103 = math.rsqrt %102 : vector<32x1xf32>
    %104 = vector.broadcast %103 : vector<32x1xf32> to vector<32x128xf32>
    %105 = arith.mulf %100, %104 : vector<32x128xf32>
    %106 = vector.broadcast %86 : vector<1x128xf32> to vector<32x128xf32>
    %107 = arith.mulf %105, %106 : vector<32x128xf32>
    %108 = vector.broadcast %87 : vector<1x128xf32> to vector<32x128xf32>
    %109 = arith.addf %107, %108 : vector<32x128xf32>
    %110 = arith.truncf %109 : vector<32x128xf32> to vector<32x128xbf16>
    %c0_39 = arith.constant 0 : index
    %c0_40 = arith.constant 0 : index
    %c0_41 = arith.constant 0 : index
    %111 = vector.load %arg8[%c0_39, %c0_40, %c0_41] : memref<1x128x256xbf16, #tpu.memory_space<vmem>>, vector<1x128x256xbf16>
    %112 = vector.shape_cast %111 : vector<1x128x256xbf16> to vector<128x256xbf16>
    %cst_42 = arith.constant dense<0.000000e+00> : vector<32x256xf32>
    %113 = tpu.matmul %110, %112, %cst_42 {dimension_numbers = #tpu.dot_dimension_numbers<[1], [0], [0], [1], [0, 0, 1, 1], [], []>} : vector<32x128xbf16>, vector<128x256xbf16>, vector<32x256xf32> -> vector<32x256xf32>
    %c0_43 = arith.constant 0 : index
    %c0_44 = arith.constant 0 : index
    %c0_45 = arith.constant 0 : index
    %114 = vector.load %arg9[%c0_43, %c0_44, %c0_45] : memref<1x1x256xf32, #tpu.memory_space<vmem>>, vector<1x1x256xf32>
    %115 = vector.shape_cast %114 : vector<1x1x256xf32> to vector<1x256xf32>
    %116 = vector.broadcast %115 : vector<1x256xf32> to vector<32x256xf32>
    %117 = arith.addf %113, %116 : vector<32x256xf32>
    %118 = arith.mulf %117, %117 : vector<32x256xf32>
    %119 = arith.mulf %117, %118 : vector<32x256xf32>
    %cst_46 = arith.constant 4.471500e-02 : f32
    %120 = vector.broadcast %cst_46 : f32 to vector<32x256xf32>
    %121 = arith.mulf %120, %119 : vector<32x256xf32>
    %122 = arith.addf %117, %121 : vector<32x256xf32>
    %cst_47 = arith.constant 0.797884583 : f32
    %123 = vector.broadcast %cst_47 : f32 to vector<32x256xf32>
    %124 = arith.mulf %123, %122 : vector<32x256xf32>
    %125 = math.tanh %124 : vector<32x256xf32>
    %cst_48 = arith.constant 1.000000e+00 : f32
    %126 = vector.broadcast %cst_48 : f32 to vector<32x256xf32>
    %127 = arith.addf %126, %125 : vector<32x256xf32>
    %cst_49 = arith.constant 5.000000e-01 : f32
    %128 = vector.broadcast %cst_49 : f32 to vector<32x256xf32>
    %129 = arith.mulf %128, %127 : vector<32x256xf32>
    %130 = arith.mulf %117, %129 : vector<32x256xf32>
    %131 = arith.truncf %130 : vector<32x256xf32> to vector<32x256xbf16>
    %c0_50 = arith.constant 0 : index
    %c0_51 = arith.constant 0 : index
    %c0_52 = arith.constant 0 : index
    %132 = vector.load %arg10[%c0_50, %c0_51, %c0_52] : memref<1x256x128xbf16, #tpu.memory_space<vmem>>, vector<1x256x128xbf16>
    %133 = vector.shape_cast %132 : vector<1x256x128xbf16> to vector<256x128xbf16>
    %cst_53 = arith.constant dense<0.000000e+00> : vector<32x128xf32>
    %134 = tpu.matmul %131, %133, %cst_53 {dimension_numbers = #tpu.dot_dimension_numbers<[1], [0], [0], [1], [0, 0, 1, 1], [], []>} : vector<32x256xbf16>, vector<256x128xbf16>, vector<32x128xf32> -> vector<32x128xf32>
    %c0_54 = arith.constant 0 : index
    %c0_55 = arith.constant 0 : index
    %c0_56 = arith.constant 0 : index
    %135 = vector.load %arg11[%c0_54, %c0_55, %c0_56] : memref<1x1x128xf32, #tpu.memory_space<vmem>>, vector<1x1x128xf32>
    %136 = vector.shape_cast %135 : vector<1x1x128xf32> to vector<1x128xf32>
    %137 = vector.broadcast %136 : vector<1x128xf32> to vector<32x128xf32>
    %138 = arith.addf %134, %137 : vector<32x128xf32>
    %c0_57 = arith.constant 0 : index
    %c0_58 = arith.constant 0 : index
    %c0_59 = arith.constant 0 : index
    %139 = vector.load %arg12[%c0_57, %c0_58, %c0_59] : memref<1x2x128xf32, #tpu.memory_space<vmem>>, vector<1x2x128xf32>
    %140 = vector.shape_cast %139 : vector<1x2x128xf32> to vector<2x128xf32>
    %141 = arith.addf %109, %138 : vector<32x128xf32>
    %142 = vector.extract_strided_slice %140 {offsets = [0, 0], sizes = [1, 128], strides = [1, 1]} : vector<2x128xf32> to vector<1x128xf32>
    %143 = vector.extract_strided_slice %140 {offsets = [1, 0], sizes = [1, 128], strides = [1, 1]} : vector<2x128xf32> to vector<1x128xf32>
    %cst_60 = arith.constant dense<0.000000e+00> : vector<32xf32>
    %144 = vector.multi_reduction <add>, %141, %cst_60 [1] : vector<32x128xf32> to vector<32xf32>
    %145 = vector.shape_cast %144 : vector<32xf32> to vector<32x1xf32>
    %cst_61 = arith.constant 1.280000e+02 : f32
    %146 = vector.broadcast %cst_61 : f32 to vector<32x1xf32>
    %147 = arith.divf %145, %146 : vector<32x1xf32>
    %148 = vector.broadcast %147 : vector<32x1xf32> to vector<32x128xf32>
    %149 = arith.subf %141, %148 : vector<32x128xf32>
    %150 = arith.mulf %149, %149 : vector<32x128xf32>
    %cst_62 = arith.constant dense<0.000000e+00> : vector<32xf32>
    %151 = vector.multi_reduction <add>, %150, %cst_62 [1] : vector<32x128xf32> to vector<32xf32>
    %152 = vector.shape_cast %151 : vector<32xf32> to vector<32x1xf32>
    %cst_63 = arith.constant 1.280000e+02 : f32
    %153 = vector.broadcast %cst_63 : f32 to vector<32x1xf32>
    %154 = arith.divf %152, %153 : vector<32x1xf32>
    %155 = vector.broadcast %147 : vector<32x1xf32> to vector<32x128xf32>
    %156 = arith.subf %141, %155 : vector<32x128xf32>
    %cst_64 = arith.constant 9.99999996E-13 : f32
    %157 = vector.broadcast %cst_64 : f32 to vector<32x1xf32>
    %158 = arith.addf %154, %157 : vector<32x1xf32>
    %159 = math.rsqrt %158 : vector<32x1xf32>
    %160 = vector.broadcast %159 : vector<32x1xf32> to vector<32x128xf32>
    %161 = arith.mulf %156, %160 : vector<32x128xf32>
    %162 = vector.broadcast %142 : vector<1x128xf32> to vector<32x128xf32>
    %163 = arith.mulf %161, %162 : vector<32x128xf32>
    %164 = vector.broadcast %143 : vector<1x128xf32> to vector<32x128xf32>
    %165 = arith.addf %163, %164 : vector<32x128xf32>
    %166 = vector.shape_cast %165 : vector<32x128xf32> to vector<2x16x128xf32>
    %c0_65 = arith.constant 0 : index
    %c0_66 = arith.constant 0 : index
    %c0_67 = arith.constant 0 : index
    %167 = vector.load %arg13[%c0_65, %c0_66, %c0_67] : memref<2x16x128xf32, #tpu.memory_space<vmem>>, vector<2x16x128xf32>
    tpu.vector_store %arg13[%c0_65, %c0_66, %c0_67], %166 {strides = array<i32>} : memref<2x16x128xf32, #tpu.memory_space<vmem>>, vector<2x16x128xf32>,
    %c1_i32 = arith.constant 1 : i32
    %168 = arith.cmpi eq, %arg0, %c1_i32 : i32
    %169 = arith.extui %168 : i1 to i32
    %c0_i32_68 = arith.constant 0 : i32
    %170 = arith.cmpi ne, %169, %c0_i32_68 : i32
    scf.if %170 {
      %171 = vector.extract_strided_slice %166 {offsets = [0, 0, 0], sizes = [2, 1, 128], strides = [1, 1, 1]} : vector<2x16x128xf32> to vector<2x1x128xf32>
      %c0_69 = arith.constant 0 : index
      %c0_70 = arith.constant 0 : index
      %c0_71 = arith.constant 0 : index
      %172 = vector.load %arg14[%c0_69, %c0_70, %c0_71] : memref<2x1x128xf32, #tpu.memory_space<vmem>>, vector<2x1x128xf32>
      tpu.vector_store %arg14[%c0_69, %c0_70, %c0_71], %171 {strides = array<i32>} : memref<2x1x128xf32, #tpu.memory_space<vmem>>, vector<2x1x128xf32>,
    } else {
    }
    return
  }
  func.func @transform_0(%arg0: i32) -> (i32, i32, i32) {
    %c0_i32 = arith.constant 0 : i32
    %c0_i32_0 = arith.constant 0 : i32
    %c0_i32_1 = arith.constant 0 : i32
    %c0_i32_2 = arith.constant 0 : i32
    return %c0_i32, %c0_i32_0, %c0_i32_1 : i32, i32, i32
  }
  func.func @transform_1(%arg0: i32) -> (i32, i32, i32) {
    %c0_i32 = arith.constant 0 : i32
    %c0_i32_0 = arith.constant 0 : i32
    %c0_i32_1 = arith.constant 0 : i32
    %c0_i32_2 = arith.constant 0 : i32
    return %c0_i32, %c0_i32_0, %c0_i32_1 : i32, i32, i32
  }
  func.func @transform_2(%arg0: i32) -> (i32, i32, i32) {
    %c0_i32 = arith.constant 0 : i32
    %c0_i32_0 = arith.constant 0 : i32
    %c0_i32_1 = arith.constant 0 : i32
    return %arg0, %c0_i32, %c0_i32_0 : i32, i32, i32
  }
  func.func @transform_3(%arg0: i32) -> (i32, i32, i32) {
    %c0_i32 = arith.constant 0 : i32
    %c0_i32_0 = arith.constant 0 : i32
    %c0_i32_1 = arith.constant 0 : i32
    return %arg0, %c0_i32, %c0_i32_0 : i32, i32, i32
  }
  func.func @transform_4(%arg0: i32) -> (i32, i32, i32) {
    %c0_i32 = arith.constant 0 : i32
    %c0_i32_0 = arith.constant 0 : i32
    %c0_i32_1 = arith.constant 0 : i32
    return %arg0, %c0_i32, %c0_i32_0 : i32, i32, i32
  }
  func.func @transform_5(%arg0: i32) -> (i32, i32, i32) {
    %c0_i32 = arith.constant 0 : i32
    %c0_i32_0 = arith.constant 0 : i32
    %c0_i32_1 = arith.constant 0 : i32
    return %arg0, %c0_i32, %c0_i32_0 : i32, i32, i32
  }
  func.func @transform_6(%arg0: i32) -> (i32, i32, i32) {
    %c0_i32 = arith.constant 0 : i32
    %c0_i32_0 = arith.constant 0 : i32
    %c0_i32_1 = arith.constant 0 : i32
    return %arg0, %c0_i32, %c0_i32_0 : i32, i32, i32
  }
  func.func @transform_7(%arg0: i32) -> (i32, i32, i32) {
    %c0_i32 = arith.constant 0 : i32
    %c0_i32_0 = arith.constant 0 : i32
    %c0_i32_1 = arith.constant 0 : i32
    return %arg0, %c0_i32, %c0_i32_0 : i32, i32, i32
  }
  func.func @transform_8(%arg0: i32) -> (i32, i32, i32) {
    %c0_i32 = arith.constant 0 : i32
    %c0_i32_0 = arith.constant 0 : i32
    %c0_i32_1 = arith.constant 0 : i32
    return %arg0, %c0_i32, %c0_i32_0 : i32, i32, i32
  }
  func.func @transform_9(%arg0: i32) -> (i32, i32, i32) {
    %c0_i32 = arith.constant 0 : i32
    %c0_i32_0 = arith.constant 0 : i32
    %c0_i32_1 = arith.constant 0 : i32
    return %arg0, %c0_i32, %c0_i32_0 : i32, i32, i32
  }
  func.func @transform_10(%arg0: i32) -> (i32, i32, i32) {
    %c0_i32 = arith.constant 0 : i32
    %c0_i32_0 = arith.constant 0 : i32
    %c0_i32_1 = arith.constant 0 : i32
    return %arg0, %c0_i32, %c0_i32_0 : i32, i32, i32
  }
  func.func @transform_11(%arg0: i32) -> (i32, i32, i32) {
    %c0_i32 = arith.constant 0 : i32
    %c0_i32_0 = arith.constant 0 : i32
    %c0_i32_1 = arith.constant 0 : i32
    return %arg0, %c0_i32, %c0_i32_0 : i32, i32, i32
  }
  func.func @transform_12(%arg0: i32) -> (i32, i32, i32) {
    %c0_i32 = arith.constant 0 : i32
    %c0_i32_0 = arith.constant 0 : i32
    %c0_i32_1 = arith.constant 0 : i32
    %c0_i32_2 = arith.constant 0 : i32
    return %c0_i32, %c0_i32_0, %c0_i32_1 : i32, i32, i32
  }
  func.func @transform_13(%arg0: i32) -> (i32, i32, i32) {
    %c0_i32 = arith.constant 0 : i32
    %c0_i32_0 = arith.constant 0 : i32
    %c0_i32_1 = arith.constant 0 : i32
    %c0_i32_2 = arith.constant 0 : i32
    return %c0_i32, %c0_i32_0, %c0_i32_1 : i32, i32, i32
  }
}

</mosaic_0001>

<llo_original>
// kernel: loss_path.5
$region0: #{loss_path.5}
  #allocation0 [shape = 'u32[]', space=smem, size = 0x4, offset = 0x4, fixed_abs, tag = 'smem constant byte address 0x4 - core index']
  #allocation1 [shape = 'u32[72,128]{1,0:T(1,128)}', space=vmem, size = 0x9000, scoped, tag = 'internal scratch']
  %s0 = inlined_call_operand.vmem [shape: f32[2,16,128], index: 0, kind: input, shape index: {}]
  %s1 = inlined_call_operand.vmem [shape: f32[2,1,16], index: 1, kind: input, shape index: {}]
  %s2 = inlined_call_operand.vmem [shape: bf16[2,128,384], index: 2, kind: input, shape index: {}]
  %s3 = inlined_call_operand.vmem [shape: f32[2,1,384], index: 3, kind: input, shape index: {}]
  %s4 = inlined_call_operand.vmem [shape: bf16[2,128,128], index: 4, kind: input, shape index: {}]
  %s5 = inlined_call_operand.vmem [shape: f32[2,1,128], index: 5, kind: input, shape index: {}]
  %s6 = inlined_call_operand.vmem [shape: f32[2,2,128], index: 6, kind: input, shape index: {}]
  %s7 = inlined_call_operand.vmem [shape: bf16[2,128,256], index: 7, kind: input, shape index: {}]
  %s8 = inlined_call_operand.vmem [shape: f32[2,1,256], index: 8, kind: input, shape index: {}]
  %s9 = inlined_call_operand.vmem [shape: bf16[2,256,128], index: 9, kind: input, shape index: {}]
  %s10 = inlined_call_operand.vmem [shape: f32[2,1,128], index: 10, kind: input, shape index: {}]
  %s11 = inlined_call_operand.vmem [shape: f32[2,2,128], index: 11, kind: input, shape index: {}]
  %s12 = inlined_call_operand.hbm [shape: f32[2,16,128], index: 12, kind: output, shape index: {0}]
  %s13 = inlined_call_operand.vmem [shape: f32[2,1,128], index: 13, kind: output, shape index: {1}]
  %14 = xla_tuple %s12, %s13
  %s15 = sld [smem:[#allocation0]]
  $region97: #{loss_path.5} parent=0
    _
  %s17 = ssub.s32 1, %s15
  %s18 = scalar_select 0, %s17, %s15
  $region1: #{loss_path.5} parent=0
    #allocation2 [shape = 'u8[16384]{0}', space=vmem, size = 0x4000, scoped, tag = 'output window, operand 0, single buffered']
    #allocation3 [shape = 's32[2]{0}', space=sflag, size = 0x8, scoped, tag = 'scoped memory for loss_path.5']
    %19 = vsyncpa [#allocation3], 0
    loop: start=0, step=1, limit=4
    $region2: #{loss_path.5} parent=1 // loop_pre_header
      _
    $region3: #{loss_path.5} parent=1 // loop_header
      %s21 = sphi 0, %s25
      %p22 = scmp.ge.s32.totalorder %s21, 4
      %s29 = sphi 0, %s29
      %s31 = sphi 0, %s29
      %s32 = sphi 0, %s31
      %s46 = sphi 0, %s32
      %s50 = sphi 0, %s50
      %s52 = sphi 0, %s50
      %s53 = sphi 0, %s52
      %s67 = sphi 0, %s53
      %s73 = sphi 0, %s75
      %s76 = sphi 0, %s73
      %s77 = sphi 0, %s76
      %s93 = sphi 0, %s77
      %s99 = sphi 0, %s101
      %s102 = sphi 0, %s99
      %s103 = sphi 0, %s102
      %s119 = sphi 0, %s103
      %s125 = sphi 0, %s127
      %s128 = sphi 0, %s125
      %s129 = sphi 0, %s128
      %s145 = sphi 0, %s129
      %s151 = sphi 0, %s153
      %s154 = sphi 0, %s151
      %s155 = sphi 0, %s154
      %s171 = sphi 0, %s155
      %s177 = sphi 0, %s179
      %s180 = sphi 0, %s177
      %s181 = sphi 0, %s180
      %s197 = sphi 0, %s181
      %s203 = sphi 0, %s205
      %s206 = sphi 0, %s203
      %s207 = sphi 0, %s206
      %s223 = sphi 0, %s207
      %s229 = sphi 0, %s231
      %s232 = sphi 0, %s229
      %s233 = sphi 0, %s232
      %s249 = sphi 0, %s233
      %s255 = sphi 0, %s257
      %s258 = sphi 0, %s255
      %s259 = sphi 0, %s258
      %s275 = sphi 0, %s259
      %s281 = sphi 0, %s283
      %s284 = sphi 0, %s281
      %s285 = sphi 0, %s284
      %s301 = sphi 0, %s285
      %s307 = sphi 0, %s309
      %s310 = sphi 0, %s307
      %s311 = sphi 0, %s310
      %s327 = sphi 0, %s311
      %s331 = sphi 0, %s331
      %s333 = sphi 0, %s331
      %s334 = sphi 0, %s333
      %s348 = sphi 0, %s334
      %s352 = sphi 0, %s352
      %s354 = sphi 0, %s352
      %s355 = sphi 0, %s354
      %s369 = sphi 0, %s355
    $region4: #{loss_path.5} parent=1 // loop_header_branch
      %24 = sbr.rel (%p22) target = $region8
    $region5: #{loss_path.5} parent=1 // loop_body
      %s26 = ssub.s32 %s21, 1
      %s27 = ssub.s32 %s21, 2
      %s28 = sadd.s32 %s21, 1
      %s30 = sadd.s32 %s29, 1
      %p33 = scmp.eq.s32.totalorder %s21, 1
      %p34 = scmp.ne.s32.totalorder %s29, %s31
      %p35 = scmp.eq.s32.totalorder %s21, 0
      %p36 = por %p34, %p35
      %p37 = scmp.ne.s32.totalorder %s29, %s31
      %p38 = scmp.eq.s32.totalorder %s26, 1
      %p39 = por %p37, %p38
      %p40 = scmp.ne.s32.totalorder %s31, %s32
      %p41 = scmp.eq.s32.totalorder %s26, 0
      %p42 = por %p40, %p41
      %p43 = scmp.ne.s32.totalorder %s31, %s32
      %p44 = scmp.eq.s32.totalorder %s27, 1
      %p45 = por %p43, %p44
      %p47 = scmp.ne.s32.totalorder %s32, %s46
      %p48 = scmp.eq.s32.totalorder %s27, 0
      %p49 = por %p47, %p48
      %s51 = sadd.s32 %s50, 1
      %p54 = scmp.eq.s32.totalorder %s21, 1
      %p55 = scmp.ne.s32.totalorder %s50, %s52
      %p56 = scmp.eq.s32.totalorder %s21, 0
      %p57 = por %p55, %p56
      %p58 = scmp.ne.s32.totalorder %s50, %s52
      %p59 = scmp.eq.s32.totalorder %s26, 1
      %p60 = por %p58, %p59
      %p61 = scmp.ne.s32.totalorder %s52, %s53
      %p62 = scmp.eq.s32.totalorder %s26, 0
      %p63 = por %p61, %p62
      %p64 = scmp.ne.s32.totalorder %s52, %s53
      %p65 = scmp.eq.s32.totalorder %s27, 1
      %p66 = por %p64, %p65
      %p68 = scmp.ne.s32.totalorder %s53, %s67
      %p69 = scmp.eq.s32.totalorder %s27, 0
      %p70 = por %p68, %p69
      %s71 = ssub.s32 %s21, %s28
      %p72 = scmp.eq.s32.totalorder %s71, 0
      %s74 = sadd.s32 %s73, 1
      %s75 = scalar_select %p72, %s73, %s74
      %p78 = pneg %p72
      %p79 = scmp.eq.s32.totalorder %s21, 1
      %p80 = por %p78, %p79
      %p81 = scmp.ne.s32.totalorder %s73, %s76
      %p82 = scmp.eq.s32.totalorder %s21, 0
      %p83 = por %p81, %p82
      %p84 = scmp.ne.s32.totalorder %s73, %s76
      %p85 = scmp.eq.s32.totalorder %s26, 1
      %p86 = por %p84, %p85
      %p87 = scmp.ne.s32.totalorder %s76, %s77
      %p88 = scmp.eq.s32.totalorder %s26, 0
      %p89 = por %p87, %p88
      %p90 = scmp.ne.s32.totalorder %s76, %s77
      %p91 = scmp.eq.s32.totalorder %s27, 1
      %p92 = por %p90, %p91
      %p94 = scmp.ne.s32.totalorder %s77, %s93
      %p95 = scmp.eq.s32.totalorder %s27, 0
      %p96 = por %p94, %p95
      %s97 = ssub.s32 %s21, %s28
      %p98 = scmp.eq.s32.totalorder %s97, 0
      %s100 = sadd.s32 %s99, 1
      %s101 = scalar_select %p98, %s99, %s100
      %p104 = pneg %p98
      %p105 = scmp.eq.s32.totalorder %s21, 1
      %p106 = por %p104, %p105
      %p107 = scmp.ne.s32.totalorder %s99, %s102
      %p108 = scmp.eq.s32.totalorder %s21, 0
      %p109 = por %p107, %p108
      %p110 = scmp.ne.s32.totalorder %s99, %s102
      %p111 = scmp.eq.s32.totalorder %s26, 1
      %p112 = por %p110, %p111
      %p113 = scmp.ne.s32.totalorder %s102, %s103
      %p114 = scmp.eq.s32.totalorder %s26, 0
      %p115 = por %p113, %p114
      %p116 = scmp.ne.s32.totalorder %s102, %s103
      %p117 = scmp.eq.s32.totalorder %s27, 1
      %p118 = por %p116, %p117
      %p120 = scmp.ne.s32.totalorder %s103, %s119
      %p121 = scmp.eq.s32.totalorder %s27, 0
      %p122 = por %p120, %p121
      %s123 = ssub.s32 %s21, %s28
      %p124 = scmp.eq.s32.totalorder %s123, 0
      %s126 = sadd.s32 %s125, 1
      %s127 = scalar_select %p124, %s125, %s126
      %p130 = pneg %p124
      %p131 = scmp.eq.s32.totalorder %s21, 1
      %p132 = por %p130, %p131
      %p133 = scmp.ne.s32.totalorder %s125, %s128
      %p134 = scmp.eq.s32.totalorder %s21, 0
      %p135 = por %p133, %p134
      %p136 = scmp.ne.s32.totalorder %s125, %s128
      %p137 = scmp.eq.s32.totalorder %s26, 1
      %p138 = por %p136, %p137
      %p139 = scmp.ne.s32.totalorder %s128, %s129
      %p140 = scmp.eq.s32.totalorder %s26, 0
      %p141 = por %p139, %p140
      %p142 = scmp.ne.s32.totalorder %s128, %s129
      %p143 = scmp.eq.s32.totalorder %s27, 1
      %p144 = por %p142, %p143
      %p146 = scmp.ne.s32.totalorder %s129, %s145
      %p147 = scmp.eq.s32.totalorder %s27, 0
      %p148 = por %p146, %p147
      %s149 = ssub.s32 %s21, %s28
      %p150 = scmp.eq.s32.totalorder %s149, 0
      %s152 = sadd.s32 %s151, 1
      %s153 = scalar_select %p150, %s151, %s152
      %p156 = pneg %p150
      %p157 = scmp.eq.s32.totalorder %s21, 1
      %p158 = por %p156, %p157
      %p159 = scmp.ne.s32.totalorder %s151, %s154
      %p160 = scmp.eq.s32.totalorder %s21, 0
      %p161 = por %p159, %p160
      %p162 = scmp.ne.s32.totalorder %s151, %s154
      %p163 = scmp.eq.s32.totalorder %s26, 1
      %p164 = por %p162, %p163
      %p165 = scmp.ne.s32.totalorder %s154, %s155
      %p166 = scmp.eq.s32.totalorder %s26, 0
      %p167 = por %p165, %p166
      %p168 = scmp.ne.s32.totalorder %s154, %s155
      %p169 = scmp.eq.s32.totalorder %s27, 1
      %p170 = por %p168, %p169
      %p172 = scmp.ne.s32.totalorder %s155, %s171
      %p173 = scmp.eq.s32.totalorder %s27, 0
      %p174 = por %p172, %p173
      %s175 = ssub.s32 %s21, %s28
      %p176 = scmp.eq.s32.totalorder %s175, 0
      %s178 = sadd.s32 %s177, 1
      %s179 = scalar_select %p176, %s177, %s178
      %p182 = pneg %p176
      %p183 = scmp.eq.s32.totalorder %s21, 1
      %p184 = por %p182, %p183
      %p185 = scmp.ne.s32.totalorder %s177, %s180
      %p186 = scmp.eq.s32.totalorder %s21, 0
      %p187 = por %p185, %p186
      %p188 = scmp.ne.s32.totalorder %s177, %s180
      %p189 = scmp.eq.s32.totalorder %s26, 1
      %p190 = por %p188, %p189
      %p191 = scmp.ne.s32.totalorder %s180, %s181
      %p192 = scmp.eq.s32.totalorder %s26, 0
      %p193 = por %p191, %p192
      %p194 = scmp.ne.s32.totalorder %s180, %s181
      %p195 = scmp.eq.s32.totalorder %s27, 1
      %p196 = por %p194, %p195
      %p198 = scmp.ne.s32.totalorder %s181, %s197
      %p199 = scmp.eq.s32.totalorder %s27, 0
      %p200 = por %p198, %p199
      %s201 = ssub.s32 %s21, %s28
      %p202 = scmp.eq.s32.totalorder %s201, 0
      %s204 = sadd.s32 %s203, 1
      %s205 = scalar_select %p202, %s203, %s204
      %p208 = pneg %p202
      %p209 = scmp.eq.s32.totalorder %s21, 1
      %p210 = por %p208, %p209
      %p211 = scmp.ne.s32.totalorder %s203, %s206
      %p212 = scmp.eq.s32.totalorder %s21, 0
      %p213 = por %p211, %p212
      %p214 = scmp.ne.s32.totalorder %s203, %s206
      %p215 = scmp.eq.s32.totalorder %s26, 1
      %p216 = por %p214, %p215
      %p217 = scmp.ne.s32.totalorder %s206, %s207
      %p218 = scmp.eq.s32.totalorder %s26, 0
      %p219 = por %p217, %p218
      %p220 = scmp.ne.s32.totalorder %s206, %s207
      %p221 = scmp.eq.s32.totalorder %s27, 1
      %p222 = por %p220, %p221
      %p224 = scmp.ne.s32.totalorder %s207, %s223
      %p225 = scmp.eq.s32.totalorder %s27, 0
      %p226 = por %p224, %p225
      %s227 = ssub.s32 %s21, %s28
      %p228 = scmp.eq.s32.totalorder %s227, 0
      %s230 = sadd.s32 %s229, 1
      %s231 = scalar_select %p228, %s229, %s230
      %p234 = pneg %p228
      %p235 = scmp.eq.s32.totalorder %s21, 1
      %p236 = por %p234, %p235
      %p237 = scmp.ne.s32.totalorder %s229, %s232
      %p238 = scmp.eq.s32.totalorder %s21, 0
      %p239 = por %p237, %p238
      %p240 = scmp.ne.s32.totalorder %s229, %s232
      %p241 = scmp.eq.s32.totalorder %s26, 1
      %p242 = por %p240, %p241
      %p243 = scmp.ne.s32.totalorder %s232, %s233
      %p244 = scmp.eq.s32.totalorder %s26, 0
      %p245 = por %p243, %p244
      %p246 = scmp.ne.s32.totalorder %s232, %s233
      %p247 = scmp.eq.s32.totalorder %s27, 1
      %p248 = por %p246, %p247
      %p250 = scmp.ne.s32.totalorder %s233, %s249
      %p251 = scmp.eq.s32.totalorder %s27, 0
      %p252 = por %p250, %p251
      %s253 = ssub.s32 %s21, %s28
      %p254 = scmp.eq.s32.totalorder %s253, 0
      %s256 = sadd.s32 %s255, 1
      %s257 = scalar_select %p254, %s255, %s256
      %p260 = pneg %p254
      %p261 = scmp.eq.s32.totalorder %s21, 1
      %p262 = por %p260, %p261
      %p263 = scmp.ne.s32.totalorder %s255, %s258
      %p264 = scmp.eq.s32.totalorder %s21, 0
      %p265 = por %p263, %p264
      %p266 = scmp.ne.s32.totalorder %s255, %s258
      %p267 = scmp.eq.s32.totalorder %s26, 1
      %p268 = por %p266, %p267
      %p269 = scmp.ne.s32.totalorder %s258, %s259
      %p270 = scmp.eq.s32.totalorder %s26, 0
      %p271 = por %p269, %p270
      %p272 = scmp.ne.s32.totalorder %s258, %s259
      %p273 = scmp.eq.s32.totalorder %s27, 1
      %p274 = por %p272, %p273
      %p276 = scmp.ne.s32.totalorder %s259, %s275
      %p277 = scmp.eq.s32.totalorder %s27, 0
      %p278 = por %p276, %p277
      %s279 = ssub.s32 %s21, %s28
      %p280 = scmp.eq.s32.totalorder %s279, 0
      %s282 = sadd.s32 %s281, 1
      %s283 = scalar_select %p280, %s281, %s282
      %p286 = pneg %p280
      %p287 = scmp.eq.s32.totalorder %s21, 1
      %p288 = por %p286, %p287
      %p289 = scmp.ne.s32.totalorder %s281, %s284
      %p290 = scmp.eq.s32.totalorder %s21, 0
      %p291 = por %p289, %p290
      %p292 = scmp.ne.s32.totalorder %s281, %s284
      %p293 = scmp.eq.s32.totalorder %s26, 1
      %p294 = por %p292, %p293
      %p295 = scmp.ne.s32.totalorder %s284, %s285
      %p296 = scmp.eq.s32.totalorder %s26, 0
      %p297 = por %p295, %p296
      %p298 = scmp.ne.s32.totalorder %s284, %s285
      %p299 = scmp.eq.s32.totalorder %s27, 1
      %p300 = por %p298, %p299
      %p302 = scmp.ne.s32.totalorder %s285, %s301
      %p303 = scmp.eq.s32.totalorder %s27, 0
      %p304 = por %p302, %p303
      %s305 = ssub.s32 %s21, %s28
      %p306 = scmp.eq.s32.totalorder %s305, 0
      %s308 = sadd.s32 %s307, 1
      %s309 = scalar_select %p306, %s307, %s308
      %p312 = pneg %p306
      %p313 = scmp.eq.s32.totalorder %s21, 1
      %p314 = por %p312, %p313
      %p315 = scmp.ne.s32.totalorder %s307, %s310
      %p316 = scmp.eq.s32.totalorder %s21, 0
      %p317 = por %p315, %p316
      %p318 = scmp.ne.s32.totalorder %s307, %s310
      %p319 = scmp.eq.s32.totalorder %s26, 1
      %p320 = por %p318, %p319
      %p321 = scmp.ne.s32.totalorder %s310, %s311
      %p322 = scmp.eq.s32.totalorder %s26, 0
      %p323 = por %p321, %p322
      %p324 = scmp.ne.s32.totalorder %s310, %s311
      %p325 = scmp.eq.s32.totalorder %s27, 1
      %p326 = por %p324, %p325
      %p328 = scmp.ne.s32.totalorder %s311, %s327
      %p329 = scmp.eq.s32.totalorder %s27, 0
      %p330 = por %p328, %p329
      %s332 = sadd.s32 %s331, 1
      %p335 = scmp.eq.s32.totalorder %s21, 1
      %p336 = scmp.ne.s32.totalorder %s331, %s333
      %p337 = scmp.eq.s32.totalorder %s21, 0
      %p338 = por %p336, %p337
      %p339 = scmp.ne.s32.totalorder %s331, %s333
      %p340 = scmp.eq.s32.totalorder %s26, 1
      %p341 = por %p339, %p340
      %p342 = scmp.ne.s32.totalorder %s333, %s334
      %p343 = scmp.eq.s32.totalorder %s26, 0
      %p344 = por %p342, %p343
      %p345 = scmp.ne.s32.totalorder %s333, %s334
      %p346 = scmp.eq.s32.totalorder %s27, 1
      %p347 = por %p345, %p346
      %p349 = scmp.ne.s32.totalorder %s334, %s348
      %p350 = scmp.eq.s32.totalorder %s27, 0
      %p351 = por %p349, %p350
      %s353 = sadd.s32 %s352, 1
      %p356 = scmp.eq.s32.totalorder %s21, 1
      %p357 = scmp.ne.s32.totalorder %s352, %s354
      %p358 = scmp.eq.s32.totalorder %s21, 0
      %p359 = por %p357, %p358
      %p360 = scmp.ne.s32.totalorder %s352, %s354
      %p361 = scmp.eq.s32.totalorder %s26, 1
      %p362 = por %p360, %p361
      %p363 = scmp.ne.s32.totalorder %s354, %s355
      %p364 = scmp.eq.s32.totalorder %s26, 0
      %p365 = por %p363, %p364
      %p366 = scmp.ne.s32.totalorder %s354, %s355
      %p367 = scmp.eq.s32.totalorder %s27, 1
      %p368 = por %p366, %p367
      %p370 = scmp.ne.s32.totalorder %s355, %s369
      %p371 = scmp.eq.s32.totalorder %s27, 0
      %p372 = por %p370, %p371
      %p373 = scmp.le.s32.totalorder 1, %s21
      %p374 = scmp.lt.s32.totalorder %s21, 3
      %p375 = pnand %p373, %p374
      %p376 = pneg %p375
      // Predicated region
      $region9: #{loss_path.5} parent=5 // pred_check
        _
      $region10: #{loss_path.5} parent=5 // pred_check_branch
        %378 = sbr.rel (%p375) target = $region12
      $region11: #{loss_path.5} parent=5 // pred_region
        %s379 = ssub.s32 %s21, 1
        // Predicated region
        $region13: #{loss_path.5} parent=11 // pred_check
          %p380 = pneg %p42
        $region14: #{loss_path.5} parent=11 // pred_check_branch
          %382 = sbr.rel (%p380) target = $region16
        $region15: #{loss_path.5} parent=11 // pred_region
          _
        $region16: #{loss_path.5} parent=11 // pred_fallthru
          _
        // Predicated region
        $region17: #{loss_path.5} parent=11 // pred_check
          %p383 = pneg %p63
        $region18: #{loss_path.5} parent=11 // pred_check_branch
          %385 = sbr.rel (%p383) target = $region20
        $region19: #{loss_path.5} parent=11 // pred_region
          _
        $region20: #{loss_path.5} parent=11 // pred_fallthru
          _
      $region12: #{loss_path.5} parent=5 // pred_fallthru
        _
      %p386 = scmp.lt.s32.totalorder %s21, 2
      // Predicated region
      $region21: #{loss_path.5} parent=5 // pred_check
        %p387 = pneg %p386
      $region22: #{loss_path.5} parent=5 // pred_check_branch
        %389 = sbr.rel (%p387) target = $region24
      $region23: #{loss_path.5} parent=5 // pred_region
        // Predicated region
        $region25: #{loss_path.5} parent=23 // pred_check
          %p390 = pneg %p83
        $region26: #{loss_path.5} parent=23 // pred_check_branch
          %392 = sbr.rel (%p390) target = $region28
        $region27: #{loss_path.5} parent=23 // pred_region
          %p393 = scmp.lt.s32.totalorder %s21, 1
          %s394 = scalar_select %p393, %s21, 1
          %s395 = smul.addr %s394, 48
          %s396 = smul.addr %s395, 4
          %s397 = scalar_lea.vmem %s2, %s396
        $region28: #{loss_path.5} parent=23 // pred_fallthru
          _
        // Predicated region
        $region29: #{loss_path.5} parent=23 // pred_check
          %p398 = pneg %p109
        $region30: #{loss_path.5} parent=23 // pred_check_branch
          %400 = sbr.rel (%p398) target = $region32
        $region31: #{loss_path.5} parent=23 // pred_region
          %p401 = scmp.lt.s32.totalorder %s21, 1
          %s402 = scalar_select %p401, %s21, 1
          %s403 = smul.addr %s402, 3
          %s404 = scalar_lea.vmem %s3, %s403
        $region32: #{loss_path.5} parent=23 // pred_fallthru
          _
        // Predicated region
        $region33: #{loss_path.5} parent=23 // pred_check
          %p405 = pneg %p135
        $region34: #{loss_path.5} parent=23 // pred_check_branch
          %407 = sbr.rel (%p405) target = $region36
        $region35: #{loss_path.5} parent=23 // pred_region
          %p408 = scmp.lt.s32.totalorder %s21, 1
          %s409 = scalar_select %p408, %s21, 1
          %s410 = smul.addr %s409, 16
          %s411 = smul.addr %s410, 4
          %s412 = scalar_lea.vmem %s4, %s411
        $region36: #{loss_path.5} parent=23 // pred_fallthru
          _
        // Predicated region
        $region37: #{loss_path.5} parent=23 // pred_check
          %p413 = pneg %p161
        $region38: #{loss_path.5} parent=23 // pred_check_branch
          %415 = sbr.rel (%p413) target = $region40
        $region39: #{loss_path.5} parent=23 // pred_region
          %p416 = scmp.lt.s32.totalorder %s21, 1
          %s417 = scalar_select %p416, %s21, 1
          %s418 = scalar_lea.vmem %s5, %s417
        $region40: #{loss_path.5} parent=23 // pred_fallthru
          _
        // Predicated region
        $region41: #{loss_path.5} parent=23 // pred_check
          %p419 = pneg %p187
        $region42: #{loss_path.5} parent=23 // pred_check_branch
          %421 = sbr.rel (%p419) target = $region44
        $region43: #{loss_path.5} parent=23 // pred_region
          %p422 = scmp.lt.s32.totalorder %s21, 1
          %s423 = scalar_select %p422, %s21, 1
          %s424 = smul.addr %s423, 2
          %s425 = scalar_lea.vmem %s6, %s424
        $region44: #{loss_path.5} parent=23 // pred_fallthru
          _
        // Predicated region
        $region45: #{loss_path.5} parent=23 // pred_check
          %p426 = pneg %p213
        $region46: #{loss_path.5} parent=23 // pred_check_branch
          %428 = sbr.rel (%p426) target = $region48
        $region47: #{loss_path.5} parent=23 // pred_region
          %p429 = scmp.lt.s32.totalorder %s21, 1
          %s430 = scalar_select %p429, %s21, 1
          %s431 = smul.addr %s430, 32
          %s432 = smul.addr %s431, 4
          %s433 = scalar_lea.vmem %s7, %s432
        $region48: #{loss_path.5} parent=23 // pred_fallthru
          _
        // Predicated region
        $region49: #{loss_path.5} parent=23 // pred_check
          %p434 = pneg %p239
        $region50: #{loss_path.5} parent=23 // pred_check_branch
          %436 = sbr.rel (%p434) target = $region52
        $region51: #{loss_path.5} parent=23 // pred_region
          %p437 = scmp.lt.s32.totalorder %s21, 1
          %s438 = scalar_select %p437, %s21, 1
          %s439 = smul.addr %s438, 2
          %s440 = scalar_lea.vmem %s8, %s439
        $region52: #{loss_path.5} parent=23 // pred_fallthru
          _
        // Predicated region
        $region53: #{loss_path.5} parent=23 // pred_check
          %p441 = pneg %p265
        $region54: #{loss_path.5} parent=23 // pred_check_branch
          %443 = sbr.rel (%p441) target = $region56
        $region55: #{loss_path.5} parent=23 // pred_region
          %p444 = scmp.lt.s32.totalorder %s21, 1
          %s445 = scalar_select %p444, %s21, 1
          %s446 = smul.addr %s445, 32
          %s447 = smul.addr %s446, 4
          %s448 = scalar_lea.vmem %s9, %s447
        $region56: #{loss_path.5} parent=23 // pred_fallthru
          _
        // Predicated region
        $region57: #{loss_path.5} parent=23 // pred_check
          %p449 = pneg %p291
        $region58: #{loss_path.5} parent=23 // pred_check_branch
          %451 = sbr.rel (%p449) target = $region60
        $region59: #{loss_path.5} parent=23 // pred_region
          %p452 = scmp.lt.s32.totalorder %s21, 1
          %s453 = scalar_select %p452, %s21, 1
          %s454 = scalar_lea.vmem %s10, %s453
        $region60: #{loss_path.5} parent=23 // pred_fallthru
          _
        // Predicated region
        $region61: #{loss_path.5} parent=23 // pred_check
          %p455 = pneg %p317
        $region62: #{loss_path.5} parent=23 // pred_check_branch
          %457 = sbr.rel (%p455) target = $region64
        $region63: #{loss_path.5} parent=23 // pred_region
          %p458 = scmp.lt.s32.totalorder %s21, 1
          %s459 = scalar_select %p458, %s21, 1
          %s460 = smul.addr %s459, 2
          %s461 = scalar_lea.vmem %s11, %s460
        $region64: #{loss_path.5} parent=23 // pred_fallthru
          _
      $region24: #{loss_path.5} parent=5 // pred_fallthru
        _
      %p462 = scmp.le.s32.totalorder 1, %s21
      %p463 = scmp.lt.s32.totalorder %s21, 3
      %p464 = pnand %p462, %p463
      %p465 = pneg %p464
      // Predicated region
      $region65: #{loss_path.5} parent=5 // pred_check
        _
      $region66: #{loss_path.5} parent=5 // pred_check_branch
        %467 = sbr.rel (%p464) target = $region68
      $region67: #{loss_path.5} parent=5 // pred_region
        %s468 = ssub.s32 %s21, 1
        %p469 = pneg %p42
        %p470 = pneg %p39
        %p471 = pneg %p63
        %p472 = pneg %p60
        %p473 = scmp.lt.s32.totalorder %s26, 1
        %s474 = scalar_select %p473, %s26, 1
        %s475 = smul.addr %s474, 48
        %s476 = smul.addr %s475, 4
        %s477 = scalar_lea.vmem %s2, %s476
        %p478 = pneg %p89
        %p479 = pneg %p86
        %p480 = scmp.lt.s32.totalorder %s26, 1
        %s481 = scalar_select %p480, %s26, 1
        %s482 = smul.addr %s481, 3
        %s483 = scalar_lea.vmem %s3, %s482
        %p484 = pneg %p115
        %p485 = pneg %p112
        %p486 = scmp.lt.s32.totalorder %s26, 1
        %s487 = scalar_select %p486, %s26, 1
        %s488 = smul.addr %s487, 16
        %s489 = smul.addr %s488, 4
        %s490 = scalar_lea.vmem %s4, %s489
        %p491 = pneg %p141
        %p492 = pneg %p138
        %p493 = scmp.lt.s32.totalorder %s26, 1
        %s494 = scalar_select %p493, %s26, 1
        %s495 = scalar_lea.vmem %s5, %s494
        %p496 = pneg %p167
        %p497 = pneg %p164
        %p498 = scmp.lt.s32.totalorder %s26, 1
        %s499 = scalar_select %p498, %s26, 1
        %s500 = smul.addr %s499, 2
        %s501 = scalar_lea.vmem %s6, %s500
        %p502 = pneg %p193
        %p503 = pneg %p190
        %p504 = scmp.lt.s32.totalorder %s26, 1
        %s505 = scalar_select %p504, %s26, 1
        %s506 = smul.addr %s505, 32
        %s507 = smul.addr %s506, 4
        %s508 = scalar_lea.vmem %s7, %s507
        %p509 = pneg %p219
        %p510 = pneg %p216
        %p511 = scmp.lt.s32.totalorder %s26, 1
        %s512 = scalar_select %p511, %s26, 1
        %s513 = smul.addr %s512, 2
        %s514 = scalar_lea.vmem %s8, %s513
        %p515 = pneg %p245
        %p516 = pneg %p242
        %p517 = scmp.lt.s32.totalorder %s26, 1
        %s518 = scalar_select %p517, %s26, 1
        %s519 = smul.addr %s518, 32
        %s520 = smul.addr %s519, 4
        %s521 = scalar_lea.vmem %s9, %s520
        %p522 = pneg %p271
        %p523 = pneg %p268
        %p524 = scmp.lt.s32.totalorder %s26, 1
        %s525 = scalar_select %p524, %s26, 1
        %s526 = scalar_lea.vmem %s10, %s525
        %p527 = pneg %p297
        %p528 = pneg %p294
        %p529 = scmp.lt.s32.totalorder %s26, 1
        %s530 = scalar_select %p529, %s26, 1
        %s531 = smul.addr %s530, 2
        %s532 = scalar_lea.vmem %s11, %s531
        %p533 = pneg %p323
        %p534 = pneg %p320
        %p535 = pneg %p344
        %p536 = pneg %p341
        %p537 = pneg %p365
        %p538 = pneg %p362
        %p539 = scmp.lt.s32.totalorder %s26, 1
        %s540 = scalar_select %p539, %s26, 1
        %s541 = smul.addr %s540, 48
        %s542 = smul.addr %s541, 4
        %s543 = scalar_lea.vmem %s2, %s542
        %p544 = scmp.lt.s32.totalorder %s26, 1
        %s545 = scalar_select %p544, %s26, 1
        %s546 = smul.addr %s545, 3
        %s547 = scalar_lea.vmem %s3, %s546
        %p548 = scmp.lt.s32.totalorder %s26, 1
        %s549 = scalar_select %p548, %s26, 1
        %s550 = smul.addr %s549, 16
        %s551 = smul.addr %s550, 4
        %s552 = scalar_lea.vmem %s4, %s551
        %p553 = scmp.lt.s32.totalorder %s26, 1
        %s554 = scalar_select %p553, %s26, 1
        %s555 = scalar_lea.vmem %s5, %s554
        %p556 = scmp.lt.s32.totalorder %s26, 1
        %s557 = scalar_select %p556, %s26, 1
        %s558 = smul.addr %s557, 2
        %s559 = scalar_lea.vmem %s6, %s558
        %p560 = scmp.lt.s32.totalorder %s26, 1
        %s561 = scalar_select %p560, %s26, 1
        %s562 = smul.addr %s561, 32
        %s563 = smul.addr %s562, 4
        %s564 = scalar_lea.vmem %s7, %s563
        %p565 = scmp.lt.s32.totalorder %s26, 1
        %s566 = scalar_select %p565, %s26, 1
        %s567 = smul.addr %s566, 2
        %s568 = scalar_lea.vmem %s8, %s567
        %p569 = scmp.lt.s32.totalorder %s26, 1
        %s570 = scalar_select %p569, %s26, 1
        %s571 = smul.addr %s570, 32
        %s572 = smul.addr %s571, 4
        %s573 = scalar_lea.vmem %s9, %s572
        %p574 = scmp.lt.s32.totalorder %s26, 1
        %s575 = scalar_select %p574, %s26, 1
        %s576 = scalar_lea.vmem %s10, %s575
        %p577 = scmp.lt.s32.totalorder %s26, 1
        %s578 = scalar_select %p577, %s26, 1
        %s579 = smul.addr %s578, 2
        %s580 = scalar_lea.vmem %s11, %s579
        %p582 = scmp.eq.s32.totalorder %s26, 0
        // Predicated region
        $region69: #{loss_path.5} parent=67 // pred_check
          %p583 = pneg %p582
        $region70: #{loss_path.5} parent=67 // pred_check_branch
          %585 = sbr.rel (%p583) target = $region72
        $region71: #{loss_path.5} parent=67 // pred_region
          %v586 = vld [vmem:[%s0] sm:$0xff]
          %v587 = vld [vmem:[%s0 + $0x8] sm:$0xff]
          %v588 = vld [vmem:[%s0 + $0x10] sm:$0xff]
          %v589 = vld [vmem:[%s0 + $0x18] sm:$0xff]
          %590 = vst [vmem:[#allocation2] sm:$0xff] %v586
          %591 = vst [vmem:[#allocation2 + $0x8] sm:$0xff] %v587
          %592 = vst [vmem:[#allocation2 + $0x10] sm:$0xff] %v588
          %593 = vst [vmem:[#allocation2 + $0x18] sm:$0xff] %v589
        $region72: #{loss_path.5} parent=67 // pred_fallthru
          _
        %v594 = vld [vmem:[#allocation2] sm:$0xff]
        %v595 = vld [vmem:[#allocation2 + $0x8] sm:$0xff]
        %v596 = vld [vmem:[#allocation2 + $0x10] sm:$0xff]
        %v597 = vld [vmem:[#allocation2 + $0x18] sm:$0xff]
        %v598 = vpack.c.bf16 %v595, %v594
        %v599 = vpack.c.bf16 %v597, %v596
        %v600 = vld [vmem:[%s543] sm:$0xff]
        %v601 = vld [vmem:[%s543 + $0x8] sm:$0xf]
        %v602 = vld [vmem:[%s543 + $0xc] sm:$0xff]
        %v603 = vld [vmem:[%s543 + $0x14] sm:$0xf]
        %v604 = vld [vmem:[%s543 + $0x18] sm:$0xff]
        %v605 = vld [vmem:[%s543 + $0x20] sm:$0xf]
        %v606 = vld [vmem:[%s543 + $0x24] sm:$0xff]
        %v607 = vld [vmem:[%s543 + $0x2c] sm:$0xf]
        %v608 = vld [vmem:[%s543 + $0x30] sm:$0xff]
        %v609 = vld [vmem:[%s543 + $0x38] sm:$0xf]
        %v610 = vld [vmem:[%s543 + $0x3c] sm:$0xff]
        %v611 = vld [vmem:[%s543 + $0x44] sm:$0xf]
        %v612 = vld [vmem:[%s543 + $0x48] sm:$0xff]
        %v613 = vld [vmem:[%s543 + $0x50] sm:$0xf]
        %v614 = vld [vmem:[%s543 + $0x54] sm:$0xff]
        %v615 = vld [vmem:[%s543 + $0x5c] sm:$0xf]
        %v616 = vld [vmem:[%s543 + $0x60] sm:$0xff]
        %v617 = vld [vmem:[%s543 + $0x68] sm:$0xf]
        %v618 = vld [vmem:[%s543 + $0x6c] sm:$0xff]
        %v619 = vld [vmem:[%s543 + $0x74] sm:$0xf]
        %v620 = vld [vmem:[%s543 + $0x78] sm:$0xff]
        %v621 = vld [vmem:[%s543 + $0x80] sm:$0xf]
        %v622 = vld [vmem:[%s543 + $0x84] sm:$0xff]
        %v623 = vld [vmem:[%s543 + $0x8c] sm:$0xf]
        %v624 = vld [vmem:[%s543 + $0x90] sm:$0xff]
        %v625 = vld [vmem:[%s543 + $0x98] sm:$0xf]
        %v626 = vld [vmem:[%s543 + $0x9c] sm:$0xff]
        %v627 = vld [vmem:[%s543 + $0xa4] sm:$0xf]
        %v628 = vld [vmem:[%s543 + $0xa8] sm:$0xff]
        %v629 = vld [vmem:[%s543 + $0xb0] sm:$0xf]
        %v630 = vld [vmem:[%s543 + $0xb4] sm:$0xff]
        %v631 = vld [vmem:[%s543 + $0xbc] sm:$0xf]
        %v632 = vld [vmem:[%s547] sm:$0x7]
        %v634 = vperm.slane %v632, 0
        %v635 = vperm.slane %v632, 1
        %v636 = vperm.slane %v632, 2
        %v672 = vunpack.c.l.b16 %v600
        %v673 = vunpack.c.h.b16 %v600
        %v674 = vunpack.c.l.b16 %v601
        %v675 = vunpack.c.l.b16 %v602
        %v676 = vunpack.c.h.b16 %v602
        %v677 = vunpack.c.l.b16 %v603
        %v678 = vunpack.c.l.b16 %v604
        %v679 = vunpack.c.h.b16 %v604
        %v680 = vunpack.c.l.b16 %v605
        %v681 = vunpack.c.l.b16 %v606
        %v682 = vunpack.c.h.b16 %v606
        %v683 = vunpack.c.l.b16 %v607
        %v684 = vunpack.c.l.b16 %v608
        %v685 = vunpack.c.h.b16 %v608
        %v686 = vunpack.c.l.b16 %v609
        %v687 = vunpack.c.l.b16 %v610
        %v688 = vunpack.c.h.b16 %v610
        %v689 = vunpack.c.l.b16 %v611
        %v690 = vunpack.c.l.b16 %v612
        %v691 = vunpack.c.h.b16 %v612
        %v692 = vunpack.c.l.b16 %v613
        %v693 = vunpack.c.l.b16 %v614
        %v694 = vunpack.c.h.b16 %v614
        %v695 = vunpack.c.l.b16 %v615
        %v696 = vunpack.c.l.b16 %v616
        %v697 = vunpack.c.h.b16 %v616
        %v698 = vunpack.c.l.b16 %v617
        %v699 = vunpack.c.l.b16 %v618
        %v700 = vunpack.c.h.b16 %v618
        %v701 = vunpack.c.l.b16 %v619
        %v702 = vunpack.c.l.b16 %v620
        %v703 = vunpack.c.h.b16 %v620
        %v704 = vunpack.c.l.b16 %v621
        %v705 = vunpack.c.l.b16 %v622
        %v706 = vunpack.c.h.b16 %v622
        %v707 = vunpack.c.l.b16 %v623
        %v708 = vunpack.c.l.b16 %v624
        %v709 = vunpack.c.h.b16 %v624
        %v710 = vunpack.c.l.b16 %v625
        %v711 = vunpack.c.l.b16 %v626
        %v712 = vunpack.c.h.b16 %v626
        %v713 = vunpack.c.l.b16 %v627
        %v714 = vunpack.c.l.b16 %v628
        %v715 = vunpack.c.h.b16 %v628
        %v716 = vunpack.c.l.b16 %v629
        %v717 = vunpack.c.l.b16 %v630
        %v718 = vunpack.c.h.b16 %v630
        %v719 = vunpack.c.l.b16 %v631
        %v720 = vpack.c.b16 %v675, %v672
        %v721 = vpack.c.b16 %v676, %v673
        %v722 = vpack.c.b16 %v677, %v674
        %v723 = vpack.c.b16 %v681, %v678
        %v724 = vpack.c.b16 %v682, %v679
        %v725 = vpack.c.b16 %v683, %v680
        %v726 = vpack.c.b16 %v687, %v684
        %v727 = vpack.c.b16 %v688, %v685
        %v728 = vpack.c.b16 %v689, %v686
        %v729 = vpack.c.b16 %v693, %v690
        %v730 = vpack.c.b16 %v694, %v691
        %v731 = vpack.c.b16 %v695, %v692
        %v732 = vpack.c.b16 %v699, %v696
        %v733 = vpack.c.b16 %v700, %v697
        %v734 = vpack.c.b16 %v701, %v698
        %v735 = vpack.c.b16 %v705, %v702
        %v736 = vpack.c.b16 %v706, %v703
        %v737 = vpack.c.b16 %v707, %v704
        %v738 = vpack.c.b16 %v711, %v708
        %v739 = vpack.c.b16 %v712, %v709
        %v740 = vpack.c.b16 %v713, %v710
        %v741 = vpack.c.b16 %v717, %v714
        %v742 = vpack.c.b16 %v718, %v715
        %v743 = vpack.c.b16 %v719, %v716
        %768 = vmatpush.bf16.msra.mxu0 %v741
        %769 = vmatpush.bf16.msra.mxu0 %v738
        %770 = vmatpush.bf16.msra.mxu0 %v735
        %771 = vmatpush.bf16.msra.mxu0 %v732
        %772 = vmatpush.bf16.msra.mxu0 %v729
        %773 = vmatpush.bf16.msra.mxu0 %v726
        %774 = vmatpush.bf16.msra.mxu0 %v723
        %775 = vmatpush.bf16.msra.mxu0 %v720
        %776 = vmatmul.bf16.gmra.mxu0 %v598
        %v777 = vpop.f32.mrf.mxu0
        %v778 = vadd.f32 %v634, %v777
        %v779 = vpop.f32.mrf.mxu0
        %v780 = vadd.f32 %v634, %v779
        %781 = vmatmul.bf16.gmra.mxu0 %v599
        %v782 = vpop.f32.mrf.mxu0
        %v783 = vadd.f32 %v634, %v782
        %v784 = vpop.f32.mrf.mxu0
        %v785 = vadd.f32 %v634, %v784
        %786 = vdwg.mxu0
        %787 = vmatpush.bf16.msra.mxu0 %v742
        %788 = vmatpush.bf16.msra.mxu0 %v739
        %789 = vmatpush.bf16.msra.mxu0 %v736
        %790 = vmatpush.bf16.msra.mxu0 %v733
        %791 = vmatpush.bf16.msra.mxu0 %v730
        %792 = vmatpush.bf16.msra.mxu0 %v727
        %793 = vmatpush.bf16.msra.mxu0 %v724
        %794 = vmatpush.bf16.msra.mxu0 %v721
        %795 = vmatmul.bf16.gmra.mxu0 %v598
        %v796 = vpop.f32.mrf.mxu0
        %v797 = vadd.f32 %v635, %v796
        %v798 = vpop.f32.mrf.mxu0
        %v799 = vadd.f32 %v635, %v798
        %800 = vmatmul.bf16.gmra.mxu0 %v599
        %v801 = vpop.f32.mrf.mxu0
        %v802 = vadd.f32 %v635, %v801
        %v803 = vpop.f32.mrf.mxu0
        %v804 = vadd.f32 %v635, %v803
        %805 = vdwg.mxu0
        %806 = vmatpush.bf16.msra.mxu0 %v743
        %807 = vmatpush.bf16.msra.mxu0 %v740
        %808 = vmatpush.bf16.msra.mxu0 %v737
        %809 = vmatpush.bf16.msra.mxu0 %v734
        %810 = vmatpush.bf16.msra.mxu0 %v731
        %811 = vmatpush.bf16.msra.mxu0 %v728
        %812 = vmatpush.bf16.msra.mxu0 %v725
        %813 = vmatpush.bf16.msra.mxu0 %v722
        %814 = vmatmul.bf16.gmra.mxu0 %v598
        %v815 = vpop.f32.mrf.mxu0
        %v816 = vadd.f32 %v636, %v815
        %v817 = vpop.f32.mrf.mxu0
        %v818 = vadd.f32 %v636, %v817
        %819 = vmatmul.bf16.gmra.mxu0 %v599
        %v820 = vpop.f32.mrf.mxu0
        %v821 = vadd.f32 %v636, %v820
        %v822 = vpop.f32.mrf.mxu0
        %v823 = vadd.f32 %v636, %v822
        %824 = vdwg.mxu0
        %v825 = vld [vmem:[%s1] sm:$0x1]
        %v826 = vld [vmem:[%s1 + $0x1] sm:$0x1]
        %v827 = vld [vmem:[%s552] sm:$0xf]
        %v828 = vld [vmem:[%s552 + $0x4] sm:$0xf]
        %v829 = vld [vmem:[%s552 + $0x8] sm:$0xf]
        %v830 = vld [vmem:[%s552 + $0xc] sm:$0xf]
        %v831 = vld [vmem:[%s552 + $0x10] sm:$0xf]
        %v832 = vld [vmem:[%s552 + $0x14] sm:$0xf]
        %v833 = vld [vmem:[%s552 + $0x18] sm:$0xf]
        %v834 = vld [vmem:[%s552 + $0x1c] sm:$0xf]
        %v835 = vld [vmem:[%s552 + $0x20] sm:$0xf]
        %v836 = vld [vmem:[%s552 + $0x24] sm:$0xf]
        %v837 = vld [vmem:[%s552 + $0x28] sm:$0xf]
        %v838 = vld [vmem:[%s552 + $0x2c] sm:$0xf]
        %v839 = vld [vmem:[%s552 + $0x30] sm:$0xf]
        %v840 = vld [vmem:[%s552 + $0x34] sm:$0xf]
        %v841 = vld [vmem:[%s552 + $0x38] sm:$0xf]
        %v842 = vld [vmem:[%s552 + $0x3c] sm:$0xf]
        %v843 = vpack.c.bf16 %v778, %v778
        %v844 = vpack.c.bf16 %v780, %v780
        %v845 = vpack.c.bf16 %v783, %v783
        %v846 = vpack.c.bf16 %v785, %v785
        %v847 = vpack.c.bf16 %v797, %v797
        %v848 = vpack.c.bf16 %v799, %v799
        %v849 = vpack.c.bf16 %v802, %v802
        %v850 = vpack.c.bf16 %v804, %v804
        %v851 = vpack.c.bf16 %v816, %v816
        %v852 = vpack.c.bf16 %v818, %v818
        %v853 = vpack.c.bf16 %v821, %v821
        %v854 = vpack.c.bf16 %v823, %v823
        %v857 = vunpack.c.l.b16 %v843
        %v858 = vunpack.c.l.b16 %v844
        %v859 = vpack.c.b16 %v858, %v857
        %v862 = vunpack.c.l.b16 %v847
        %v863 = vunpack.c.l.b16 %v848
        %v864 = vpack.c.b16 %v863, %v862
        %vm865 = vcmask 523264
        %v867 = vsel %vm865, %v859, 0
        %v870 = vsel %vm865, %v864, 0
        %872 = vmatpush.bf16.xpose.msra.mxu0 0
        %873 = vmatpush.bf16.xpose.msra.mxu0 0
        %874 = vmatpush.bf16.xpose.msra.mxu0 0
        %875 = vmatpush.bf16.xpose.msra.mxu0 0
        %876 = vmatpush.bf16.xpose.msra.mxu0 0
        %877 = vmatpush.bf16.xpose.msra.mxu0 0
        %878 = vmatpush.bf16.xpose.msra.mxu0 0
        %879 = vmatpush.bf16.xpose.msra.mxu0 %v870
        %880 = vmatmul.bf16.gmra.mxu0 %v867
        %v881 = vpop.f32.mrf.mxu0
        %v882 = vadd.f32 0.0, %v881
        %v883 = vpop.f32.mrf.mxu0
        %v884 = vadd.f32 0.0, %v883
        %885 = vdwg.mxu0
        %v888 = vunpack.c.l.b16 %v845
        %v889 = vunpack.c.l.b16 %v846
        %v890 = vpack.c.b16 %v889, %v888
        %v893 = vunpack.c.l.b16 %v849
        %v894 = vunpack.c.l.b16 %v850
        %v895 = vpack.c.b16 %v894, %v893
        %v897 = vsel %vm865, %v890, 0
        %v900 = vsel %vm865, %v895, 0
        %902 = vmatpush.bf16.xpose.msra.mxu0 0
        %903 = vmatpush.bf16.xpose.msra.mxu0 0
        %904 = vmatpush.bf16.xpose.msra.mxu0 0
        %905 = vmatpush.bf16.xpose.msra.mxu0 0
        %906 = vmatpush.bf16.xpose.msra.mxu0 0
        %907 = vmatpush.bf16.xpose.msra.mxu0 0
        %908 = vmatpush.bf16.xpose.msra.mxu0 0
        %909 = vmatpush.bf16.xpose.msra.mxu0 %v900
        %910 = vmatmul.bf16.gmra.mxu0 %v897
        %v911 = vpop.f32.mrf.mxu0
        %v912 = vadd.f32 0.0, %v911
        %v913 = vpop.f32.mrf.mxu0
        %v914 = vadd.f32 0.0, %v913
        %915 = vdwg.mxu0
        %v916 = vmul.f32 %v882, 0.125
        %v917 = vmul.f32 %v884, 0.125
        %v918 = vmul.f32 %v912, 0.125
        %v919 = vmul.f32 %v914, 0.125
        %v922 = vperm.slane %v825, 0
        %v923 = vperm.slane %v826, 0
        %v926 = vadd.f32 %v916, %v922
        %v927 = vadd.f32 %v917, %v922
        %v928 = vadd.f32 %v918, %v923
        %v929 = vadd.f32 %v919, %v923
        %vm930 = vcmask 130048
        %v931 = vsel %vm930, %v926, -inf
        %932 = vmax.xlane.f32.xlu0 %v931
        %v933 = vpop.xlane.xlu0 %932
        %v934 = vsel %vm930, %v927, -inf
        %935 = vmax.xlane.f32.xlu0 %v934
        %v936 = vpop.xlane.xlu0 %935
        %v937 = vsel %vm930, %v928, -inf
        %938 = vmax.xlane.f32.xlu0 %v937
        %v939 = vpop.xlane.xlu0 %938
        %v940 = vsel %vm930, %v929, -inf
        %941 = vmax.xlane.f32.xlu0 %v940
        %v942 = vpop.xlane.xlu0 %941
        %v943 = vsub.f32 %v926, %v933
        %v944 = vsub.f32 %v927, %v936
        %v945 = vsub.f32 %v928, %v939
        %v946 = vsub.f32 %v929, %v942
        %v947 = vmul.f32 %v943, 1.442695
        %v948 = vpow.pop %v947
        %v949 = vmul.f32 %v944, 1.442695
        %v950 = vpow.pop %v949
        %v951 = vmul.f32 %v945, 1.442695
        %v952 = vpow.pop %v951
        %v953 = vmul.f32 %v946, 1.442695
        %v954 = vpow.pop %v953
        %v955 = vsel %vm930, %v948, 0.0
        %956 = vadd.xlane.f32.xlu0 %v955
        %v957 = vpop.xlane.xlu0 %956
        %v958 = vsel %vm930, %v950, 0.0
        %959 = vadd.xlane.f32.xlu0 %v958
        %v960 = vpop.xlane.xlu0 %959
        %v961 = vsel %vm930, %v952, 0.0
        %962 = vadd.xlane.f32.xlu0 %v961
        %v963 = vpop.xlane.xlu0 %962
        %v964 = vsel %vm930, %v954, 0.0
        %965 = vadd.xlane.f32.xlu0 %v964
        %v966 = vpop.xlane.xlu0 %965
        %v967 = vrcp.pop %v957
        %v968 = vrcp.pop %v960
        %v969 = vrcp.pop %v963
        %v970 = vrcp.pop %v966
        %v971 = vmul.f32 %v948, %v967
        %v972 = vmul.f32 %v950, %v968
        %v973 = vmul.f32 %v952, %v969
        %v974 = vmul.f32 %v954, %v970
        %v975 = vpack.c.bf16 %v971, %v971
        %v976 = vpack.c.bf16 %v972, %v972
        %v977 = vpack.c.bf16 %v973, %v973
        %v978 = vpack.c.bf16 %v974, %v974
        %v981 = vunpack.c.l.b16 %v975
        %v982 = vunpack.c.l.b16 %v976
        %v983 = vpack.c.b16 %v982, %v981
        %v986 = vunpack.c.l.b16 %v851
        %v987 = vunpack.c.l.b16 %v852
        %v988 = vpack.c.b16 %v987, %v986
        %v991 = vsel %vm930, %v983, 0
        %993 = vmatpush.bf16.msra.mxu0 0
        %994 = vmatpush.bf16.msra.mxu0 0
        %995 = vmatpush.bf16.msra.mxu0 0
        %996 = vmatpush.bf16.msra.mxu0 0
        %997 = vmatpush.bf16.msra.mxu0 0
        %998 = vmatpush.bf16.msra.mxu0 0
        %999 = vmatpush.bf16.msra.mxu0 0
        %1000 = vmatpush.bf16.msra.mxu0 %v988
        %1001 = vmatmul.bf16.gmra.mxu0 %v991
        %v1002 = vpop.f32.mrf.mxu0
        %v1003 = vadd.f32 0.0, %v1002
        %v1004 = vpop.f32.mrf.mxu0
        %v1005 = vadd.f32 0.0, %v1004
        %1006 = vdwg.mxu0
        %v1009 = vunpack.c.l.b16 %v977
        %v1010 = vunpack.c.l.b16 %v978
        %v1011 = vpack.c.b16 %v1010, %v1009
        %v1014 = vunpack.c.l.b16 %v853
        %v1015 = vunpack.c.l.b16 %v854
        %v1016 = vpack.c.b16 %v1015, %v1014
        %v1019 = vsel %vm930, %v1011, 0
        %1021 = vmatpush.bf16.msra.mxu0 0
        %1022 = vmatpush.bf16.msra.mxu0 0
        %1023 = vmatpush.bf16.msra.mxu0 0
        %1024 = vmatpush.bf16.msra.mxu0 0
        %1025 = vmatpush.bf16.msra.mxu0 0
        %1026 = vmatpush.bf16.msra.mxu0 0
        %1027 = vmatpush.bf16.msra.mxu0 0
        %1028 = vmatpush.bf16.msra.mxu0 %v1016
        %1029 = vmatmul.bf16.gmra.mxu0 %v1019
        %v1030 = vpop.f32.mrf.mxu0
        %v1031 = vadd.f32 0.0, %v1030
        %v1032 = vpop.f32.mrf.mxu0
        %v1033 = vadd.f32 0.0, %v1032
        %1034 = vdwg.mxu0
        %v1035 = vpack.c.bf16 %v1005, %v1003
        %v1036 = vpack.c.bf16 %v1033, %v1031
        %1037 = vrot.lane.b32.xlu0 %v859, 64
        %v1038 = vpop.permute.xlu0 %1037
        %1039 = vrot.lane.b32.xlu0 %v864, 64
        %v1040 = vpop.permute.xlu0 %1039
        %v1042 = vsel %vm865, %v1038, 0
        %v1045 = vsel %vm865, %v1040, 0
        %1047 = vmatpush.bf16.xpose.msra.mxu0 0
        %1048 = vmatpush.bf16.xpose.msra.mxu0 0
        %1049 = vmatpush.bf16.xpose.msra.mxu0 0
        %1050 = vmatpush.bf16.xpose.msra.mxu0 0
        %1051 = vmatpush.bf16.xpose.msra.mxu0 0
        %1052 = vmatpush.bf16.xpose.msra.mxu0 0
        %1053 = vmatpush.bf16.xpose.msra.mxu0 0
        %1054 = vmatpush.bf16.xpose.msra.mxu0 %v1045
        %1055 = vmatmul.bf16.gmra.mxu0 %v1042
        %v1056 = vpop.f32.mrf.mxu0
        %v1057 = vadd.f32 0.0, %v1056
        %v1058 = vpop.f32.mrf.mxu0
        %v1059 = vadd.f32 0.0, %v1058
        %1060 = vdwg.mxu0
        %1061 = vrot.lane.b32.xlu0 %v890, 64
        %v1062 = vpop.permute.xlu0 %1061
        %1063 = vrot.lane.b32.xlu0 %v895, 64
        %v1064 = vpop.permute.xlu0 %1063
        %v1066 = vsel %vm865, %v1062, 0
        %v1069 = vsel %vm865, %v1064, 0
        %1071 = vmatpush.bf16.xpose.msra.mxu0 0
        %1072 = vmatpush.bf16.xpose.msra.mxu0 0
        %1073 = vmatpush.bf16.xpose.msra.mxu0 0
        %1074 = vmatpush.bf16.xpose.msra.mxu0 0
        %1075 = vmatpush.bf16.xpose.msra.mxu0 0
        %1076 = vmatpush.bf16.xpose.msra.mxu0 0
        %1077 = vmatpush.bf16.xpose.msra.mxu0 0
        %1078 = vmatpush.bf16.xpose.msra.mxu0 %v1069
        %1079 = vmatmul.bf16.gmra.mxu0 %v1066
        %v1080 = vpop.f32.mrf.mxu0
        %v1081 = vadd.f32 0.0, %v1080
        %v1082 = vpop.f32.mrf.mxu0
        %v1083 = vadd.f32 0.0, %v1082
        %1084 = vdwg.mxu0
        %v1085 = vmul.f32 %v1057, 0.125
        %v1086 = vmul.f32 %v1059, 0.125
        %v1087 = vmul.f32 %v1081, 0.125
        %v1088 = vmul.f32 %v1083, 0.125
        %v1089 = vadd.f32 %v1085, %v922
        %v1090 = vadd.f32 %v1086, %v922
        %v1091 = vadd.f32 %v1087, %v923
        %v1092 = vadd.f32 %v1088, %v923
        %v1093 = vsel %vm930, %v1089, -inf
        %1094 = vmax.xlane.f32.xlu0 %v1093
        %v1095 = vpop.xlane.xlu0 %1094
        %v1096 = vsel %vm930, %v1090, -inf
        %1097 = vmax.xlane.f32.xlu0 %v1096
        %v1098 = vpop.xlane.xlu0 %1097
        %v1099 = vsel %vm930, %v1091, -inf
        %1100 = vmax.xlane.f32.xlu0 %v1099
        %v1101 = vpop.xlane.xlu0 %1100
        %v1102 = vsel %vm930, %v1092, -inf
        %1103 = vmax.xlane.f32.xlu0 %v1102
        %v1104 = vpop.xlane.xlu0 %1103
        %v1105 = vsub.f32 %v1089, %v1095
        %v1106 = vsub.f32 %v1090, %v1098
        %v1107 = vsub.f32 %v1091, %v1101
        %v1108 = vsub.f32 %v1092, %v1104
        %v1109 = vmul.f32 %v1105, 1.442695
        %v1110 = vpow.pop %v1109
        %v1111 = vmul.f32 %v1106, 1.442695
        %v1112 = vpow.pop %v1111
        %v1113 = vmul.f32 %v1107, 1.442695
        %v1114 = vpow.pop %v1113
        %v1115 = vmul.f32 %v1108, 1.442695
        %v1116 = vpow.pop %v1115
        %v1117 = vsel %vm930, %v1110, 0.0
        %1118 = vadd.xlane.f32.xlu0 %v1117
        %v1119 = vpop.xlane.xlu0 %1118
        %v1120 = vsel %vm930, %v1112, 0.0
        %1121 = vadd.xlane.f32.xlu0 %v1120
        %v1122 = vpop.xlane.xlu0 %1121
        %v1123 = vsel %vm930, %v1114, 0.0
        %1124 = vadd.xlane.f32.xlu0 %v1123
        %v1125 = vpop.xlane.xlu0 %1124
        %v1126 = vsel %vm930, %v1116, 0.0
        %1127 = vadd.xlane.f32.xlu0 %v1126
        %v1128 = vpop.xlane.xlu0 %1127
        %v1129 = vrcp.pop %v1119
        %v1130 = vrcp.pop %v1122
        %v1131 = vrcp.pop %v1125
        %v1132 = vrcp.pop %v1128
        %v1133 = vmul.f32 %v1110, %v1129
        %v1134 = vmul.f32 %v1112, %v1130
        %v1135 = vmul.f32 %v1114, %v1131
        %v1136 = vmul.f32 %v1116, %v1132
        %v1137 = vpack.c.bf16 %v1133, %v1133
        %v1138 = vpack.c.bf16 %v1134, %v1134
        %v1139 = vpack.c.bf16 %v1135, %v1135
        %v1140 = vpack.c.bf16 %v1136, %v1136
        %v1143 = vunpack.c.l.b16 %v1137
        %v1144 = vunpack.c.l.b16 %v1138
        %v1145 = vpack.c.b16 %v1144, %v1143
        %1146 = vrot.lane.b32.xlu0 %v988, 64
        %v1147 = vpop.permute.xlu0 %1146
        %v1150 = vsel %vm930, %v1145, 0
        %1152 = vmatpush.bf16.msra.mxu0 0
        %1153 = vmatpush.bf16.msra.mxu0 0
        %1154 = vmatpush.bf16.msra.mxu0 0
        %1155 = vmatpush.bf16.msra.mxu0 0
        %1156 = vmatpush.bf16.msra.mxu0 0
        %1157 = vmatpush.bf16.msra.mxu0 0
        %1158 = vmatpush.bf16.msra.mxu0 0
        %1159 = vmatpush.bf16.msra.mxu0 %v1147
        %1160 = vmatmul.bf16.gmra.mxu0 %v1150
        %v1161 = vpop.f32.mrf.mxu0
        %v1162 = vadd.f32 0.0, %v1161
        %v1163 = vpop.f32.mrf.mxu0
        %v1164 = vadd.f32 0.0, %v1163
        %1165 = vdwg.mxu0
        %v1168 = vunpack.c.l.b16 %v1139
        %v1169 = vunpack.c.l.b16 %v1140
        %v1170 = vpack.c.b16 %v1169, %v1168
        %1171 = vrot.lane.b32.xlu0 %v1016, 64
        %v1172 = vpop.permute.xlu0 %1171
        %v1175 = vsel %vm930, %v1170, 0
        %1177 = vmatpush.bf16.msra.mxu0 0
        %1178 = vmatpush.bf16.msra.mxu0 0
        %1179 = vmatpush.bf16.msra.mxu0 0
        %1180 = vmatpush.bf16.msra.mxu0 0
        %1181 = vmatpush.bf16.msra.mxu0 0
        %1182 = vmatpush.bf16.msra.mxu0 0
        %1183 = vmatpush.bf16.msra.mxu0 0
        %1184 = vmatpush.bf16.msra.mxu0 %v1172
        %1185 = vmatmul.bf16.gmra.mxu0 %v1175
        %v1186 = vpop.f32.mrf.mxu0
        %v1187 = vadd.f32 0.0, %v1186
        %v1188 = vpop.f32.mrf.mxu0
        %v1189 = vadd.f32 0.0, %v1188
        %1190 = vdwg.mxu0
        %v1191 = vpack.c.bf16 %v1164, %v1162
        %v1192 = vpack.c.bf16 %v1189, %v1187
        %v1201 = vunpack.c.l.b16 %v835
        %v1202 = vunpack.c.l.b16 %v836
        %v1203 = vunpack.c.l.b16 %v837
        %v1204 = vunpack.c.l.b16 %v838
        %v1205 = vunpack.c.l.b16 %v839
        %v1206 = vunpack.c.l.b16 %v840
        %v1207 = vunpack.c.l.b16 %v841
        %v1208 = vunpack.c.l.b16 %v842
        %v1209 = vpack.c.b16 %v1202, %v1201
        %v1210 = vpack.c.b16 %v1204, %v1203
        %v1211 = vpack.c.b16 %v1206, %v1205
        %v1212 = vpack.c.b16 %v1208, %v1207
        %v1218 = vsel %vm865, %v1191, 0
        %v1221 = vsel %vm865, %v1192, 0
        %1223 = vmatpush.bf16.msra.mxu0 0
        %1224 = vmatpush.bf16.msra.mxu0 0
        %1225 = vmatpush.bf16.msra.mxu0 0
        %1226 = vmatpush.bf16.msra.mxu0 0
        %1227 = vmatpush.bf16.msra.mxu0 %v1212
        %1228 = vmatpush.bf16.msra.mxu0 %v1211
        %1229 = vmatpush.bf16.msra.mxu0 %v1210
        %1230 = vmatpush.bf16.msra.mxu0 %v1209
        %1231 = vmatmul.bf16.gmra.mxu0 %v1218
        %v1232 = vpop.f32.mrf.mxu0
        %v1233 = vadd.f32 0.0, %v1232
        %v1234 = vpop.f32.mrf.mxu0
        %v1235 = vadd.f32 0.0, %v1234
        %1236 = vmatmul.bf16.gmra.mxu0 %v1221
        %v1237 = vpop.f32.mrf.mxu0
        %v1238 = vadd.f32 0.0, %v1237
        %v1239 = vpop.f32.mrf.mxu0
        %v1240 = vadd.f32 0.0, %v1239
        %1241 = vdwg.mxu0
        %v1250 = vunpack.c.l.b16 %v827
        %v1251 = vunpack.c.l.b16 %v828
        %v1252 = vunpack.c.l.b16 %v829
        %v1253 = vunpack.c.l.b16 %v830
        %v1254 = vunpack.c.l.b16 %v831
        %v1255 = vunpack.c.l.b16 %v832
        %v1256 = vunpack.c.l.b16 %v833
        %v1257 = vunpack.c.l.b16 %v834
        %v1258 = vpack.c.b16 %v1251, %v1250
        %v1259 = vpack.c.b16 %v1253, %v1252
        %v1260 = vpack.c.b16 %v1255, %v1254
        %v1261 = vpack.c.b16 %v1257, %v1256
        %v1267 = vsel %vm865, %v1035, 0
        %v1270 = vsel %vm865, %v1036, 0
        %1272 = vmatpush.bf16.msra.mxu0 0
        %1273 = vmatpush.bf16.msra.mxu0 0
        %1274 = vmatpush.bf16.msra.mxu0 0
        %1275 = vmatpush.bf16.msra.mxu0 0
        %1276 = vmatpush.bf16.msra.mxu0 %v1261
        %1277 = vmatpush.bf16.msra.mxu0 %v1260
        %1278 = vmatpush.bf16.msra.mxu0 %v1259
        %1279 = vmatpush.bf16.msra.mxu0 %v1258
        %1280 = vmatmul.bf16.gmra.mxu0 %v1267
        %v1281 = vpop.f32.mrf.mxu0
        %v1282 = vadd.f32 %v1233, %v1281
        %v1283 = vpop.f32.mrf.mxu0
        %v1284 = vadd.f32 %v1235, %v1283
        %1285 = vmatmul.bf16.gmra.mxu0 %v1270
        %v1286 = vpop.f32.mrf.mxu0
        %v1287 = vadd.f32 %v1238, %v1286
        %v1288 = vpop.f32.mrf.mxu0
        %v1289 = vadd.f32 %v1240, %v1288
        %1290 = vdwg.mxu0
        %v1291 = vld [vmem:[%s555] sm:$0x1]
        %v1293 = vperm.slane %v1291, 0
        %v1295 = vadd.f32 %v1282, %v1293
        %v1296 = vadd.f32 %v1284, %v1293
        %v1297 = vadd.f32 %v1287, %v1293
        %v1298 = vadd.f32 %v1289, %v1293
        %v1299 = vld [vmem:[%s559] sm:$0x3]
        %v1300 = vadd.f32 %v594, %v1295
        %v1301 = vadd.f32 %v595, %v1296
        %v1302 = vadd.f32 %v596, %v1297
        %v1303 = vadd.f32 %v597, %v1298
        %1304 = vadd.xlane.f32.xlu0 %v1300
        %v1305 = vpop.xlane.xlu0 %1304
        %1306 = vadd.xlane.f32.xlu0 %v1301
        %v1307 = vpop.xlane.xlu0 %1306
        %1308 = vadd.xlane.f32.xlu0 %v1302
        %v1309 = vpop.xlane.xlu0 %1308
        %1310 = vadd.xlane.f32.xlu0 %v1303
        %v1311 = vpop.xlane.xlu0 %1310
        %v1312 = vrcp.pop 128.0
        %v1313 = vmul.f32 128.0, %v1312
        %v1314 = vsub.f32 1.0, %v1313
        %v1315 = vmul.f32 %v1312, %v1314
        %v1316 = vadd.f32 %v1312, %v1315
        %vm1317 = vweird.f32 %v1312
        %v1318 = vsel %vm1317, %v1312, %v1316
        %v1319 = vmul.f32 %v1305, %v1318
        %v1320 = vmul.f32 %v1307, %v1318
        %v1321 = vmul.f32 %v1309, %v1318
        %v1322 = vmul.f32 %v1311, %v1318
        %v1323 = vsub.f32 %v1300, %v1319
        %v1324 = vsub.f32 %v1301, %v1320
        %v1325 = vsub.f32 %v1302, %v1321
        %v1326 = vsub.f32 %v1303, %v1322
        %v1327 = vmul.f32 %v1323, %v1323
        %v1328 = vmul.f32 %v1324, %v1324
        %v1329 = vmul.f32 %v1325, %v1325
        %v1330 = vmul.f32 %v1326, %v1326
        %1331 = vadd.xlane.f32.xlu0 %v1327
        %v1332 = vpop.xlane.xlu0 %1331
        %1333 = vadd.xlane.f32.xlu0 %v1328
        %v1334 = vpop.xlane.xlu0 %1333
        %1335 = vadd.xlane.f32.xlu0 %v1329
        %v1336 = vpop.xlane.xlu0 %1335
        %1337 = vadd.xlane.f32.xlu0 %v1330
        %v1338 = vpop.xlane.xlu0 %1337
        %v1339 = vmul.f32 %v1332, %v1318
        %v1340 = vmul.f32 %v1334, %v1318
        %v1341 = vmul.f32 %v1336, %v1318
        %v1342 = vmul.f32 %v1338, %v1318
        %v1343 = vadd.f32 %v1339, 1e-12
        %v1344 = vadd.f32 %v1340, 1e-12
        %v1345 = vadd.f32 %v1341, 1e-12
        %v1346 = vadd.f32 %v1342, 1e-12
        %v1347 = vrsqrt.pop %v1343
        %v1348 = vmul.f32 %v1347, %v1343
        %v1349 = vmul.f32 %v1348, %v1347
        %v1350 = vmul.f32 0.5, %v1349
        %v1351 = vsub.f32 1.5, %v1350
        %v1352 = vmul.f32 %v1347, %v1351
        %vm1353 = vweird.f32 %v1343
        %vm1354 = vweird.f32 %v1347
        %vm1355 = vmor %vm1353, %vm1354
        %v1356 = vsel %vm1355, %v1347, %v1352
        %v1357 = vrsqrt.pop %v1344
        %v1358 = vmul.f32 %v1357, %v1344
        %v1359 = vmul.f32 %v1358, %v1357
        %v1360 = vmul.f32 0.5, %v1359
        %v1361 = vsub.f32 1.5, %v1360
        %v1362 = vmul.f32 %v1357, %v1361
        %vm1363 = vweird.f32 %v1344
        %vm1364 = vweird.f32 %v1357
        %vm1365 = vmor %vm1363, %vm1364
        %v1366 = vsel %vm1365, %v1357, %v1362
        %v1367 = vrsqrt.pop %v1345
        %v1368 = vmul.f32 %v1367, %v1345
        %v1369 = vmul.f32 %v1368, %v1367
        %v1370 = vmul.f32 0.5, %v1369
        %v1371 = vsub.f32 1.5, %v1370
        %v1372 = vmul.f32 %v1367, %v1371
        %vm1373 = vweird.f32 %v1345
        %vm1374 = vweird.f32 %v1367
        %vm1375 = vmor %vm1373, %vm1374
        %v1376 = vsel %vm1375, %v1367, %v1372
        %v1377 = vrsqrt.pop %v1346
        %v1378 = vmul.f32 %v1377, %v1346
        %v1379 = vmul.f32 %v1378, %v1377
        %v1380 = vmul.f32 0.5, %v1379
        %v1381 = vsub.f32 1.5, %v1380
        %v1382 = vmul.f32 %v1377, %v1381
        %vm1383 = vweird.f32 %v1346
        %vm1384 = vweird.f32 %v1377
        %vm1385 = vmor %vm1383, %vm1384
        %v1386 = vsel %vm1385, %v1377, %v1382
        %v1387 = vmul.f32 %v1323, %v1356
        %v1388 = vmul.f32 %v1324, %v1366
        %v1389 = vmul.f32 %v1325, %v1376
        %v1390 = vmul.f32 %v1326, %v1386
        %v1391 = vperm.slane %v1299, 0
        %v1392 = vmul.f32 %v1387, %v1391
        %v1393 = vmul.f32 %v1388, %v1391
        %v1394 = vmul.f32 %v1389, %v1391
        %v1395 = vmul.f32 %v1390, %v1391
        %v1396 = vperm.slane %v1299, 1
        %v1397 = vadd.f32 %v1392, %v1396
        %v1398 = vadd.f32 %v1393, %v1396
        %v1399 = vadd.f32 %v1394, %v1396
        %v1400 = vadd.f32 %v1395, %v1396
        %v1401 = vpack.c.bf16 %v1398, %v1397
        %v1402 = vpack.c.bf16 %v1400, %v1399
        %v1403 = vld [vmem:[%s564] sm:$0xff]
        %v1404 = vld [vmem:[%s564 + $0x8] sm:$0xff]
        %v1405 = vld [vmem:[%s564 + $0x10] sm:$0xff]
        %v1406 = vld [vmem:[%s564 + $0x18] sm:$0xff]
        %v1407 = vld [vmem:[%s564 + $0x20] sm:$0xff]
        %v1408 = vld [vmem:[%s564 + $0x28] sm:$0xff]
        %v1409 = vld [vmem:[%s564 + $0x30] sm:$0xff]
        %v1410 = vld [vmem:[%s564 + $0x38] sm:$0xff]
        %v1411 = vld [vmem:[%s564 + $0x40] sm:$0xff]
        %v1412 = vld [vmem:[%s564 + $0x48] sm:$0xff]
        %v1413 = vld [vmem:[%s564 + $0x50] sm:$0xff]
        %v1414 = vld [vmem:[%s564 + $0x58] sm:$0xff]
        %v1415 = vld [vmem:[%s564 + $0x60] sm:$0xff]
        %v1416 = vld [vmem:[%s564 + $0x68] sm:$0xff]
        %v1417 = vld [vmem:[%s564 + $0x70] sm:$0xff]
        %v1418 = vld [vmem:[%s564 + $0x78] sm:$0xff]
        %v1419 = vld [vmem:[%s568] sm:$0x3]
        %v1421 = vperm.slane %v1419, 0
        %v1422 = vperm.slane %v1419, 1
        %v1441 = vunpack.c.l.b16 %v1403
        %v1442 = vunpack.c.h.b16 %v1403
        %v1443 = vunpack.c.l.b16 %v1404
        %v1444 = vunpack.c.h.b16 %v1404
        %v1445 = vunpack.c.l.b16 %v1405
        %v1446 = vunpack.c.h.b16 %v1405
        %v1447 = vunpack.c.l.b16 %v1406
        %v1448 = vunpack.c.h.b16 %v1406
        %v1449 = vunpack.c.l.b16 %v1407
        %v1450 = vunpack.c.h.b16 %v1407
        %v1451 = vunpack.c.l.b16 %v1408
        %v1452 = vunpack.c.h.b16 %v1408
        %v1453 = vunpack.c.l.b16 %v1409
        %v1454 = vunpack.c.h.b16 %v1409
        %v1455 = vunpack.c.l.b16 %v1410
        %v1456 = vunpack.c.h.b16 %v1410
        %v1457 = vunpack.c.l.b16 %v1411
        %v1458 = vunpack.c.h.b16 %v1411
        %v1459 = vunpack.c.l.b16 %v1412
        %v1460 = vunpack.c.h.b16 %v1412
        %v1461 = vunpack.c.l.b16 %v1413
        %v1462 = vunpack.c.h.b16 %v1413
        %v1463 = vunpack.c.l.b16 %v1414
        %v1464 = vunpack.c.h.b16 %v1414
        %v1465 = vunpack.c.l.b16 %v1415
        %v1466 = vunpack.c.h.b16 %v1415
        %v1467 = vunpack.c.l.b16 %v1416
        %v1468 = vunpack.c.h.b16 %v1416
        %v1469 = vunpack.c.l.b16 %v1417
        %v1470 = vunpack.c.h.b16 %v1417
        %v1471 = vunpack.c.l.b16 %v1418
        %v1472 = vunpack.c.h.b16 %v1418
        %v1473 = vpack.c.b16 %v1443, %v1441
        %v1474 = vpack.c.b16 %v1444, %v1442
        %v1475 = vpack.c.b16 %v1447, %v1445
        %v1476 = vpack.c.b16 %v1448, %v1446
        %v1477 = vpack.c.b16 %v1451, %v1449
        %v1478 = vpack.c.b16 %v1452, %v1450
        %v1479 = vpack.c.b16 %v1455, %v1453
        %v1480 = vpack.c.b16 %v1456, %v1454
        %v1481 = vpack.c.b16 %v1459, %v1457
        %v1482 = vpack.c.b16 %v1460, %v1458
        %v1483 = vpack.c.b16 %v1463, %v1461
        %v1484 = vpack.c.b16 %v1464, %v1462
        %v1485 = vpack.c.b16 %v1467, %v1465
        %v1486 = vpack.c.b16 %v1468, %v1466
        %v1487 = vpack.c.b16 %v1471, %v1469
        %v1488 = vpack.c.b16 %v1472, %v1470
        %1505 = vmatpush.bf16.msra.mxu0 %v1487
        %1506 = vmatpush.bf16.msra.mxu0 %v1485
        %1507 = vmatpush.bf16.msra.mxu0 %v1483
        %1508 = vmatpush.bf16.msra.mxu0 %v1481
        %1509 = vmatpush.bf16.msra.mxu0 %v1479
        %1510 = vmatpush.bf16.msra.mxu0 %v1477
        %1511 = vmatpush.bf16.msra.mxu0 %v1475
        %1512 = vmatpush.bf16.msra.mxu0 %v1473
        %1513 = vmatmul.bf16.gmra.mxu0 %v1401
        %v1514 = vpop.f32.mrf.mxu0
        %v1515 = vadd.f32 %v1421, %v1514
        %v1516 = vpop.f32.mrf.mxu0
        %v1517 = vadd.f32 %v1421, %v1516
        %1518 = vmatmul.bf16.gmra.mxu0 %v1402
        %v1519 = vpop.f32.mrf.mxu0
        %v1520 = vadd.f32 %v1421, %v1519
        %v1521 = vpop.f32.mrf.mxu0
        %v1522 = vadd.f32 %v1421, %v1521
        %1523 = vdwg.mxu0
        %1524 = vmatpush.bf16.msra.mxu0 %v1488
        %1525 = vmatpush.bf16.msra.mxu0 %v1486
        %1526 = vmatpush.bf16.msra.mxu0 %v1484
        %1527 = vmatpush.bf16.msra.mxu0 %v1482
        %1528 = vmatpush.bf16.msra.mxu0 %v1480
        %1529 = vmatpush.bf16.msra.mxu0 %v1478
        %1530 = vmatpush.bf16.msra.mxu0 %v1476
        %1531 = vmatpush.bf16.msra.mxu0 %v1474
        %1532 = vmatmul.bf16.gmra.mxu0 %v1401
        %v1533 = vpop.f32.mrf.mxu0
        %v1534 = vadd.f32 %v1422, %v1533
        %v1535 = vpop.f32.mrf.mxu0
        %v1536 = vadd.f32 %v1422, %v1535
        %1537 = vmatmul.bf16.gmra.mxu0 %v1402
        %v1538 = vpop.f32.mrf.mxu0
        %v1539 = vadd.f32 %v1422, %v1538
        %v1540 = vpop.f32.mrf.mxu0
        %v1541 = vadd.f32 %v1422, %v1540
        %1542 = vdwg.mxu0
        %v1543 = vmul.f32 %v1515, %v1515
        %v1544 = vmul.f32 %v1534, %v1534
        %v1545 = vmul.f32 %v1517, %v1517
        %v1546 = vmul.f32 %v1536, %v1536
        %v1547 = vmul.f32 %v1520, %v1520
        %v1548 = vmul.f32 %v1539, %v1539
        %v1549 = vmul.f32 %v1522, %v1522
        %v1550 = vmul.f32 %v1541, %v1541
        %v1551 = vmul.f32 %v1515, %v1543
        %v1552 = vmul.f32 %v1534, %v1544
        %v1553 = vmul.f32 %v1517, %v1545
        %v1554 = vmul.f32 %v1536, %v1546
        %v1555 = vmul.f32 %v1520, %v1547
        %v1556 = vmul.f32 %v1539, %v1548
        %v1557 = vmul.f32 %v1522, %v1549
        %v1558 = vmul.f32 %v1541, %v1550
        %v1559 = vmul.f32 %v1551, 0.044715
        %v1560 = vmul.f32 %v1552, 0.044715
        %v1561 = vmul.f32 %v1553, 0.044715
        %v1562 = vmul.f32 %v1554, 0.044715
        %v1563 = vmul.f32 %v1555, 0.044715
        %v1564 = vmul.f32 %v1556, 0.044715
        %v1565 = vmul.f32 %v1557, 0.044715
        %v1566 = vmul.f32 %v1558, 0.044715
        %v1567 = vadd.f32 %v1515, %v1559
        %v1568 = vadd.f32 %v1534, %v1560
        %v1569 = vadd.f32 %v1517, %v1561
        %v1570 = vadd.f32 %v1536, %v1562
        %v1571 = vadd.f32 %v1520, %v1563
        %v1572 = vadd.f32 %v1539, %v1564
        %v1573 = vadd.f32 %v1522, %v1565
        %v1574 = vadd.f32 %v1541, %v1566
        %v1575 = vmul.f32 %v1567, 0.7978846
        %v1576 = vmul.f32 %v1568, 0.7978846
        %v1577 = vmul.f32 %v1569, 0.7978846
        %v1578 = vmul.f32 %v1570, 0.7978846
        %v1579 = vmul.f32 %v1571, 0.7978846
        %v1580 = vmul.f32 %v1572, 0.7978846
        %v1581 = vmul.f32 %v1573, 0.7978846
        %v1582 = vmul.f32 %v1574, 0.7978846
        %v1583 = vtanh.pop %v1575
        %v1584 = vtanh.pop %v1576
        %v1585 = vtanh.pop %v1577
        %v1586 = vtanh.pop %v1578
        %v1587 = vtanh.pop %v1579
        %v1588 = vtanh.pop %v1580
        %v1589 = vtanh.pop %v1581
        %v1590 = vtanh.pop %v1582
        %v1591 = vadd.f32 %v1583, 1.0
        %v1592 = vadd.f32 %v1584, 1.0
        %v1593 = vadd.f32 %v1585, 1.0
        %v1594 = vadd.f32 %v1586, 1.0
        %v1595 = vadd.f32 %v1587, 1.0
        %v1596 = vadd.f32 %v1588, 1.0
        %v1597 = vadd.f32 %v1589, 1.0
        %v1598 = vadd.f32 %v1590, 1.0
        %v1599 = vmul.f32 %v1591, 0.5
        %v1600 = vmul.f32 %v1592, 0.5
        %v1601 = vmul.f32 %v1593, 0.5
        %v1602 = vmul.f32 %v1594, 0.5
        %v1603 = vmul.f32 %v1595, 0.5
        %v1604 = vmul.f32 %v1596, 0.5
        %v1605 = vmul.f32 %v1597, 0.5
        %v1606 = vmul.f32 %v1598, 0.5
        %v1607 = vmul.f32 %v1515, %v1599
        %v1608 = vmul.f32 %v1534, %v1600
        %v1609 = vmul.f32 %v1517, %v1601
        %v1610 = vmul.f32 %v1536, %v1602
        %v1611 = vmul.f32 %v1520, %v1603
        %v1612 = vmul.f32 %v1539, %v1604
        %v1613 = vmul.f32 %v1522, %v1605
        %v1614 = vmul.f32 %v1541, %v1606
        %v1615 = vpack.c.bf16 %v1609, %v1607
        %v1616 = vpack.c.bf16 %v1610, %v1608
        %v1617 = vpack.c.bf16 %v1613, %v1611
        %v1618 = vpack.c.bf16 %v1614, %v1612
        %v1619 = vld [vmem:[%s573] sm:$0xf]
        %v1620 = vld [vmem:[%s573 + $0x4] sm:$0xf]
        %v1621 = vld [vmem:[%s573 + $0x8] sm:$0xf]
        %v1622 = vld [vmem:[%s573 + $0xc] sm:$0xf]
        %v1623 = vld [vmem:[%s573 + $0x10] sm:$0xf]
        %v1624 = vld [vmem:[%s573 + $0x14] sm:$0xf]
        %v1625 = vld [vmem:[%s573 + $0x18] sm:$0xf]
        %v1626 = vld [vmem:[%s573 + $0x1c] sm:$0xf]
        %v1627 = vld [vmem:[%s573 + $0x20] sm:$0xf]
        %v1628 = vld [vmem:[%s573 + $0x24] sm:$0xf]
        %v1629 = vld [vmem:[%s573 + $0x28] sm:$0xf]
        %v1630 = vld [vmem:[%s573 + $0x2c] sm:$0xf]
        %v1631 = vld [vmem:[%s573 + $0x30] sm:$0xf]
        %v1632 = vld [vmem:[%s573 + $0x34] sm:$0xf]
        %v1633 = vld [vmem:[%s573 + $0x38] sm:$0xf]
        %v1634 = vld [vmem:[%s573 + $0x3c] sm:$0xf]
        %v1635 = vld [vmem:[%s573 + $0x40] sm:$0xf]
        %v1636 = vld [vmem:[%s573 + $0x44] sm:$0xf]
        %v1637 = vld [vmem:[%s573 + $0x48] sm:$0xf]
        %v1638 = vld [vmem:[%s573 + $0x4c] sm:$0xf]
        %v1639 = vld [vmem:[%s573 + $0x50] sm:$0xf]
        %v1640 = vld [vmem:[%s573 + $0x54] sm:$0xf]
        %v1641 = vld [vmem:[%s573 + $0x58] sm:$0xf]
        %v1642 = vld [vmem:[%s573 + $0x5c] sm:$0xf]
        %v1643 = vld [vmem:[%s573 + $0x60] sm:$0xf]
        %v1644 = vld [vmem:[%s573 + $0x64] sm:$0xf]
        %v1645 = vld [vmem:[%s573 + $0x68] sm:$0xf]
        %v1646 = vld [vmem:[%s573 + $0x6c] sm:$0xf]
        %v1647 = vld [vmem:[%s573 + $0x70] sm:$0xf]
        %v1648 = vld [vmem:[%s573 + $0x74] sm:$0xf]
        %v1649 = vld [vmem:[%s573 + $0x78] sm:$0xf]
        %v1650 = vld [vmem:[%s573 + $0x7c] sm:$0xf]
        %v1651 = vld [vmem:[%s576] sm:$0x1]
        %v1653 = vperm.slane %v1651, 0
        %v1687 = vunpack.c.l.b16 %v1619
        %v1688 = vunpack.c.l.b16 %v1620
        %v1689 = vunpack.c.l.b16 %v1621
        %v1690 = vunpack.c.l.b16 %v1622
        %v1691 = vunpack.c.l.b16 %v1623
        %v1692 = vunpack.c.l.b16 %v1624
        %v1693 = vunpack.c.l.b16 %v1625
        %v1694 = vunpack.c.l.b16 %v1626
        %v1695 = vunpack.c.l.b16 %v1627
        %v1696 = vunpack.c.l.b16 %v1628
        %v1697 = vunpack.c.l.b16 %v1629
        %v1698 = vunpack.c.l.b16 %v1630
        %v1699 = vunpack.c.l.b16 %v1631
        %v1700 = vunpack.c.l.b16 %v1632
        %v1701 = vunpack.c.l.b16 %v1633
        %v1702 = vunpack.c.l.b16 %v1634
        %v1703 = vunpack.c.l.b16 %v1635
        %v1704 = vunpack.c.l.b16 %v1636
        %v1705 = vunpack.c.l.b16 %v1637
        %v1706 = vunpack.c.l.b16 %v1638
        %v1707 = vunpack.c.l.b16 %v1639
        %v1708 = vunpack.c.l.b16 %v1640
        %v1709 = vunpack.c.l.b16 %v1641
        %v1710 = vunpack.c.l.b16 %v1642
        %v1711 = vunpack.c.l.b16 %v1643
        %v1712 = vunpack.c.l.b16 %v1644
        %v1713 = vunpack.c.l.b16 %v1645
        %v1714 = vunpack.c.l.b16 %v1646
        %v1715 = vunpack.c.l.b16 %v1647
        %v1716 = vunpack.c.l.b16 %v1648
        %v1717 = vunpack.c.l.b16 %v1649
        %v1718 = vunpack.c.l.b16 %v1650
        %v1719 = vpack.c.b16 %v1688, %v1687
        %v1720 = vpack.c.b16 %v1690, %v1689
        %v1721 = vpack.c.b16 %v1692, %v1691
        %v1722 = vpack.c.b16 %v1694, %v1693
        %v1723 = vpack.c.b16 %v1696, %v1695
        %v1724 = vpack.c.b16 %v1698, %v1697
        %v1725 = vpack.c.b16 %v1700, %v1699
        %v1726 = vpack.c.b16 %v1702, %v1701
        %v1727 = vpack.c.b16 %v1704, %v1703
        %v1728 = vpack.c.b16 %v1706, %v1705
        %v1729 = vpack.c.b16 %v1708, %v1707
        %v1730 = vpack.c.b16 %v1710, %v1709
        %v1731 = vpack.c.b16 %v1712, %v1711
        %v1732 = vpack.c.b16 %v1714, %v1713
        %v1733 = vpack.c.b16 %v1716, %v1715
        %v1734 = vpack.c.b16 %v1718, %v1717
        %1751 = vmatpush.bf16.msra.mxu0 %v1726
        %1752 = vmatpush.bf16.msra.mxu0 %v1725
        %1753 = vmatpush.bf16.msra.mxu0 %v1724
        %1754 = vmatpush.bf16.msra.mxu0 %v1723
        %1755 = vmatpush.bf16.msra.mxu0 %v1722
        %1756 = vmatpush.bf16.msra.mxu0 %v1721
        %1757 = vmatpush.bf16.msra.mxu0 %v1720
        %1758 = vmatpush.bf16.msra.mxu0 %v1719
        %1759 = vmatmul.bf16.gmra.mxu0 %v1615
        %v1760 = vpop.f32.mrf.mxu0
        %v1761 = vadd.f32 %v1653, %v1760
        %v1762 = vpop.f32.mrf.mxu0
        %v1763 = vadd.f32 %v1653, %v1762
        %1764 = vmatmul.bf16.gmra.mxu0 %v1617
        %v1765 = vpop.f32.mrf.mxu0
        %v1766 = vadd.f32 %v1653, %v1765
        %v1767 = vpop.f32.mrf.mxu0
        %v1768 = vadd.f32 %v1653, %v1767
        %1769 = vdwg.mxu0
        %1770 = vmatpush.bf16.msra.mxu0 %v1734
        %1771 = vmatpush.bf16.msra.mxu0 %v1733
        %1772 = vmatpush.bf16.msra.mxu0 %v1732
        %1773 = vmatpush.bf16.msra.mxu0 %v1731
        %1774 = vmatpush.bf16.msra.mxu0 %v1730
        %1775 = vmatpush.bf16.msra.mxu0 %v1729
        %1776 = vmatpush.bf16.msra.mxu0 %v1728
        %1777 = vmatpush.bf16.msra.mxu0 %v1727
        %1778 = vmatmul.bf16.gmra.mxu0 %v1616
        %v1779 = vpop.f32.mrf.mxu0
        %v1780 = vadd.f32 %v1761, %v1779
        %v1781 = vpop.f32.mrf.mxu0
        %v1782 = vadd.f32 %v1763, %v1781
        %1783 = vmatmul.bf16.gmra.mxu0 %v1618
        %v1784 = vpop.f32.mrf.mxu0
        %v1785 = vadd.f32 %v1766, %v1784
        %v1786 = vpop.f32.mrf.mxu0
        %v1787 = vadd.f32 %v1768, %v1786
        %1788 = vdwg.mxu0
        %v1789 = vld [vmem:[%s580] sm:$0x3]
        %v1790 = vadd.f32 %v1397, %v1780
        %v1791 = vadd.f32 %v1398, %v1782
        %v1792 = vadd.f32 %v1399, %v1785
        %v1793 = vadd.f32 %v1400, %v1787
        %1794 = vadd.xlane.f32.xlu0 %v1790
        %v1795 = vpop.xlane.xlu0 %1794
        %1796 = vadd.xlane.f32.xlu0 %v1791
        %v1797 = vpop.xlane.xlu0 %1796
        %1798 = vadd.xlane.f32.xlu0 %v1792
        %v1799 = vpop.xlane.xlu0 %1798
        %1800 = vadd.xlane.f32.xlu0 %v1793
        %v1801 = vpop.xlane.xlu0 %1800
        %v1802 = vmul.f32 %v1795, %v1318
        %v1803 = vmul.f32 %v1797, %v1318
        %v1804 = vmul.f32 %v1799, %v1318
        %v1805 = vmul.f32 %v1801, %v1318
        %v1806 = vsub.f32 %v1790, %v1802
        %v1807 = vsub.f32 %v1791, %v1803
        %v1808 = vsub.f32 %v1792, %v1804
        %v1809 = vsub.f32 %v1793, %v1805
        %v1810 = vmul.f32 %v1806, %v1806
        %v1811 = vmul.f32 %v1807, %v1807
        %v1812 = vmul.f32 %v1808, %v1808
        %v1813 = vmul.f32 %v1809, %v1809
        %1814 = vadd.xlane.f32.xlu0 %v1810
        %v1815 = vpop.xlane.xlu0 %1814
        %1816 = vadd.xlane.f32.xlu0 %v1811
        %v1817 = vpop.xlane.xlu0 %1816
        %1818 = vadd.xlane.f32.xlu0 %v1812
        %v1819 = vpop.xlane.xlu0 %1818
        %1820 = vadd.xlane.f32.xlu0 %v1813
        %v1821 = vpop.xlane.xlu0 %1820
        %v1822 = vmul.f32 %v1815, %v1318
        %v1823 = vmul.f32 %v1817, %v1318
        %v1824 = vmul.f32 %v1819, %v1318
        %v1825 = vmul.f32 %v1821, %v1318
        %v1826 = vadd.f32 %v1822, 1e-12
        %v1827 = vadd.f32 %v1823, 1e-12
        %v1828 = vadd.f32 %v1824, 1e-12
        %v1829 = vadd.f32 %v1825, 1e-12
        %v1830 = vrsqrt.pop %v1826
        %v1831 = vmul.f32 %v1830, %v1826
        %v1832 = vmul.f32 %v1831, %v1830
        %v1833 = vmul.f32 0.5, %v1832
        %v1834 = vsub.f32 1.5, %v1833
        %v1835 = vmul.f32 %v1830, %v1834
        %vm1836 = vweird.f32 %v1826
        %vm1837 = vweird.f32 %v1830
        %vm1838 = vmor %vm1836, %vm1837
        %v1839 = vsel %vm1838, %v1830, %v1835
        %v1840 = vrsqrt.pop %v1827
        %v1841 = vmul.f32 %v1840, %v1827
        %v1842 = vmul.f32 %v1841, %v1840
        %v1843 = vmul.f32 0.5, %v1842
        %v1844 = vsub.f32 1.5, %v1843
        %v1845 = vmul.f32 %v1840, %v1844
        %vm1846 = vweird.f32 %v1827
        %vm1847 = vweird.f32 %v1840
        %vm1848 = vmor %vm1846, %vm1847
        %v1849 = vsel %vm1848, %v1840, %v1845
        %v1850 = vrsqrt.pop %v1828
        %v1851 = vmul.f32 %v1850, %v1828
        %v1852 = vmul.f32 %v1851, %v1850
        %v1853 = vmul.f32 0.5, %v1852
        %v1854 = vsub.f32 1.5, %v1853
        %v1855 = vmul.f32 %v1850, %v1854
        %vm1856 = vweird.f32 %v1828
        %vm1857 = vweird.f32 %v1850
        %vm1858 = vmor %vm1856, %vm1857
        %v1859 = vsel %vm1858, %v1850, %v1855
        %v1860 = vrsqrt.pop %v1829
        %v1861 = vmul.f32 %v1860, %v1829
        %v1862 = vmul.f32 %v1861, %v1860
        %v1863 = vmul.f32 0.5, %v1862
        %v1864 = vsub.f32 1.5, %v1863
        %v1865 = vmul.f32 %v1860, %v1864
        %vm1866 = vweird.f32 %v1829
        %vm1867 = vweird.f32 %v1860
        %vm1868 = vmor %vm1866, %vm1867
        %v1869 = vsel %vm1868, %v1860, %v1865
        %v1870 = vmul.f32 %v1806, %v1839
        %v1871 = vmul.f32 %v1807, %v1849
        %v1872 = vmul.f32 %v1808, %v1859
        %v1873 = vmul.f32 %v1809, %v1869
        %v1874 = vperm.slane %v1789, 0
        %v1875 = vmul.f32 %v1870, %v1874
        %v1876 = vmul.f32 %v1871, %v1874
        %v1877 = vmul.f32 %v1872, %v1874
        %v1878 = vmul.f32 %v1873, %v1874
        %v1879 = vperm.slane %v1789, 1
        %v1880 = vadd.f32 %v1875, %v1879
        %v1881 = vadd.f32 %v1876, %v1879
        %v1882 = vadd.f32 %v1877, %v1879
        %v1883 = vadd.f32 %v1878, %v1879
        %1884 = vst [vmem:[#allocation2] sm:$0xff] %v1880
        %1885 = vst [vmem:[#allocation2 + $0x8] sm:$0xff] %v1881
        %1886 = vst [vmem:[#allocation2 + $0x10] sm:$0xff] %v1882
        %1887 = vst [vmem:[#allocation2 + $0x18] sm:$0xff] %v1883
        %p1888 = scmp.eq.s32.totalorder %s26, 1
        // Predicated region
        $region73: #{loss_path.5} parent=67 // pred_check
          %p1889 = pneg %p1888
        $region74: #{loss_path.5} parent=67 // pred_check_branch
          %1891 = sbr.rel (%p1889) target = $region76
        $region75: #{loss_path.5} parent=67 // pred_region
          %1892 = vst [vmem:[%s13] sm:$0x1] %v1880
          %1893 = vst [vmem:[%s13 + $0x1] sm:$0x1] %v1882
        $region76: #{loss_path.5} parent=67 // pred_fallthru
          _
        // Predicated region
        $region77: #{loss_path.5} parent=67 // pred_check
          %p1894 = pneg %p341
        $region78: #{loss_path.5} parent=67 // pred_check_branch
          %1896 = sbr.rel (%p1894) target = $region80
        $region79: #{loss_path.5} parent=67 // pred_region
          %1898 = vsyncadd [#allocation3], 0
          %s1899 = sshll.u32 [#allocation2], 4
          %s1900 = int_to_ptr.vmem [resolvable:$true] %s1899
          %s1901 = sshll.u32 %s12, 4
          %s1902 = int_to_ptr.hbm [resolvable:$true] %s1901
          %1907 = dma.vmem_to_hbm [thread:$0]  %s1900, 512, %s1902, [#allocation3], 128, 128, 8
        $region80: #{loss_path.5} parent=67 // pred_fallthru
          _
        // Predicated region
        $region81: #{loss_path.5} parent=67 // pred_check
          %p1908 = pneg %p362
        $region82: #{loss_path.5} parent=67 // pred_check_branch
          %1910 = sbr.rel (%p1908) target = $region84
        $region83: #{loss_path.5} parent=67 // pred_region
          _
        $region84: #{loss_path.5} parent=67 // pred_fallthru
          _
        // Predicated region
        $region85: #{loss_path.5} parent=67 // pred_check
          %p1911 = pneg %p341
        $region86: #{loss_path.5} parent=67 // pred_check_branch
          %1913 = sbr.rel (%p1911) target = $region88
        $region87: #{loss_path.5} parent=67 // pred_region
          %1915 = dma.done [#allocation3], 512
        $region88: #{loss_path.5} parent=67 // pred_fallthru
          _
        // Predicated region
        $region89: #{loss_path.5} parent=67 // pred_check
          %p1916 = pneg %p362
        $region90: #{loss_path.5} parent=67 // pred_check_branch
          %1918 = sbr.rel (%p1916) target = $region92
        $region91: #{loss_path.5} parent=67 // pred_region
          _
        $region92: #{loss_path.5} parent=67 // pred_fallthru
          _
      $region68: #{loss_path.5} parent=5 // pred_fallthru
        _
      %p1919 = scmp.le.s32.totalorder 2, %s21
      // Predicated region
      $region93: #{loss_path.5} parent=5 // pred_check
        %p1920 = pneg %p1919
      $region94: #{loss_path.5} parent=5 // pred_check_branch
        %1922 = sbr.rel (%p1920) target = $region96
      $region95: #{loss_path.5} parent=5 // pred_region
        %s1923 = ssub.s32 %s21, 2
      $region96: #{loss_path.5} parent=5 // pred_fallthru
        _
    $region6: #{loss_path.5} parent=1 // loop_footer
      %s25 = sadd.s32 1, %s21
    $region7: #{loss_path.5} parent=1 // loop_footer_branch
      %20 = sbr.rel target = $region3
    $region8: #{loss_path.5} parent=1 // loop_exit
      _
    %1924 = vsyncpa [#allocation3], 1
    %s1925 = scalar_lea.sflag [#allocation3], 1
    %1926 = vsyncpa %s1925, 1

// kernel: loss_path.3
$region0: #{loss_path.3}
  #allocation0 [shape = 'u32[]', space=smem, size = 0x4, offset = 0x4, fixed_abs, tag = 'smem constant byte address 0x4 - core index']
  #allocation1 [shape = 'u32[72,128]{1,0:T(1,128)}', space=vmem, size = 0x9000, scoped, tag = 'internal scratch']
  %s0 = inlined_call_operand.vmem [shape: f32[2,16,128], index: 0, kind: input, shape index: {}]
  %s1 = inlined_call_operand.vmem [shape: f32[2,1,16], index: 1, kind: input, shape index: {}]
  %s2 = inlined_call_operand.vmem [shape: bf16[2,128,384], index: 2, kind: input, shape index: {}]
  %s3 = inlined_call_operand.vmem [shape: f32[2,1,384], index: 3, kind: input, shape index: {}]
  %s4 = inlined_call_operand.vmem [shape: bf16[2,128,128], index: 4, kind: input, shape index: {}]
  %s5 = inlined_call_operand.vmem [shape: f32[2,1,128], index: 5, kind: input, shape index: {}]
  %s6 = inlined_call_operand.vmem [shape: f32[2,2,128], index: 6, kind: input, shape index: {}]
  %s7 = inlined_call_operand.hbm [shape: bf16[2,128,256], index: 7, kind: input, shape index: {}]
  %s8 = inlined_call_operand.vmem [shape: f32[2,1,256], index: 8, kind: input, shape index: {}]
  %s9 = inlined_call_operand.hbm [shape: bf16[2,256,128], index: 9, kind: input, shape index: {}]
  %s10 = inlined_call_operand.vmem [shape: f32[2,1,128], index: 10, kind: input, shape index: {}]
  %s11 = inlined_call_operand.vmem [shape: f32[2,2,128], index: 11, kind: input, shape index: {}]
  %s12 = inlined_call_operand.hbm [shape: f32[2,16,128], index: 12, kind: output, shape index: {0}]
  %s13 = inlined_call_operand.vmem [shape: f32[2,1,128], index: 13, kind: output, shape index: {1}]
  %14 = xla_tuple %s12, %s13
  %s15 = sld [smem:[#allocation0]]
  $region105: #{loss_path.3} parent=0
    _
  %s17 = ssub.s32 1, %s15
  %s18 = scalar_select 0, %s17, %s15
  $region1: #{loss_path.3} parent=0
    #allocation2 [shape = 'u8[131072]{0}', space=vmem, size = 0x20000, scoped, tag = 'input window, operand 7']
    #allocation3 [shape = 's32[2]{0}', space=sflag, size = 0x8, scoped, tag = 'scoped memory for loss_path.3']
    #allocation4 [shape = 's32[2]{0}', space=sflag, size = 0x8, scoped, tag = 'scoped memory for loss_path.3']
    #allocation5 [shape = 'u8[131072]{0}', space=vmem, size = 0x20000, scoped, tag = 'input window, operand 9']
    #allocation6 [shape = 's32[2]{0}', space=sflag, size = 0x8, scoped, tag = 'scoped memory for loss_path.3']
    #allocation7 [shape = 'u8[16384]{0}', space=vmem, size = 0x4000, scoped, tag = 'output window, operand 0, single buffered']
    %19 = vsyncpa [#allocation3], 0
    %s20 = scalar_lea.sflag [#allocation3], 1
    %21 = vsyncpa %s20, 0
    %22 = vsyncpa [#allocation6], 0
    %s23 = scalar_lea.sflag [#allocation6], 1
    %24 = vsyncpa %s23, 0
    %25 = vsyncpa [#allocation4], 0
    loop: start=0, step=1, limit=4
    $region2: #{loss_path.3} parent=1 // loop_pre_header
      _
    $region3: #{loss_path.3} parent=1 // loop_header
      %s27 = sphi 0, %s31
      %p28 = scmp.ge.s32.totalorder %s27, 4
      %s35 = sphi 0, %s35
      %s37 = sphi 0, %s35
      %s38 = sphi 0, %s37
      %s52 = sphi 0, %s38
      %s56 = sphi 0, %s56
      %s58 = sphi 0, %s56
      %s59 = sphi 0, %s58
      %s73 = sphi 0, %s59
      %s79 = sphi 0, %s81
      %s82 = sphi 0, %s79
      %s83 = sphi 0, %s82
      %s99 = sphi 0, %s83
      %s105 = sphi 0, %s107
      %s108 = sphi 0, %s105
      %s109 = sphi 0, %s108
      %s125 = sphi 0, %s109
      %s131 = sphi 0, %s133
      %s134 = sphi 0, %s131
      %s135 = sphi 0, %s134
      %s151 = sphi 0, %s135
      %s157 = sphi 0, %s159
      %s160 = sphi 0, %s157
      %s161 = sphi 0, %s160
      %s177 = sphi 0, %s161
      %s183 = sphi 0, %s185
      %s186 = sphi 0, %s183
      %s187 = sphi 0, %s186
      %s203 = sphi 0, %s187
      %s209 = sphi 0, %s211
      %s212 = sphi 0, %s209
      %s213 = sphi 0, %s212
      %s229 = sphi 0, %s213
      %s235 = sphi 0, %s237
      %s238 = sphi 0, %s235
      %s239 = sphi 0, %s238
      %s255 = sphi 0, %s239
      %s261 = sphi 0, %s263
      %s264 = sphi 0, %s261
      %s265 = sphi 0, %s264
      %s281 = sphi 0, %s265
      %s287 = sphi 0, %s289
      %s290 = sphi 0, %s287
      %s291 = sphi 0, %s290
      %s307 = sphi 0, %s291
      %s313 = sphi 0, %s315
      %s316 = sphi 0, %s313
      %s317 = sphi 0, %s316
      %s333 = sphi 0, %s317
      %s337 = sphi 0, %s337
      %s339 = sphi 0, %s337
      %s340 = sphi 0, %s339
      %s354 = sphi 0, %s340
      %s358 = sphi 0, %s358
      %s360 = sphi 0, %s358
      %s361 = sphi 0, %s360
      %s375 = sphi 0, %s361
    $region4: #{loss_path.3} parent=1 // loop_header_branch
      %30 = sbr.rel (%p28) target = $region8
    $region5: #{loss_path.3} parent=1 // loop_body
      %s32 = ssub.s32 %s27, 1
      %s33 = ssub.s32 %s27, 2
      %s34 = sadd.s32 %s27, 1
      %s36 = sadd.s32 %s35, 1
      %p39 = scmp.eq.s32.totalorder %s27, 1
      %p40 = scmp.ne.s32.totalorder %s35, %s37
      %p41 = scmp.eq.s32.totalorder %s27, 0
      %p42 = por %p40, %p41
      %p43 = scmp.ne.s32.totalorder %s35, %s37
      %p44 = scmp.eq.s32.totalorder %s32, 1
      %p45 = por %p43, %p44
      %p46 = scmp.ne.s32.totalorder %s37, %s38
      %p47 = scmp.eq.s32.totalorder %s32, 0
      %p48 = por %p46, %p47
      %p49 = scmp.ne.s32.totalorder %s37, %s38
      %p50 = scmp.eq.s32.totalorder %s33, 1
      %p51 = por %p49, %p50
      %p53 = scmp.ne.s32.totalorder %s38, %s52
      %p54 = scmp.eq.s32.totalorder %s33, 0
      %p55 = por %p53, %p54
      %s57 = sadd.s32 %s56, 1
      %p60 = scmp.eq.s32.totalorder %s27, 1
      %p61 = scmp.ne.s32.totalorder %s56, %s58
      %p62 = scmp.eq.s32.totalorder %s27, 0
      %p63 = por %p61, %p62
      %p64 = scmp.ne.s32.totalorder %s56, %s58
      %p65 = scmp.eq.s32.totalorder %s32, 1
      %p66 = por %p64, %p65
      %p67 = scmp.ne.s32.totalorder %s58, %s59
      %p68 = scmp.eq.s32.totalorder %s32, 0
      %p69 = por %p67, %p68
      %p70 = scmp.ne.s32.totalorder %s58, %s59
      %p71 = scmp.eq.s32.totalorder %s33, 1
      %p72 = por %p70, %p71
      %p74 = scmp.ne.s32.totalorder %s59, %s73
      %p75 = scmp.eq.s32.totalorder %s33, 0
      %p76 = por %p74, %p75
      %s77 = ssub.s32 %s27, %s34
      %p78 = scmp.eq.s32.totalorder %s77, 0
      %s80 = sadd.s32 %s79, 1
      %s81 = scalar_select %p78, %s79, %s80
      %p84 = pneg %p78
      %p85 = scmp.eq.s32.totalorder %s27, 1
      %p86 = por %p84, %p85
      %p87 = scmp.ne.s32.totalorder %s79, %s82
      %p88 = scmp.eq.s32.totalorder %s27, 0
      %p89 = por %p87, %p88
      %p90 = scmp.ne.s32.totalorder %s79, %s82
      %p91 = scmp.eq.s32.totalorder %s32, 1
      %p92 = por %p90, %p91
      %p93 = scmp.ne.s32.totalorder %s82, %s83
      %p94 = scmp.eq.s32.totalorder %s32, 0
      %p95 = por %p93, %p94
      %p96 = scmp.ne.s32.totalorder %s82, %s83
      %p97 = scmp.eq.s32.totalorder %s33, 1
      %p98 = por %p96, %p97
      %p100 = scmp.ne.s32.totalorder %s83, %s99
      %p101 = scmp.eq.s32.totalorder %s33, 0
      %p102 = por %p100, %p101
      %s103 = ssub.s32 %s27, %s34
      %p104 = scmp.eq.s32.totalorder %s103, 0
      %s106 = sadd.s32 %s105, 1
      %s107 = scalar_select %p104, %s105, %s106
      %p110 = pneg %p104
      %p111 = scmp.eq.s32.totalorder %s27, 1
      %p112 = por %p110, %p111
      %p113 = scmp.ne.s32.totalorder %s105, %s108
      %p114 = scmp.eq.s32.totalorder %s27, 0
      %p115 = por %p113, %p114
      %p116 = scmp.ne.s32.totalorder %s105, %s108
      %p117 = scmp.eq.s32.totalorder %s32, 1
      %p118 = por %p116, %p117
      %p119 = scmp.ne.s32.totalorder %s108, %s109
      %p120 = scmp.eq.s32.totalorder %s32, 0
      %p121 = por %p119, %p120
      %p122 = scmp.ne.s32.totalorder %s108, %s109
      %p123 = scmp.eq.s32.totalorder %s33, 1
      %p124 = por %p122, %p123
      %p126 = scmp.ne.s32.totalorder %s109, %s125
      %p127 = scmp.eq.s32.totalorder %s33, 0
      %p128 = por %p126, %p127
      %s129 = ssub.s32 %s27, %s34
      %p130 = scmp.eq.s32.totalorder %s129, 0
      %s132 = sadd.s32 %s131, 1
      %s133 = scalar_select %p130, %s131, %s132
      %p136 = pneg %p130
      %p137 = scmp.eq.s32.totalorder %s27, 1
      %p138 = por %p136, %p137
      %p139 = scmp.ne.s32.totalorder %s131, %s134
      %p140 = scmp.eq.s32.totalorder %s27, 0
      %p141 = por %p139, %p140
      %p142 = scmp.ne.s32.totalorder %s131, %s134
      %p143 = scmp.eq.s32.totalorder %s32, 1
      %p144 = por %p142, %p143
      %p145 = scmp.ne.s32.totalorder %s134, %s135
      %p146 = scmp.eq.s32.totalorder %s32, 0
      %p147 = por %p145, %p146
      %p148 = scmp.ne.s32.totalorder %s134, %s135
      %p149 = scmp.eq.s32.totalorder %s33, 1
      %p150 = por %p148, %p149
      %p152 = scmp.ne.s32.totalorder %s135, %s151
      %p153 = scmp.eq.s32.totalorder %s33, 0
      %p154 = por %p152, %p153
      %s155 = ssub.s32 %s27, %s34
      %p156 = scmp.eq.s32.totalorder %s155, 0
      %s158 = sadd.s32 %s157, 1
      %s159 = scalar_select %p156, %s157, %s158
      %p162 = pneg %p156
      %p163 = scmp.eq.s32.totalorder %s27, 1
      %p164 = por %p162, %p163
      %p165 = scmp.ne.s32.totalorder %s157, %s160
      %p166 = scmp.eq.s32.totalorder %s27, 0
      %p167 = por %p165, %p166
      %p168 = scmp.ne.s32.totalorder %s157, %s160
      %p169 = scmp.eq.s32.totalorder %s32, 1
      %p170 = por %p168, %p169
      %p171 = scmp.ne.s32.totalorder %s160, %s161
      %p172 = scmp.eq.s32.totalorder %s32, 0
      %p173 = por %p171, %p172
      %p174 = scmp.ne.s32.totalorder %s160, %s161
      %p175 = scmp.eq.s32.totalorder %s33, 1
      %p176 = por %p174, %p175
      %p178 = scmp.ne.s32.totalorder %s161, %s177
      %p179 = scmp.eq.s32.totalorder %s33, 0
      %p180 = por %p178, %p179
      %s181 = ssub.s32 %s27, %s34
      %p182 = scmp.eq.s32.totalorder %s181, 0
      %s184 = sadd.s32 %s183, 1
      %s185 = scalar_select %p182, %s183, %s184
      %p188 = pneg %p182
      %p189 = scmp.eq.s32.totalorder %s27, 1
      %p190 = por %p188, %p189
      %p191 = scmp.ne.s32.totalorder %s183, %s186
      %p192 = scmp.eq.s32.totalorder %s27, 0
      %p193 = por %p191, %p192
      %p194 = scmp.ne.s32.totalorder %s183, %s186
      %p195 = scmp.eq.s32.totalorder %s32, 1
      %p196 = por %p194, %p195
      %p197 = scmp.ne.s32.totalorder %s186, %s187
      %p198 = scmp.eq.s32.totalorder %s32, 0
      %p199 = por %p197, %p198
      %p200 = scmp.ne.s32.totalorder %s186, %s187
      %p201 = scmp.eq.s32.totalorder %s33, 1
      %p202 = por %p200, %p201
      %p204 = scmp.ne.s32.totalorder %s187, %s203
      %p205 = scmp.eq.s32.totalorder %s33, 0
      %p206 = por %p204, %p205
      %s207 = ssub.s32 %s27, %s34
      %p208 = scmp.eq.s32.totalorder %s207, 0
      %s210 = sadd.s32 %s209, 1
      %s211 = scalar_select %p208, %s209, %s210
      %p214 = pneg %p208
      %p215 = scmp.eq.s32.totalorder %s27, 1
      %p216 = por %p214, %p215
      %p217 = scmp.ne.s32.totalorder %s209, %s212
      %p218 = scmp.eq.s32.totalorder %s27, 0
      %p219 = por %p217, %p218
      %p220 = scmp.ne.s32.totalorder %s209, %s212
      %p221 = scmp.eq.s32.totalorder %s32, 1
      %p222 = por %p220, %p221
      %p223 = scmp.ne.s32.totalorder %s212, %s213
      %p224 = scmp.eq.s32.totalorder %s32, 0
      %p225 = por %p223, %p224
      %p226 = scmp.ne.s32.totalorder %s212, %s213
      %p227 = scmp.eq.s32.totalorder %s33, 1
      %p228 = por %p226, %p227
      %p230 = scmp.ne.s32.totalorder %s213, %s229
      %p231 = scmp.eq.s32.totalorder %s33, 0
      %p232 = por %p230, %p231
      %s233 = ssub.s32 %s27, %s34
      %p234 = scmp.eq.s32.totalorder %s233, 0
      %s236 = sadd.s32 %s235, 1
      %s237 = scalar_select %p234, %s235, %s236
      %p240 = pneg %p234
      %p241 = scmp.eq.s32.totalorder %s27, 1
      %p242 = por %p240, %p241
      %p243 = scmp.ne.s32.totalorder %s235, %s238
      %p244 = scmp.eq.s32.totalorder %s27, 0
      %p245 = por %p243, %p244
      %p246 = scmp.ne.s32.totalorder %s235, %s238
      %p247 = scmp.eq.s32.totalorder %s32, 1
      %p248 = por %p246, %p247
      %p249 = scmp.ne.s32.totalorder %s238, %s239
      %p250 = scmp.eq.s32.totalorder %s32, 0
      %p251 = por %p249, %p250
      %p252 = scmp.ne.s32.totalorder %s238, %s239
      %p253 = scmp.eq.s32.totalorder %s33, 1
      %p254 = por %p252, %p253
      %p256 = scmp.ne.s32.totalorder %s239, %s255
      %p257 = scmp.eq.s32.totalorder %s33, 0
      %p258 = por %p256, %p257
      %s259 = ssub.s32 %s27, %s34
      %p260 = scmp.eq.s32.totalorder %s259, 0
      %s262 = sadd.s32 %s261, 1
      %s263 = scalar_select %p260, %s261, %s262
      %p266 = pneg %p260
      %p267 = scmp.eq.s32.totalorder %s27, 1
      %p268 = por %p266, %p267
      %p269 = scmp.ne.s32.totalorder %s261, %s264
      %p270 = scmp.eq.s32.totalorder %s27, 0
      %p271 = por %p269, %p270
      %p272 = scmp.ne.s32.totalorder %s261, %s264
      %p273 = scmp.eq.s32.totalorder %s32, 1
      %p274 = por %p272, %p273
      %p275 = scmp.ne.s32.totalorder %s264, %s265
      %p276 = scmp.eq.s32.totalorder %s32, 0
      %p277 = por %p275, %p276
      %p278 = scmp.ne.s32.totalorder %s264, %s265
      %p279 = scmp.eq.s32.totalorder %s33, 1
      %p280 = por %p278, %p279
      %p282 = scmp.ne.s32.totalorder %s265, %s281
      %p283 = scmp.eq.s32.totalorder %s33, 0
      %p284 = por %p282, %p283
      %s285 = ssub.s32 %s27, %s34
      %p286 = scmp.eq.s32.totalorder %s285, 0
      %s288 = sadd.s32 %s287, 1
      %s289 = scalar_select %p286, %s287, %s288
      %p292 = pneg %p286
      %p293 = scmp.eq.s32.totalorder %s27, 1
      %p294 = por %p292, %p293
      %p295 = scmp.ne.s32.totalorder %s287, %s290
      %p296 = scmp.eq.s32.totalorder %s27, 0
      %p297 = por %p295, %p296
      %p298 = scmp.ne.s32.totalorder %s287, %s290
      %p299 = scmp.eq.s32.totalorder %s32, 1
      %p300 = por %p298, %p299
      %p301 = scmp.ne.s32.totalorder %s290, %s291
      %p302 = scmp.eq.s32.totalorder %s32, 0
      %p303 = por %p301, %p302
      %p304 = scmp.ne.s32.totalorder %s290, %s291
      %p305 = scmp.eq.s32.totalorder %s33, 1
      %p306 = por %p304, %p305
      %p308 = scmp.ne.s32.totalorder %s291, %s307
      %p309 = scmp.eq.s32.totalorder %s33, 0
      %p310 = por %p308, %p309
      %s311 = ssub.s32 %s27, %s34
      %p312 = scmp.eq.s32.totalorder %s311, 0
      %s314 = sadd.s32 %s313, 1
      %s315 = scalar_select %p312, %s313, %s314
      %p318 = pneg %p312
      %p319 = scmp.eq.s32.totalorder %s27, 1
      %p320 = por %p318, %p319
      %p321 = scmp.ne.s32.totalorder %s313, %s316
      %p322 = scmp.eq.s32.totalorder %s27, 0
      %p323 = por %p321, %p322
      %p324 = scmp.ne.s32.totalorder %s313, %s316
      %p325 = scmp.eq.s32.totalorder %s32, 1
      %p326 = por %p324, %p325
      %p327 = scmp.ne.s32.totalorder %s316, %s317
      %p328 = scmp.eq.s32.totalorder %s32, 0
      %p329 = por %p327, %p328
      %p330 = scmp.ne.s32.totalorder %s316, %s317
      %p331 = scmp.eq.s32.totalorder %s33, 1
      %p332 = por %p330, %p331
      %p334 = scmp.ne.s32.totalorder %s317, %s333
      %p335 = scmp.eq.s32.totalorder %s33, 0
      %p336 = por %p334, %p335
      %s338 = sadd.s32 %s337, 1
      %p341 = scmp.eq.s32.totalorder %s27, 1
      %p342 = scmp.ne.s32.totalorder %s337, %s339
      %p343 = scmp.eq.s32.totalorder %s27, 0
      %p344 = por %p342, %p343
      %p345 = scmp.ne.s32.totalorder %s337, %s339
      %p346 = scmp.eq.s32.totalorder %s32, 1
      %p347 = por %p345, %p346
      %p348 = scmp.ne.s32.totalorder %s339, %s340
      %p349 = scmp.eq.s32.totalorder %s32, 0
      %p350 = por %p348, %p349
      %p351 = scmp.ne.s32.totalorder %s339, %s340
      %p352 = scmp.eq.s32.totalorder %s33, 1
      %p353 = por %p351, %p352
      %p355 = scmp.ne.s32.totalorder %s340, %s354
      %p356 = scmp.eq.s32.totalorder %s33, 0
      %p357 = por %p355, %p356
      %s359 = sadd.s32 %s358, 1
      %p362 = scmp.eq.s32.totalorder %s27, 1
      %p363 = scmp.ne.s32.totalorder %s358, %s360
      %p364 = scmp.eq.s32.totalorder %s27, 0
      %p365 = por %p363, %p364
      %p366 = scmp.ne.s32.totalorder %s358, %s360
      %p367 = scmp.eq.s32.totalorder %s32, 1
      %p368 = por %p366, %p367
      %p369 = scmp.ne.s32.totalorder %s360, %s361
      %p370 = scmp.eq.s32.totalorder %s32, 0
      %p371 = por %p369, %p370
      %p372 = scmp.ne.s32.totalorder %s360, %s361
      %p373 = scmp.eq.s32.totalorder %s33, 1
      %p374 = por %p372, %p373
      %p376 = scmp.ne.s32.totalorder %s361, %s375
      %p377 = scmp.eq.s32.totalorder %s33, 0
      %p378 = por %p376, %p377
      %p379 = scmp.le.s32.totalorder 1, %s27
      %p380 = scmp.lt.s32.totalorder %s27, 3
      %p381 = pnand %p379, %p380
      %p382 = pneg %p381
      // Predicated region
      $region9: #{loss_path.3} parent=5 // pred_check
        _
      $region10: #{loss_path.3} parent=5 // pred_check_branch
        %384 = sbr.rel (%p381) target = $region12
      $region11: #{loss_path.3} parent=5 // pred_region
        %s385 = ssub.s32 %s27, 1
        // Predicated region
        $region13: #{loss_path.3} parent=11 // pred_check
          %p386 = pneg %p48
        $region14: #{loss_path.3} parent=11 // pred_check_branch
          %388 = sbr.rel (%p386) target = $region16
        $region15: #{loss_path.3} parent=11 // pred_region
          _
        $region16: #{loss_path.3} parent=11 // pred_fallthru
          _
        // Predicated region
        $region17: #{loss_path.3} parent=11 // pred_check
          %p389 = pneg %p69
        $region18: #{loss_path.3} parent=11 // pred_check_branch
          %391 = sbr.rel (%p389) target = $region20
        $region19: #{loss_path.3} parent=11 // pred_region
          _
        $region20: #{loss_path.3} parent=11 // pred_fallthru
          _
      $region12: #{loss_path.3} parent=5 // pred_fallthru
        _
      %p392 = scmp.lt.s32.totalorder %s27, 2
      // Predicated region
      $region21: #{loss_path.3} parent=5 // pred_check
        %p393 = pneg %p392
      $region22: #{loss_path.3} parent=5 // pred_check_branch
        %395 = sbr.rel (%p393) target = $region24
      $region23: #{loss_path.3} parent=5 // pred_region
        // Predicated region
        $region25: #{loss_path.3} parent=23 // pred_check
          %p396 = pneg %p89
        $region26: #{loss_path.3} parent=23 // pred_check_branch
          %398 = sbr.rel (%p396) target = $region28
        $region27: #{loss_path.3} parent=23 // pred_region
          %p399 = scmp.lt.s32.totalorder %s27, 1
          %s400 = scalar_select %p399, %s27, 1
          %s401 = smul.addr %s400, 48
          %s402 = smul.addr %s401, 4
          %s403 = scalar_lea.vmem %s2, %s402
        $region28: #{loss_path.3} parent=23 // pred_fallthru
          _
        // Predicated region
        $region29: #{loss_path.3} parent=23 // pred_check
          %p404 = pneg %p115
        $region30: #{loss_path.3} parent=23 // pred_check_branch
          %406 = sbr.rel (%p404) target = $region32
        $region31: #{loss_path.3} parent=23 // pred_region
          %p407 = scmp.lt.s32.totalorder %s27, 1
          %s408 = scalar_select %p407, %s27, 1
          %s409 = smul.addr %s408, 3
          %s410 = scalar_lea.vmem %s3, %s409
        $region32: #{loss_path.3} parent=23 // pred_fallthru
          _
        // Predicated region
        $region33: #{loss_path.3} parent=23 // pred_check
          %p411 = pneg %p141
        $region34: #{loss_path.3} parent=23 // pred_check_branch
          %413 = sbr.rel (%p411) target = $region36
        $region35: #{loss_path.3} parent=23 // pred_region
          %p414 = scmp.lt.s32.totalorder %s27, 1
          %s415 = scalar_select %p414, %s27, 1
          %s416 = smul.addr %s415, 16
          %s417 = smul.addr %s416, 4
          %s418 = scalar_lea.vmem %s4, %s417
        $region36: #{loss_path.3} parent=23 // pred_fallthru
          _
        // Predicated region
        $region37: #{loss_path.3} parent=23 // pred_check
          %p419 = pneg %p167
        $region38: #{loss_path.3} parent=23 // pred_check_branch
          %421 = sbr.rel (%p419) target = $region40
        $region39: #{loss_path.3} parent=23 // pred_region
          %p422 = scmp.lt.s32.totalorder %s27, 1
          %s423 = scalar_select %p422, %s27, 1
          %s424 = scalar_lea.vmem %s5, %s423
        $region40: #{loss_path.3} parent=23 // pred_fallthru
          _
        // Predicated region
        $region41: #{loss_path.3} parent=23 // pred_check
          %p425 = pneg %p193
        $region42: #{loss_path.3} parent=23 // pred_check_branch
          %427 = sbr.rel (%p425) target = $region44
        $region43: #{loss_path.3} parent=23 // pred_region
          %p428 = scmp.lt.s32.totalorder %s27, 1
          %s429 = scalar_select %p428, %s27, 1
          %s430 = smul.addr %s429, 2
          %s431 = scalar_lea.vmem %s6, %s430
        $region44: #{loss_path.3} parent=23 // pred_fallthru
          _
        // Predicated region
        $region45: #{loss_path.3} parent=23 // pred_check
          %p432 = pneg %p219
        $region46: #{loss_path.3} parent=23 // pred_check_branch
          %434 = sbr.rel (%p432) target = $region48
        $region47: #{loss_path.3} parent=23 // pred_region
          %s435 = sand.u32 %s209, 1
          %s436 = scalar_lea.sflag [#allocation3], %s435
          %s437 = sand.u32 %s209, 1
          %s438 = smul.addr %s437, 128
          %s439 = scalar_lea.vmem [#allocation2], %s438
          %441 = vsyncadd %s436, 0
          %s442 = smul.addr %s27, 32
          %s443 = smul.addr %s442, 4
          %s444 = scalar_lea.hbm %s7, %s443
          %s445 = sshll.u32 %s444, 4
          %s446 = int_to_ptr.hbm [resolvable:$true] %s445
          %s447 = sshll.u32 %s439, 4
          %s448 = int_to_ptr.vmem [resolvable:$true] %s447
          %453 = dma.hbm_to_vmem [thread:$0]  %s446, 2048, %s448, %s436, 128, 128, 8
        $region48: #{loss_path.3} parent=23 // pred_fallthru
          _
        // Predicated region
        $region49: #{loss_path.3} parent=23 // pred_check
          %p454 = pneg %p245
        $region50: #{loss_path.3} parent=23 // pred_check_branch
          %456 = sbr.rel (%p454) target = $region52
        $region51: #{loss_path.3} parent=23 // pred_region
          %p457 = scmp.lt.s32.totalorder %s27, 1
          %s458 = scalar_select %p457, %s27, 1
          %s459 = smul.addr %s458, 2
          %s460 = scalar_lea.vmem %s8, %s459
        $region52: #{loss_path.3} parent=23 // pred_fallthru
          _
        // Predicated region
        $region53: #{loss_path.3} parent=23 // pred_check
          %p461 = pneg %p271
        $region54: #{loss_path.3} parent=23 // pred_check_branch
          %463 = sbr.rel (%p461) target = $region56
        $region55: #{loss_path.3} parent=23 // pred_region
          %s464 = sand.u32 %s261, 1
          %s465 = scalar_lea.sflag [#allocation6], %s464
          %s466 = sand.u32 %s261, 1
          %s467 = smul.addr %s466, 128
          %s468 = scalar_lea.vmem [#allocation5], %s467
          %470 = vsyncadd %s465, 0
          %s471 = smul.addr %s27, 32
          %s472 = smul.addr %s471, 4
          %s473 = scalar_lea.hbm %s9, %s472
          %s474 = sshll.u32 %s473, 4
          %s475 = int_to_ptr.hbm [resolvable:$true] %s474
          %s476 = sshll.u32 %s468, 4
          %s477 = int_to_ptr.vmem [resolvable:$true] %s476
          %482 = dma.hbm_to_vmem [thread:$0]  %s475, 2048, %s477, %s465, 64, 64, 4
        $region56: #{loss_path.3} parent=23 // pred_fallthru
          _
        // Predicated region
        $region57: #{loss_path.3} parent=23 // pred_check
          %p483 = pneg %p297
        $region58: #{loss_path.3} parent=23 // pred_check_branch
          %485 = sbr.rel (%p483) target = $region60
        $region59: #{loss_path.3} parent=23 // pred_region
          %p486 = scmp.lt.s32.totalorder %s27, 1
          %s487 = scalar_select %p486, %s27, 1
          %s488 = scalar_lea.vmem %s10, %s487
        $region60: #{loss_path.3} parent=23 // pred_fallthru
          _
        // Predicated region
        $region61: #{loss_path.3} parent=23 // pred_check
          %p489 = pneg %p323
        $region62: #{loss_path.3} parent=23 // pred_check_branch
          %491 = sbr.rel (%p489) target = $region64
        $region63: #{loss_path.3} parent=23 // pred_region
          %p492 = scmp.lt.s32.totalorder %s27, 1
          %s493 = scalar_select %p492, %s27, 1
          %s494 = smul.addr %s493, 2
          %s495 = scalar_lea.vmem %s11, %s494
        $region64: #{loss_path.3} parent=23 // pred_fallthru
          _
      $region24: #{loss_path.3} parent=5 // pred_fallthru
        _
      %p496 = scmp.le.s32.totalorder 1, %s27
      %p497 = scmp.lt.s32.totalorder %s27, 3
      %p498 = pnand %p496, %p497
      %p499 = pneg %p498
      // Predicated region
      $region65: #{loss_path.3} parent=5 // pred_check
        _
      $region66: #{loss_path.3} parent=5 // pred_check_branch
        %501 = sbr.rel (%p498) target = $region68
      $region67: #{loss_path.3} parent=5 // pred_region
        %s502 = ssub.s32 %s27, 1
        %s503 = sand.u32 %s212, 1
        %s504 = scalar_lea.sflag [#allocation3], %s503
        %s505 = sand.u32 %s212, 1
        %s506 = smul.addr %s505, 128
        %s507 = scalar_lea.vmem [#allocation2], %s506
        // Predicated region
        $region69: #{loss_path.3} parent=67 // pred_check
          %p508 = pneg %p225
        $region70: #{loss_path.3} parent=67 // pred_check_branch
          %510 = sbr.rel (%p508) target = $region72
        $region71: #{loss_path.3} parent=67 // pred_region
          %512 = dma.done %s504, 2048
        $region72: #{loss_path.3} parent=67 // pred_fallthru
          _
        %s513 = sand.u32 %s264, 1
        %s514 = scalar_lea.sflag [#allocation6], %s513
        %s515 = sand.u32 %s264, 1
        %s516 = smul.addr %s515, 128
        %s517 = scalar_lea.vmem [#allocation5], %s516
        // Predicated region
        $region73: #{loss_path.3} parent=67 // pred_check
          %p518 = pneg %p277
        $region74: #{loss_path.3} parent=67 // pred_check_branch
          %520 = sbr.rel (%p518) target = $region76
        $region75: #{loss_path.3} parent=67 // pred_region
          %522 = dma.done %s514, 2048
        $region76: #{loss_path.3} parent=67 // pred_fallthru
          _
        %p523 = pneg %p48
        %p524 = pneg %p45
        %p525 = pneg %p69
        %p526 = pneg %p66
        %p527 = scmp.lt.s32.totalorder %s32, 1
        %s528 = scalar_select %p527, %s32, 1
        %s529 = smul.addr %s528, 48
        %s530 = smul.addr %s529, 4
        %s531 = scalar_lea.vmem %s2, %s530
        %p532 = pneg %p95
        %p533 = pneg %p92
        %p534 = scmp.lt.s32.totalorder %s32, 1
        %s535 = scalar_select %p534, %s32, 1
        %s536 = smul.addr %s535, 3
        %s537 = scalar_lea.vmem %s3, %s536
        %p538 = pneg %p121
        %p539 = pneg %p118
        %p540 = scmp.lt.s32.totalorder %s32, 1
        %s541 = scalar_select %p540, %s32, 1
        %s542 = smul.addr %s541, 16
        %s543 = smul.addr %s542, 4
        %s544 = scalar_lea.vmem %s4, %s543
        %p545 = pneg %p147
        %p546 = pneg %p144
        %p547 = scmp.lt.s32.totalorder %s32, 1
        %s548 = scalar_select %p547, %s32, 1
        %s549 = scalar_lea.vmem %s5, %s548
        %p550 = pneg %p173
        %p551 = pneg %p170
        %p552 = scmp.lt.s32.totalorder %s32, 1
        %s553 = scalar_select %p552, %s32, 1
        %s554 = smul.addr %s553, 2
        %s555 = scalar_lea.vmem %s6, %s554
        %p556 = pneg %p199
        %p557 = pneg %p196
        %s558 = sand.u32 %s212, 1
        %s559 = scalar_lea.sflag [#allocation3], %s558
        %s560 = sand.u32 %s212, 1
        %s561 = smul.addr %s560, 128
        %s562 = scalar_lea.vmem [#allocation2], %s561
        %p563 = pneg %p225
        %p564 = pneg %p222
        %p565 = scmp.lt.s32.totalorder %s32, 1
        %s566 = scalar_select %p565, %s32, 1
        %s567 = smul.addr %s566, 2
        %s568 = scalar_lea.vmem %s8, %s567
        %p569 = pneg %p251
        %p570 = pneg %p248
        %s571 = sand.u32 %s264, 1
        %s572 = scalar_lea.sflag [#allocation6], %s571
        %s573 = sand.u32 %s264, 1
        %s574 = smul.addr %s573, 128
        %s575 = scalar_lea.vmem [#allocation5], %s574
        %p576 = pneg %p277
        %p577 = pneg %p274
        %p578 = scmp.lt.s32.totalorder %s32, 1
        %s579 = scalar_select %p578, %s32, 1
        %s580 = scalar_lea.vmem %s10, %s579
        %p581 = pneg %p303
        %p582 = pneg %p300
        %p583 = scmp.lt.s32.totalorder %s32, 1
        %s584 = scalar_select %p583, %s32, 1
        %s585 = smul.addr %s584, 2
        %s586 = scalar_lea.vmem %s11, %s585
        %p587 = pneg %p329
        %p588 = pneg %p326
        %p589 = pneg %p350
        %p590 = pneg %p347
        %p591 = pneg %p371
        %p592 = pneg %p368
        %p593 = scmp.lt.s32.totalorder %s32, 1
        %s594 = scalar_select %p593, %s32, 1
        %s595 = smul.addr %s594, 48
        %s596 = smul.addr %s595, 4
        %s597 = scalar_lea.vmem %s2, %s596
        %p598 = scmp.lt.s32.totalorder %s32, 1
        %s599 = scalar_select %p598, %s32, 1
        %s600 = smul.addr %s599, 3
        %s601 = scalar_lea.vmem %s3, %s600
        %p602 = scmp.lt.s32.totalorder %s32, 1
        %s603 = scalar_select %p602, %s32, 1
        %s604 = smul.addr %s603, 16
        %s605 = smul.addr %s604, 4
        %s606 = scalar_lea.vmem %s4, %s605
        %p607 = scmp.lt.s32.totalorder %s32, 1
        %s608 = scalar_select %p607, %s32, 1
        %s609 = scalar_lea.vmem %s5, %s608
        %p610 = scmp.lt.s32.totalorder %s32, 1
        %s611 = scalar_select %p610, %s32, 1
        %s612 = smul.addr %s611, 2
        %s613 = scalar_lea.vmem %s6, %s612
        %p614 = scmp.lt.s32.totalorder %s32, 1
        %s615 = scalar_select %p614, %s32, 1
        %s616 = smul.addr %s615, 2
        %s617 = scalar_lea.vmem %s8, %s616
        %p618 = scmp.lt.s32.totalorder %s32, 1
        %s619 = scalar_select %p618, %s32, 1
        %s620 = scalar_lea.vmem %s10, %s619
        %p621 = scmp.lt.s32.totalorder %s32, 1
        %s622 = scalar_select %p621, %s32, 1
        %s623 = smul.addr %s622, 2
        %s624 = scalar_lea.vmem %s11, %s623
        %p626 = scmp.eq.s32.totalorder %s32, 0
        // Predicated region
        $region77: #{loss_path.3} parent=67 // pred_check
          %p627 = pneg %p626
        $region78: #{loss_path.3} parent=67 // pred_check_branch
          %629 = sbr.rel (%p627) target = $region80
        $region79: #{loss_path.3} parent=67 // pred_region
          %v630 = vld [vmem:[%s0] sm:$0xff]
          %v631 = vld [vmem:[%s0 + $0x8] sm:$0xff]
          %v632 = vld [vmem:[%s0 + $0x10] sm:$0xff]
          %v633 = vld [vmem:[%s0 + $0x18] sm:$0xff]
          %634 = vst [vmem:[#allocation7] sm:$0xff] %v630
          %635 = vst [vmem:[#allocation7 + $0x8] sm:$0xff] %v631
          %636 = vst [vmem:[#allocation7 + $0x10] sm:$0xff] %v632
          %637 = vst [vmem:[#allocation7 + $0x18] sm:$0xff] %v633
        $region80: #{loss_path.3} parent=67 // pred_fallthru
          _
        %v638 = vld [vmem:[#allocation7] sm:$0xff]
        %v639 = vld [vmem:[#allocation7 + $0x8] sm:$0xff]
        %v640 = vld [vmem:[#allocation7 + $0x10] sm:$0xff]
        %v641 = vld [vmem:[#allocation7 + $0x18] sm:$0xff]
        %v642 = vpack.c.bf16 %v639, %v638
        %v643 = vpack.c.bf16 %v641, %v640
        %v644 = vld [vmem:[%s597] sm:$0xff]
        %v645 = vld [vmem:[%s597 + $0x8] sm:$0xf]
        %v646 = vld [vmem:[%s597 + $0xc] sm:$0xff]
        %v647 = vld [vmem:[%s597 + $0x14] sm:$0xf]
        %v648 = vld [vmem:[%s597 + $0x18] sm:$0xff]
        %v649 = vld [vmem:[%s597 + $0x20] sm:$0xf]
        %v650 = vld [vmem:[%s597 + $0x24] sm:$0xff]
        %v651 = vld [vmem:[%s597 + $0x2c] sm:$0xf]
        %v652 = vld [vmem:[%s597 + $0x30] sm:$0xff]
        %v653 = vld [vmem:[%s597 + $0x38] sm:$0xf]
        %v654 = vld [vmem:[%s597 + $0x3c] sm:$0xff]
        %v655 = vld [vmem:[%s597 + $0x44] sm:$0xf]
        %v656 = vld [vmem:[%s597 + $0x48] sm:$0xff]
        %v657 = vld [vmem:[%s597 + $0x50] sm:$0xf]
        %v658 = vld [vmem:[%s597 + $0x54] sm:$0xff]
        %v659 = vld [vmem:[%s597 + $0x5c] sm:$0xf]
        %v660 = vld [vmem:[%s597 + $0x60] sm:$0xff]
        %v661 = vld [vmem:[%s597 + $0x68] sm:$0xf]
        %v662 = vld [vmem:[%s597 + $0x6c] sm:$0xff]
        %v663 = vld [vmem:[%s597 + $0x74] sm:$0xf]
        %v664 = vld [vmem:[%s597 + $0x78] sm:$0xff]
        %v665 = vld [vmem:[%s597 + $0x80] sm:$0xf]
        %v666 = vld [vmem:[%s597 + $0x84] sm:$0xff]
        %v667 = vld [vmem:[%s597 + $0x8c] sm:$0xf]
        %v668 = vld [vmem:[%s597 + $0x90] sm:$0xff]
        %v669 = vld [vmem:[%s597 + $0x98] sm:$0xf]
        %v670 = vld [vmem:[%s597 + $0x9c] sm:$0xff]
        %v671 = vld [vmem:[%s597 + $0xa4] sm:$0xf]
        %v672 = vld [vmem:[%s597 + $0xa8] sm:$0xff]
        %v673 = vld [vmem:[%s597 + $0xb0] sm:$0xf]
        %v674 = vld [vmem:[%s597 + $0xb4] sm:$0xff]
        %v675 = vld [vmem:[%s597 + $0xbc] sm:$0xf]
        %v676 = vld [vmem:[%s601] sm:$0x7]
        %v678 = vperm.slane %v676, 0
        %v679 = vperm.slane %v676, 1
        %v680 = vperm.slane %v676, 2
        %v716 = vunpack.c.l.b16 %v644
        %v717 = vunpack.c.h.b16 %v644
        %v718 = vunpack.c.l.b16 %v645
        %v719 = vunpack.c.l.b16 %v646
        %v720 = vunpack.c.h.b16 %v646
        %v721 = vunpack.c.l.b16 %v647
        %v722 = vunpack.c.l.b16 %v648
        %v723 = vunpack.c.h.b16 %v648
        %v724 = vunpack.c.l.b16 %v649
        %v725 = vunpack.c.l.b16 %v650
        %v726 = vunpack.c.h.b16 %v650
        %v727 = vunpack.c.l.b16 %v651
        %v728 = vunpack.c.l.b16 %v652
        %v729 = vunpack.c.h.b16 %v652
        %v730 = vunpack.c.l.b16 %v653
        %v731 = vunpack.c.l.b16 %v654
        %v732 = vunpack.c.h.b16 %v654
        %v733 = vunpack.c.l.b16 %v655
        %v734 = vunpack.c.l.b16 %v656
        %v735 = vunpack.c.h.b16 %v656
        %v736 = vunpack.c.l.b16 %v657
        %v737 = vunpack.c.l.b16 %v658
        %v738 = vunpack.c.h.b16 %v658
        %v739 = vunpack.c.l.b16 %v659
        %v740 = vunpack.c.l.b16 %v660
        %v741 = vunpack.c.h.b16 %v660
        %v742 = vunpack.c.l.b16 %v661
        %v743 = vunpack.c.l.b16 %v662
        %v744 = vunpack.c.h.b16 %v662
        %v745 = vunpack.c.l.b16 %v663
        %v746 = vunpack.c.l.b16 %v664
        %v747 = vunpack.c.h.b16 %v664
        %v748 = vunpack.c.l.b16 %v665
        %v749 = vunpack.c.l.b16 %v666
        %v750 = vunpack.c.h.b16 %v666
        %v751 = vunpack.c.l.b16 %v667
        %v752 = vunpack.c.l.b16 %v668
        %v753 = vunpack.c.h.b16 %v668
        %v754 = vunpack.c.l.b16 %v669
        %v755 = vunpack.c.l.b16 %v670
        %v756 = vunpack.c.h.b16 %v670
        %v757 = vunpack.c.l.b16 %v671
        %v758 = vunpack.c.l.b16 %v672
        %v759 = vunpack.c.h.b16 %v672
        %v760 = vunpack.c.l.b16 %v673
        %v761 = vunpack.c.l.b16 %v674
        %v762 = vunpack.c.h.b16 %v674
        %v763 = vunpack.c.l.b16 %v675
        %v764 = vpack.c.b16 %v719, %v716
        %v765 = vpack.c.b16 %v720, %v717
        %v766 = vpack.c.b16 %v721, %v718
        %v767 = vpack.c.b16 %v725, %v722
        %v768 = vpack.c.b16 %v726, %v723
        %v769 = vpack.c.b16 %v727, %v724
        %v770 = vpack.c.b16 %v731, %v728
        %v771 = vpack.c.b16 %v732, %v729
        %v772 = vpack.c.b16 %v733, %v730
        %v773 = vpack.c.b16 %v737, %v734
        %v774 = vpack.c.b16 %v738, %v735
        %v775 = vpack.c.b16 %v739, %v736
        %v776 = vpack.c.b16 %v743, %v740
        %v777 = vpack.c.b16 %v744, %v741
        %v778 = vpack.c.b16 %v745, %v742
        %v779 = vpack.c.b16 %v749, %v746
        %v780 = vpack.c.b16 %v750, %v747
        %v781 = vpack.c.b16 %v751, %v748
        %v782 = vpack.c.b16 %v755, %v752
        %v783 = vpack.c.b16 %v756, %v753
        %v784 = vpack.c.b16 %v757, %v754
        %v785 = vpack.c.b16 %v761, %v758
        %v786 = vpack.c.b16 %v762, %v759
        %v787 = vpack.c.b16 %v763, %v760
        %812 = vmatpush.bf16.msra.mxu0 %v785
        %813 = vmatpush.bf16.msra.mxu0 %v782
        %814 = vmatpush.bf16.msra.mxu0 %v779
        %815 = vmatpush.bf16.msra.mxu0 %v776
        %816 = vmatpush.bf16.msra.mxu0 %v773
        %817 = vmatpush.bf16.msra.mxu0 %v770
        %818 = vmatpush.bf16.msra.mxu0 %v767
        %819 = vmatpush.bf16.msra.mxu0 %v764
        %820 = vmatmul.bf16.gmra.mxu0 %v642
        %v821 = vpop.f32.mrf.mxu0
        %v822 = vadd.f32 %v678, %v821
        %v823 = vpop.f32.mrf.mxu0
        %v824 = vadd.f32 %v678, %v823
        %825 = vmatmul.bf16.gmra.mxu0 %v643
        %v826 = vpop.f32.mrf.mxu0
        %v827 = vadd.f32 %v678, %v826
        %v828 = vpop.f32.mrf.mxu0
        %v829 = vadd.f32 %v678, %v828
        %830 = vdwg.mxu0
        %831 = vmatpush.bf16.msra.mxu0 %v786
        %832 = vmatpush.bf16.msra.mxu0 %v783
        %833 = vmatpush.bf16.msra.mxu0 %v780
        %834 = vmatpush.bf16.msra.mxu0 %v777
        %835 = vmatpush.bf16.msra.mxu0 %v774
        %836 = vmatpush.bf16.msra.mxu0 %v771
        %837 = vmatpush.bf16.msra.mxu0 %v768
        %838 = vmatpush.bf16.msra.mxu0 %v765
        %839 = vmatmul.bf16.gmra.mxu0 %v642
        %v840 = vpop.f32.mrf.mxu0
        %v841 = vadd.f32 %v679, %v840
        %v842 = vpop.f32.mrf.mxu0
        %v843 = vadd.f32 %v679, %v842
        %844 = vmatmul.bf16.gmra.mxu0 %v643
        %v845 = vpop.f32.mrf.mxu0
        %v846 = vadd.f32 %v679, %v845
        %v847 = vpop.f32.mrf.mxu0
        %v848 = vadd.f32 %v679, %v847
        %849 = vdwg.mxu0
        %850 = vmatpush.bf16.msra.mxu0 %v787
        %851 = vmatpush.bf16.msra.mxu0 %v784
        %852 = vmatpush.bf16.msra.mxu0 %v781
        %853 = vmatpush.bf16.msra.mxu0 %v778
        %854 = vmatpush.bf16.msra.mxu0 %v775
        %855 = vmatpush.bf16.msra.mxu0 %v772
        %856 = vmatpush.bf16.msra.mxu0 %v769
        %857 = vmatpush.bf16.msra.mxu0 %v766
        %858 = vmatmul.bf16.gmra.mxu0 %v642
        %v859 = vpop.f32.mrf.mxu0
        %v860 = vadd.f32 %v680, %v859
        %v861 = vpop.f32.mrf.mxu0
        %v862 = vadd.f32 %v680, %v861
        %863 = vmatmul.bf16.gmra.mxu0 %v643
        %v864 = vpop.f32.mrf.mxu0
        %v865 = vadd.f32 %v680, %v864
        %v866 = vpop.f32.mrf.mxu0
        %v867 = vadd.f32 %v680, %v866
        %868 = vdwg.mxu0
        %v869 = vld [vmem:[%s1] sm:$0x1]
        %v870 = vld [vmem:[%s1 + $0x1] sm:$0x1]
        %v871 = vld [vmem:[%s606] sm:$0xf]
        %v872 = vld [vmem:[%s606 + $0x4] sm:$0xf]
        %v873 = vld [vmem:[%s606 + $0x8] sm:$0xf]
        %v874 = vld [vmem:[%s606 + $0xc] sm:$0xf]
        %v875 = vld [vmem:[%s606 + $0x10] sm:$0xf]
        %v876 = vld [vmem:[%s606 + $0x14] sm:$0xf]
        %v877 = vld [vmem:[%s606 + $0x18] sm:$0xf]
        %v878 = vld [vmem:[%s606 + $0x1c] sm:$0xf]
        %v879 = vld [vmem:[%s606 + $0x20] sm:$0xf]
        %v880 = vld [vmem:[%s606 + $0x24] sm:$0xf]
        %v881 = vld [vmem:[%s606 + $0x28] sm:$0xf]
        %v882 = vld [vmem:[%s606 + $0x2c] sm:$0xf]
        %v883 = vld [vmem:[%s606 + $0x30] sm:$0xf]
        %v884 = vld [vmem:[%s606 + $0x34] sm:$0xf]
        %v885 = vld [vmem:[%s606 + $0x38] sm:$0xf]
        %v886 = vld [vmem:[%s606 + $0x3c] sm:$0xf]
        %v887 = vpack.c.bf16 %v822, %v822
        %v888 = vpack.c.bf16 %v824, %v824
        %v889 = vpack.c.bf16 %v827, %v827
        %v890 = vpack.c.bf16 %v829, %v829
        %v891 = vpack.c.bf16 %v841, %v841
        %v892 = vpack.c.bf16 %v843, %v843
        %v893 = vpack.c.bf16 %v846, %v846
        %v894 = vpack.c.bf16 %v848, %v848
        %v895 = vpack.c.bf16 %v860, %v860
        %v896 = vpack.c.bf16 %v862, %v862
        %v897 = vpack.c.bf16 %v865, %v865
        %v898 = vpack.c.bf16 %v867, %v867
        %v901 = vunpack.c.l.b16 %v887
        %v902 = vunpack.c.l.b16 %v888
        %v903 = vpack.c.b16 %v902, %v901
        %v906 = vunpack.c.l.b16 %v891
        %v907 = vunpack.c.l.b16 %v892
        %v908 = vpack.c.b16 %v907, %v906
        %vm909 = vcmask 523264
        %v911 = vsel %vm909, %v903, 0
        %v914 = vsel %vm909, %v908, 0
        %916 = vmatpush.bf16.xpose.msra.mxu0 0
        %917 = vmatpush.bf16.xpose.msra.mxu0 0
        %918 = vmatpush.bf16.xpose.msra.mxu0 0
        %919 = vmatpush.bf16.xpose.msra.mxu0 0
        %920 = vmatpush.bf16.xpose.msra.mxu0 0
        %921 = vmatpush.bf16.xpose.msra.mxu0 0
        %922 = vmatpush.bf16.xpose.msra.mxu0 0
        %923 = vmatpush.bf16.xpose.msra.mxu0 %v914
        %924 = vmatmul.bf16.gmra.mxu0 %v911
        %v925 = vpop.f32.mrf.mxu0
        %v926 = vadd.f32 0.0, %v925
        %v927 = vpop.f32.mrf.mxu0
        %v928 = vadd.f32 0.0, %v927
        %929 = vdwg.mxu0
        %v932 = vunpack.c.l.b16 %v889
        %v933 = vunpack.c.l.b16 %v890
        %v934 = vpack.c.b16 %v933, %v932
        %v937 = vunpack.c.l.b16 %v893
        %v938 = vunpack.c.l.b16 %v894
        %v939 = vpack.c.b16 %v938, %v937
        %v941 = vsel %vm909, %v934, 0
        %v944 = vsel %vm909, %v939, 0
        %946 = vmatpush.bf16.xpose.msra.mxu0 0
        %947 = vmatpush.bf16.xpose.msra.mxu0 0
        %948 = vmatpush.bf16.xpose.msra.mxu0 0
        %949 = vmatpush.bf16.xpose.msra.mxu0 0
        %950 = vmatpush.bf16.xpose.msra.mxu0 0
        %951 = vmatpush.bf16.xpose.msra.mxu0 0
        %952 = vmatpush.bf16.xpose.msra.mxu0 0
        %953 = vmatpush.bf16.xpose.msra.mxu0 %v944
        %954 = vmatmul.bf16.gmra.mxu0 %v941
        %v955 = vpop.f32.mrf.mxu0
        %v956 = vadd.f32 0.0, %v955
        %v957 = vpop.f32.mrf.mxu0
        %v958 = vadd.f32 0.0, %v957
        %959 = vdwg.mxu0
        %v960 = vmul.f32 %v926, 0.125
        %v961 = vmul.f32 %v928, 0.125
        %v962 = vmul.f32 %v956, 0.125
        %v963 = vmul.f32 %v958, 0.125
        %v966 = vperm.slane %v869, 0
        %v967 = vperm.slane %v870, 0
        %v970 = vadd.f32 %v960, %v966
        %v971 = vadd.f32 %v961, %v966
        %v972 = vadd.f32 %v962, %v967
        %v973 = vadd.f32 %v963, %v967
        %vm974 = vcmask 130048
        %v975 = vsel %vm974, %v970, -inf
        %976 = vmax.xlane.f32.xlu0 %v975
        %v977 = vpop.xlane.xlu0 %976
        %v978 = vsel %vm974, %v971, -inf
        %979 = vmax.xlane.f32.xlu0 %v978
        %v980 = vpop.xlane.xlu0 %979
        %v981 = vsel %vm974, %v972, -inf
        %982 = vmax.xlane.f32.xlu0 %v981
        %v983 = vpop.xlane.xlu0 %982
        %v984 = vsel %vm974, %v973, -inf
        %985 = vmax.xlane.f32.xlu0 %v984
        %v986 = vpop.xlane.xlu0 %985
        %v987 = vsub.f32 %v970, %v977
        %v988 = vsub.f32 %v971, %v980
        %v989 = vsub.f32 %v972, %v983
        %v990 = vsub.f32 %v973, %v986
        %v991 = vmul.f32 %v987, 1.442695
        %v992 = vpow.pop %v991
        %v993 = vmul.f32 %v988, 1.442695
        %v994 = vpow.pop %v993
        %v995 = vmul.f32 %v989, 1.442695
        %v996 = vpow.pop %v995
        %v997 = vmul.f32 %v990, 1.442695
        %v998 = vpow.pop %v997
        %v999 = vsel %vm974, %v992, 0.0
        %1000 = vadd.xlane.f32.xlu0 %v999
        %v1001 = vpop.xlane.xlu0 %1000
        %v1002 = vsel %vm974, %v994, 0.0
        %1003 = vadd.xlane.f32.xlu0 %v1002
        %v1004 = vpop.xlane.xlu0 %1003
        %v1005 = vsel %vm974, %v996, 0.0
        %1006 = vadd.xlane.f32.xlu0 %v1005
        %v1007 = vpop.xlane.xlu0 %1006
        %v1008 = vsel %vm974, %v998, 0.0
        %1009 = vadd.xlane.f32.xlu0 %v1008
        %v1010 = vpop.xlane.xlu0 %1009
        %v1011 = vrcp.pop %v1001
        %v1012 = vrcp.pop %v1004
        %v1013 = vrcp.pop %v1007
        %v1014 = vrcp.pop %v1010
        %v1015 = vmul.f32 %v992, %v1011
        %v1016 = vmul.f32 %v994, %v1012
        %v1017 = vmul.f32 %v996, %v1013
        %v1018 = vmul.f32 %v998, %v1014
        %v1019 = vpack.c.bf16 %v1015, %v1015
        %v1020 = vpack.c.bf16 %v1016, %v1016
        %v1021 = vpack.c.bf16 %v1017, %v1017
        %v1022 = vpack.c.bf16 %v1018, %v1018
        %v1025 = vunpack.c.l.b16 %v1019
        %v1026 = vunpack.c.l.b16 %v1020
        %v1027 = vpack.c.b16 %v1026, %v1025
        %v1030 = vunpack.c.l.b16 %v895
        %v1031 = vunpack.c.l.b16 %v896
        %v1032 = vpack.c.b16 %v1031, %v1030
        %v1035 = vsel %vm974, %v1027, 0
        %1037 = vmatpush.bf16.msra.mxu0 0
        %1038 = vmatpush.bf16.msra.mxu0 0
        %1039 = vmatpush.bf16.msra.mxu0 0
        %1040 = vmatpush.bf16.msra.mxu0 0
        %1041 = vmatpush.bf16.msra.mxu0 0
        %1042 = vmatpush.bf16.msra.mxu0 0
        %1043 = vmatpush.bf16.msra.mxu0 0
        %1044 = vmatpush.bf16.msra.mxu0 %v1032
        %1045 = vmatmul.bf16.gmra.mxu0 %v1035
        %v1046 = vpop.f32.mrf.mxu0
        %v1047 = vadd.f32 0.0, %v1046
        %v1048 = vpop.f32.mrf.mxu0
        %v1049 = vadd.f32 0.0, %v1048
        %1050 = vdwg.mxu0
        %v1053 = vunpack.c.l.b16 %v1021
        %v1054 = vunpack.c.l.b16 %v1022
        %v1055 = vpack.c.b16 %v1054, %v1053
        %v1058 = vunpack.c.l.b16 %v897
        %v1059 = vunpack.c.l.b16 %v898
        %v1060 = vpack.c.b16 %v1059, %v1058
        %v1063 = vsel %vm974, %v1055, 0
        %1065 = vmatpush.bf16.msra.mxu0 0
        %1066 = vmatpush.bf16.msra.mxu0 0
        %1067 = vmatpush.bf16.msra.mxu0 0
        %1068 = vmatpush.bf16.msra.mxu0 0
        %1069 = vmatpush.bf16.msra.mxu0 0
        %1070 = vmatpush.bf16.msra.mxu0 0
        %1071 = vmatpush.bf16.msra.mxu0 0
        %1072 = vmatpush.bf16.msra.mxu0 %v1060
        %1073 = vmatmul.bf16.gmra.mxu0 %v1063
        %v1074 = vpop.f32.mrf.mxu0
        %v1075 = vadd.f32 0.0, %v1074
        %v1076 = vpop.f32.mrf.mxu0
        %v1077 = vadd.f32 0.0, %v1076
        %1078 = vdwg.mxu0
        %v1079 = vpack.c.bf16 %v1049, %v1047
        %v1080 = vpack.c.bf16 %v1077, %v1075
        %1081 = vrot.lane.b32.xlu0 %v903, 64
        %v1082 = vpop.permute.xlu0 %1081
        %1083 = vrot.lane.b32.xlu0 %v908, 64
        %v1084 = vpop.permute.xlu0 %1083
        %v1086 = vsel %vm909, %v1082, 0
        %v1089 = vsel %vm909, %v1084, 0
        %1091 = vmatpush.bf16.xpose.msra.mxu0 0
        %1092 = vmatpush.bf16.xpose.msra.mxu0 0
        %1093 = vmatpush.bf16.xpose.msra.mxu0 0
        %1094 = vmatpush.bf16.xpose.msra.mxu0 0
        %1095 = vmatpush.bf16.xpose.msra.mxu0 0
        %1096 = vmatpush.bf16.xpose.msra.mxu0 0
        %1097 = vmatpush.bf16.xpose.msra.mxu0 0
        %1098 = vmatpush.bf16.xpose.msra.mxu0 %v1089
        %1099 = vmatmul.bf16.gmra.mxu0 %v1086
        %v1100 = vpop.f32.mrf.mxu0
        %v1101 = vadd.f32 0.0, %v1100
        %v1102 = vpop.f32.mrf.mxu0
        %v1103 = vadd.f32 0.0, %v1102
        %1104 = vdwg.mxu0
        %1105 = vrot.lane.b32.xlu0 %v934, 64
        %v1106 = vpop.permute.xlu0 %1105
        %1107 = vrot.lane.b32.xlu0 %v939, 64
        %v1108 = vpop.permute.xlu0 %1107
        %v1110 = vsel %vm909, %v1106, 0
        %v1113 = vsel %vm909, %v1108, 0
        %1115 = vmatpush.bf16.xpose.msra.mxu0 0
        %1116 = vmatpush.bf16.xpose.msra.mxu0 0
        %1117 = vmatpush.bf16.xpose.msra.mxu0 0
        %1118 = vmatpush.bf16.xpose.msra.mxu0 0
        %1119 = vmatpush.bf16.xpose.msra.mxu0 0
        %1120 = vmatpush.bf16.xpose.msra.mxu0 0
        %1121 = vmatpush.bf16.xpose.msra.mxu0 0
        %1122 = vmatpush.bf16.xpose.msra.mxu0 %v1113
        %1123 = vmatmul.bf16.gmra.mxu0 %v1110
        %v1124 = vpop.f32.mrf.mxu0
        %v1125 = vadd.f32 0.0, %v1124
        %v1126 = vpop.f32.mrf.mxu0
        %v1127 = vadd.f32 0.0, %v1126
        %1128 = vdwg.mxu0
        %v1129 = vmul.f32 %v1101, 0.125
        %v1130 = vmul.f32 %v1103, 0.125
        %v1131 = vmul.f32 %v1125, 0.125
        %v1132 = vmul.f32 %v1127, 0.125
        %v1133 = vadd.f32 %v1129, %v966
        %v1134 = vadd.f32 %v1130, %v966
        %v1135 = vadd.f32 %v1131, %v967
        %v1136 = vadd.f32 %v1132, %v967
        %v1137 = vsel %vm974, %v1133, -inf
        %1138 = vmax.xlane.f32.xlu0 %v1137
        %v1139 = vpop.xlane.xlu0 %1138
        %v1140 = vsel %vm974, %v1134, -inf
        %1141 = vmax.xlane.f32.xlu0 %v1140
        %v1142 = vpop.xlane.xlu0 %1141
        %v1143 = vsel %vm974, %v1135, -inf
        %1144 = vmax.xlane.f32.xlu0 %v1143
        %v1145 = vpop.xlane.xlu0 %1144
        %v1146 = vsel %vm974, %v1136, -inf
        %1147 = vmax.xlane.f32.xlu0 %v1146
        %v1148 = vpop.xlane.xlu0 %1147
        %v1149 = vsub.f32 %v1133, %v1139
        %v1150 = vsub.f32 %v1134, %v1142
        %v1151 = vsub.f32 %v1135, %v1145
        %v1152 = vsub.f32 %v1136, %v1148
        %v1153 = vmul.f32 %v1149, 1.442695
        %v1154 = vpow.pop %v1153
        %v1155 = vmul.f32 %v1150, 1.442695
        %v1156 = vpow.pop %v1155
        %v1157 = vmul.f32 %v1151, 1.442695
        %v1158 = vpow.pop %v1157
        %v1159 = vmul.f32 %v1152, 1.442695
        %v1160 = vpow.pop %v1159
        %v1161 = vsel %vm974, %v1154, 0.0
        %1162 = vadd.xlane.f32.xlu0 %v1161
        %v1163 = vpop.xlane.xlu0 %1162
        %v1164 = vsel %vm974, %v1156, 0.0
        %1165 = vadd.xlane.f32.xlu0 %v1164
        %v1166 = vpop.xlane.xlu0 %1165
        %v1167 = vsel %vm974, %v1158, 0.0
        %1168 = vadd.xlane.f32.xlu0 %v1167
        %v1169 = vpop.xlane.xlu0 %1168
        %v1170 = vsel %vm974, %v1160, 0.0
        %1171 = vadd.xlane.f32.xlu0 %v1170
        %v1172 = vpop.xlane.xlu0 %1171
        %v1173 = vrcp.pop %v1163
        %v1174 = vrcp.pop %v1166
        %v1175 = vrcp.pop %v1169
        %v1176 = vrcp.pop %v1172
        %v1177 = vmul.f32 %v1154, %v1173
        %v1178 = vmul.f32 %v1156, %v1174
        %v1179 = vmul.f32 %v1158, %v1175
        %v1180 = vmul.f32 %v1160, %v1176
        %v1181 = vpack.c.bf16 %v1177, %v1177
        %v1182 = vpack.c.bf16 %v1178, %v1178
        %v1183 = vpack.c.bf16 %v1179, %v1179
        %v1184 = vpack.c.bf16 %v1180, %v1180
        %v1187 = vunpack.c.l.b16 %v1181
        %v1188 = vunpack.c.l.b16 %v1182
        %v1189 = vpack.c.b16 %v1188, %v1187
        %1190 = vrot.lane.b32.xlu0 %v1032, 64
        %v1191 = vpop.permute.xlu0 %1190
        %v1194 = vsel %vm974, %v1189, 0
        %1196 = vmatpush.bf16.msra.mxu0 0
        %1197 = vmatpush.bf16.msra.mxu0 0
        %1198 = vmatpush.bf16.msra.mxu0 0
        %1199 = vmatpush.bf16.msra.mxu0 0
        %1200 = vmatpush.bf16.msra.mxu0 0
        %1201 = vmatpush.bf16.msra.mxu0 0
        %1202 = vmatpush.bf16.msra.mxu0 0
        %1203 = vmatpush.bf16.msra.mxu0 %v1191
        %1204 = vmatmul.bf16.gmra.mxu0 %v1194
        %v1205 = vpop.f32.mrf.mxu0
        %v1206 = vadd.f32 0.0, %v1205
        %v1207 = vpop.f32.mrf.mxu0
        %v1208 = vadd.f32 0.0, %v1207
        %1209 = vdwg.mxu0
        %v1212 = vunpack.c.l.b16 %v1183
        %v1213 = vunpack.c.l.b16 %v1184
        %v1214 = vpack.c.b16 %v1213, %v1212
        %1215 = vrot.lane.b32.xlu0 %v1060, 64
        %v1216 = vpop.permute.xlu0 %1215
        %v1219 = vsel %vm974, %v1214, 0
        %1221 = vmatpush.bf16.msra.mxu0 0
        %1222 = vmatpush.bf16.msra.mxu0 0
        %1223 = vmatpush.bf16.msra.mxu0 0
        %1224 = vmatpush.bf16.msra.mxu0 0
        %1225 = vmatpush.bf16.msra.mxu0 0
        %1226 = vmatpush.bf16.msra.mxu0 0
        %1227 = vmatpush.bf16.msra.mxu0 0
        %1228 = vmatpush.bf16.msra.mxu0 %v1216
        %1229 = vmatmul.bf16.gmra.mxu0 %v1219
        %v1230 = vpop.f32.mrf.mxu0
        %v1231 = vadd.f32 0.0, %v1230
        %v1232 = vpop.f32.mrf.mxu0
        %v1233 = vadd.f32 0.0, %v1232
        %1234 = vdwg.mxu0
        %v1235 = vpack.c.bf16 %v1208, %v1206
        %v1236 = vpack.c.bf16 %v1233, %v1231
        %v1245 = vunpack.c.l.b16 %v879
        %v1246 = vunpack.c.l.b16 %v880
        %v1247 = vunpack.c.l.b16 %v881
        %v1248 = vunpack.c.l.b16 %v882
        %v1249 = vunpack.c.l.b16 %v883
        %v1250 = vunpack.c.l.b16 %v884
        %v1251 = vunpack.c.l.b16 %v885
        %v1252 = vunpack.c.l.b16 %v886
        %v1253 = vpack.c.b16 %v1246, %v1245
        %v1254 = vpack.c.b16 %v1248, %v1247
        %v1255 = vpack.c.b16 %v1250, %v1249
        %v1256 = vpack.c.b16 %v1252, %v1251
        %v1262 = vsel %vm909, %v1235, 0
        %v1265 = vsel %vm909, %v1236, 0
        %1267 = vmatpush.bf16.msra.mxu0 0
        %1268 = vmatpush.bf16.msra.mxu0 0
        %1269 = vmatpush.bf16.msra.mxu0 0
        %1270 = vmatpush.bf16.msra.mxu0 0
        %1271 = vmatpush.bf16.msra.mxu0 %v1256
        %1272 = vmatpush.bf16.msra.mxu0 %v1255
        %1273 = vmatpush.bf16.msra.mxu0 %v1254
        %1274 = vmatpush.bf16.msra.mxu0 %v1253
        %1275 = vmatmul.bf16.gmra.mxu0 %v1262
        %v1276 = vpop.f32.mrf.mxu0
        %v1277 = vadd.f32 0.0, %v1276
        %v1278 = vpop.f32.mrf.mxu0
        %v1279 = vadd.f32 0.0, %v1278
        %1280 = vmatmul.bf16.gmra.mxu0 %v1265
        %v1281 = vpop.f32.mrf.mxu0
        %v1282 = vadd.f32 0.0, %v1281
        %v1283 = vpop.f32.mrf.mxu0
        %v1284 = vadd.f32 0.0, %v1283
        %1285 = vdwg.mxu0
        %v1294 = vunpack.c.l.b16 %v871
        %v1295 = vunpack.c.l.b16 %v872
        %v1296 = vunpack.c.l.b16 %v873
        %v1297 = vunpack.c.l.b16 %v874
        %v1298 = vunpack.c.l.b16 %v875
        %v1299 = vunpack.c.l.b16 %v876
        %v1300 = vunpack.c.l.b16 %v877
        %v1301 = vunpack.c.l.b16 %v878
        %v1302 = vpack.c.b16 %v1295, %v1294
        %v1303 = vpack.c.b16 %v1297, %v1296
        %v1304 = vpack.c.b16 %v1299, %v1298
        %v1305 = vpack.c.b16 %v1301, %v1300
        %v1311 = vsel %vm909, %v1079, 0
        %v1314 = vsel %vm909, %v1080, 0
        %1316 = vmatpush.bf16.msra.mxu0 0
        %1317 = vmatpush.bf16.msra.mxu0 0
        %1318 = vmatpush.bf16.msra.mxu0 0
        %1319 = vmatpush.bf16.msra.mxu0 0
        %1320 = vmatpush.bf16.msra.mxu0 %v1305
        %1321 = vmatpush.bf16.msra.mxu0 %v1304
        %1322 = vmatpush.bf16.msra.mxu0 %v1303
        %1323 = vmatpush.bf16.msra.mxu0 %v1302
        %1324 = vmatmul.bf16.gmra.mxu0 %v1311
        %v1325 = vpop.f32.mrf.mxu0
        %v1326 = vadd.f32 %v1277, %v1325
        %v1327 = vpop.f32.mrf.mxu0
        %v1328 = vadd.f32 %v1279, %v1327
        %1329 = vmatmul.bf16.gmra.mxu0 %v1314
        %v1330 = vpop.f32.mrf.mxu0
        %v1331 = vadd.f32 %v1282, %v1330
        %v1332 = vpop.f32.mrf.mxu0
        %v1333 = vadd.f32 %v1284, %v1332
        %1334 = vdwg.mxu0
        %v1335 = vld [vmem:[%s609] sm:$0x1]
        %v1337 = vperm.slane %v1335, 0
        %v1339 = vadd.f32 %v1326, %v1337
        %v1340 = vadd.f32 %v1328, %v1337
        %v1341 = vadd.f32 %v1331, %v1337
        %v1342 = vadd.f32 %v1333, %v1337
        %v1343 = vld [vmem:[%s613] sm:$0x3]
        %v1344 = vadd.f32 %v638, %v1339
        %v1345 = vadd.f32 %v639, %v1340
        %v1346 = vadd.f32 %v640, %v1341
        %v1347 = vadd.f32 %v641, %v1342
        %1348 = vadd.xlane.f32.xlu0 %v1344
        %v1349 = vpop.xlane.xlu0 %1348
        %1350 = vadd.xlane.f32.xlu0 %v1345
        %v1351 = vpop.xlane.xlu0 %1350
        %1352 = vadd.xlane.f32.xlu0 %v1346
        %v1353 = vpop.xlane.xlu0 %1352
        %1354 = vadd.xlane.f32.xlu0 %v1347
        %v1355 = vpop.xlane.xlu0 %1354
        %v1356 = vrcp.pop 128.0
        %v1357 = vmul.f32 128.0, %v1356
        %v1358 = vsub.f32 1.0, %v1357
        %v1359 = vmul.f32 %v1356, %v1358
        %v1360 = vadd.f32 %v1356, %v1359
        %vm1361 = vweird.f32 %v1356
        %v1362 = vsel %vm1361, %v1356, %v1360
        %v1363 = vmul.f32 %v1349, %v1362
        %v1364 = vmul.f32 %v1351, %v1362
        %v1365 = vmul.f32 %v1353, %v1362
        %v1366 = vmul.f32 %v1355, %v1362
        %v1367 = vsub.f32 %v1344, %v1363
        %v1368 = vsub.f32 %v1345, %v1364
        %v1369 = vsub.f32 %v1346, %v1365
        %v1370 = vsub.f32 %v1347, %v1366
        %v1371 = vmul.f32 %v1367, %v1367
        %v1372 = vmul.f32 %v1368, %v1368
        %v1373 = vmul.f32 %v1369, %v1369
        %v1374 = vmul.f32 %v1370, %v1370
        %1375 = vadd.xlane.f32.xlu0 %v1371
        %v1376 = vpop.xlane.xlu0 %1375
        %1377 = vadd.xlane.f32.xlu0 %v1372
        %v1378 = vpop.xlane.xlu0 %1377
        %1379 = vadd.xlane.f32.xlu0 %v1373
        %v1380 = vpop.xlane.xlu0 %1379
        %1381 = vadd.xlane.f32.xlu0 %v1374
        %v1382 = vpop.xlane.xlu0 %1381
        %v1383 = vmul.f32 %v1376, %v1362
        %v1384 = vmul.f32 %v1378, %v1362
        %v1385 = vmul.f32 %v1380, %v1362
        %v1386 = vmul.f32 %v1382, %v1362
        %v1387 = vadd.f32 %v1383, 1e-12
        %v1388 = vadd.f32 %v1384, 1e-12
        %v1389 = vadd.f32 %v1385, 1e-12
        %v1390 = vadd.f32 %v1386, 1e-12
        %v1391 = vrsqrt.pop %v1387
        %v1392 = vmul.f32 %v1391, %v1387
        %v1393 = vmul.f32 %v1392, %v1391
        %v1394 = vmul.f32 0.5, %v1393
        %v1395 = vsub.f32 1.5, %v1394
        %v1396 = vmul.f32 %v1391, %v1395
        %vm1397 = vweird.f32 %v1387
        %vm1398 = vweird.f32 %v1391
        %vm1399 = vmor %vm1397, %vm1398
        %v1400 = vsel %vm1399, %v1391, %v1396
        %v1401 = vrsqrt.pop %v1388
        %v1402 = vmul.f32 %v1401, %v1388
        %v1403 = vmul.f32 %v1402, %v1401
        %v1404 = vmul.f32 0.5, %v1403
        %v1405 = vsub.f32 1.5, %v1404
        %v1406 = vmul.f32 %v1401, %v1405
        %vm1407 = vweird.f32 %v1388
        %vm1408 = vweird.f32 %v1401
        %vm1409 = vmor %vm1407, %vm1408
        %v1410 = vsel %vm1409, %v1401, %v1406
        %v1411 = vrsqrt.pop %v1389
        %v1412 = vmul.f32 %v1411, %v1389
        %v1413 = vmul.f32 %v1412, %v1411
        %v1414 = vmul.f32 0.5, %v1413
        %v1415 = vsub.f32 1.5, %v1414
        %v1416 = vmul.f32 %v1411, %v1415
        %vm1417 = vweird.f32 %v1389
        %vm1418 = vweird.f32 %v1411
        %vm1419 = vmor %vm1417, %vm1418
        %v1420 = vsel %vm1419, %v1411, %v1416
        %v1421 = vrsqrt.pop %v1390
        %v1422 = vmul.f32 %v1421, %v1390
        %v1423 = vmul.f32 %v1422, %v1421
        %v1424 = vmul.f32 0.5, %v1423
        %v1425 = vsub.f32 1.5, %v1424
        %v1426 = vmul.f32 %v1421, %v1425
        %vm1427 = vweird.f32 %v1390
        %vm1428 = vweird.f32 %v1421
        %vm1429 = vmor %vm1427, %vm1428
        %v1430 = vsel %vm1429, %v1421, %v1426
        %v1431 = vmul.f32 %v1367, %v1400
        %v1432 = vmul.f32 %v1368, %v1410
        %v1433 = vmul.f32 %v1369, %v1420
        %v1434 = vmul.f32 %v1370, %v1430
        %v1435 = vperm.slane %v1343, 0
        %v1436 = vmul.f32 %v1431, %v1435
        %v1437 = vmul.f32 %v1432, %v1435
        %v1438 = vmul.f32 %v1433, %v1435
        %v1439 = vmul.f32 %v1434, %v1435
        %v1440 = vperm.slane %v1343, 1
        %v1441 = vadd.f32 %v1436, %v1440
        %v1442 = vadd.f32 %v1437, %v1440
        %v1443 = vadd.f32 %v1438, %v1440
        %v1444 = vadd.f32 %v1439, %v1440
        %v1445 = vpack.c.bf16 %v1442, %v1441
        %v1446 = vpack.c.bf16 %v1444, %v1443
        %v1447 = vld [vmem:[%s507] sm:$0xff]
        %v1448 = vld [vmem:[%s507 + $0x8] sm:$0xff]
        %v1449 = vld [vmem:[%s507 + $0x10] sm:$0xff]
        %v1450 = vld [vmem:[%s507 + $0x18] sm:$0xff]
        %v1451 = vld [vmem:[%s507 + $0x20] sm:$0xff]
        %v1452 = vld [vmem:[%s507 + $0x28] sm:$0xff]
        %v1453 = vld [vmem:[%s507 + $0x30] sm:$0xff]
        %v1454 = vld [vmem:[%s507 + $0x38] sm:$0xff]
        %v1455 = vld [vmem:[%s507 + $0x40] sm:$0xff]
        %v1456 = vld [vmem:[%s507 + $0x48] sm:$0xff]
        %v1457 = vld [vmem:[%s507 + $0x50] sm:$0xff]
        %v1458 = vld [vmem:[%s507 + $0x58] sm:$0xff]
        %v1459 = vld [vmem:[%s507 + $0x60] sm:$0xff]
        %v1460 = vld [vmem:[%s507 + $0x68] sm:$0xff]
        %v1461 = vld [vmem:[%s507 + $0x70] sm:$0xff]
        %v1462 = vld [vmem:[%s507 + $0x78] sm:$0xff]
        %v1463 = vld [vmem:[%s617] sm:$0x3]
        %v1465 = vperm.slane %v1463, 0
        %v1466 = vperm.slane %v1463, 1
        %v1485 = vunpack.c.l.b16 %v1447
        %v1486 = vunpack.c.h.b16 %v1447
        %v1487 = vunpack.c.l.b16 %v1448
        %v1488 = vunpack.c.h.b16 %v1448
        %v1489 = vunpack.c.l.b16 %v1449
        %v1490 = vunpack.c.h.b16 %v1449
        %v1491 = vunpack.c.l.b16 %v1450
        %v1492 = vunpack.c.h.b16 %v1450
        %v1493 = vunpack.c.l.b16 %v1451
        %v1494 = vunpack.c.h.b16 %v1451
        %v1495 = vunpack.c.l.b16 %v1452
        %v1496 = vunpack.c.h.b16 %v1452
        %v1497 = vunpack.c.l.b16 %v1453
        %v1498 = vunpack.c.h.b16 %v1453
        %v1499 = vunpack.c.l.b16 %v1454
        %v1500 = vunpack.c.h.b16 %v1454
        %v1501 = vunpack.c.l.b16 %v1455
        %v1502 = vunpack.c.h.b16 %v1455
        %v1503 = vunpack.c.l.b16 %v1456
        %v1504 = vunpack.c.h.b16 %v1456
        %v1505 = vunpack.c.l.b16 %v1457
        %v1506 = vunpack.c.h.b16 %v1457
        %v1507 = vunpack.c.l.b16 %v1458
        %v1508 = vunpack.c.h.b16 %v1458
        %v1509 = vunpack.c.l.b16 %v1459
        %v1510 = vunpack.c.h.b16 %v1459
        %v1511 = vunpack.c.l.b16 %v1460
        %v1512 = vunpack.c.h.b16 %v1460
        %v1513 = vunpack.c.l.b16 %v1461
        %v1514 = vunpack.c.h.b16 %v1461
        %v1515 = vunpack.c.l.b16 %v1462
        %v1516 = vunpack.c.h.b16 %v1462
        %v1517 = vpack.c.b16 %v1487, %v1485
        %v1518 = vpack.c.b16 %v1488, %v1486
        %v1519 = vpack.c.b16 %v1491, %v1489
        %v1520 = vpack.c.b16 %v1492, %v1490
        %v1521 = vpack.c.b16 %v1495, %v1493
        %v1522 = vpack.c.b16 %v1496, %v1494
        %v1523 = vpack.c.b16 %v1499, %v1497
        %v1524 = vpack.c.b16 %v1500, %v1498
        %v1525 = vpack.c.b16 %v1503, %v1501
        %v1526 = vpack.c.b16 %v1504, %v1502
        %v1527 = vpack.c.b16 %v1507, %v1505
        %v1528 = vpack.c.b16 %v1508, %v1506
        %v1529 = vpack.c.b16 %v1511, %v1509
        %v1530 = vpack.c.b16 %v1512, %v1510
        %v1531 = vpack.c.b16 %v1515, %v1513
        %v1532 = vpack.c.b16 %v1516, %v1514
        %1549 = vmatpush.bf16.msra.mxu0 %v1531
        %1550 = vmatpush.bf16.msra.mxu0 %v1529
        %1551 = vmatpush.bf16.msra.mxu0 %v1527
        %1552 = vmatpush.bf16.msra.mxu0 %v1525
        %1553 = vmatpush.bf16.msra.mxu0 %v1523
        %1554 = vmatpush.bf16.msra.mxu0 %v1521
        %1555 = vmatpush.bf16.msra.mxu0 %v1519
        %1556 = vmatpush.bf16.msra.mxu0 %v1517
        %1557 = vmatmul.bf16.gmra.mxu0 %v1445
        %v1558 = vpop.f32.mrf.mxu0
        %v1559 = vadd.f32 %v1465, %v1558
        %v1560 = vpop.f32.mrf.mxu0
        %v1561 = vadd.f32 %v1465, %v1560
        %1562 = vmatmul.bf16.gmra.mxu0 %v1446
        %v1563 = vpop.f32.mrf.mxu0
        %v1564 = vadd.f32 %v1465, %v1563
        %v1565 = vpop.f32.mrf.mxu0
        %v1566 = vadd.f32 %v1465, %v1565
        %1567 = vdwg.mxu0
        %1568 = vmatpush.bf16.msra.mxu0 %v1532
        %1569 = vmatpush.bf16.msra.mxu0 %v1530
        %1570 = vmatpush.bf16.msra.mxu0 %v1528
        %1571 = vmatpush.bf16.msra.mxu0 %v1526
        %1572 = vmatpush.bf16.msra.mxu0 %v1524
        %1573 = vmatpush.bf16.msra.mxu0 %v1522
        %1574 = vmatpush.bf16.msra.mxu0 %v1520
        %1575 = vmatpush.bf16.msra.mxu0 %v1518
        %1576 = vmatmul.bf16.gmra.mxu0 %v1445
        %v1577 = vpop.f32.mrf.mxu0
        %v1578 = vadd.f32 %v1466, %v1577
        %v1579 = vpop.f32.mrf.mxu0
        %v1580 = vadd.f32 %v1466, %v1579
        %1581 = vmatmul.bf16.gmra.mxu0 %v1446
        %v1582 = vpop.f32.mrf.mxu0
        %v1583 = vadd.f32 %v1466, %v1582
        %v1584 = vpop.f32.mrf.mxu0
        %v1585 = vadd.f32 %v1466, %v1584
        %1586 = vdwg.mxu0
        %v1587 = vmul.f32 %v1559, %v1559
        %v1588 = vmul.f32 %v1578, %v1578
        %v1589 = vmul.f32 %v1561, %v1561
        %v1590 = vmul.f32 %v1580, %v1580
        %v1591 = vmul.f32 %v1564, %v1564
        %v1592 = vmul.f32 %v1583, %v1583
        %v1593 = vmul.f32 %v1566, %v1566
        %v1594 = vmul.f32 %v1585, %v1585
        %v1595 = vmul.f32 %v1559, %v1587
        %v1596 = vmul.f32 %v1578, %v1588
        %v1597 = vmul.f32 %v1561, %v1589
        %v1598 = vmul.f32 %v1580, %v1590
        %v1599 = vmul.f32 %v1564, %v1591
        %v1600 = vmul.f32 %v1583, %v1592
        %v1601 = vmul.f32 %v1566, %v1593
        %v1602 = vmul.f32 %v1585, %v1594
        %v1603 = vmul.f32 %v1595, 0.044715
        %v1604 = vmul.f32 %v1596, 0.044715
        %v1605 = vmul.f32 %v1597, 0.044715
        %v1606 = vmul.f32 %v1598, 0.044715
        %v1607 = vmul.f32 %v1599, 0.044715
        %v1608 = vmul.f32 %v1600, 0.044715
        %v1609 = vmul.f32 %v1601, 0.044715
        %v1610 = vmul.f32 %v1602, 0.044715
        %v1611 = vadd.f32 %v1559, %v1603
        %v1612 = vadd.f32 %v1578, %v1604
        %v1613 = vadd.f32 %v1561, %v1605
        %v1614 = vadd.f32 %v1580, %v1606
        %v1615 = vadd.f32 %v1564, %v1607
        %v1616 = vadd.f32 %v1583, %v1608
        %v1617 = vadd.f32 %v1566, %v1609
        %v1618 = vadd.f32 %v1585, %v1610
        %v1619 = vmul.f32 %v1611, 0.7978846
        %v1620 = vmul.f32 %v1612, 0.7978846
        %v1621 = vmul.f32 %v1613, 0.7978846
        %v1622 = vmul.f32 %v1614, 0.7978846
        %v1623 = vmul.f32 %v1615, 0.7978846
        %v1624 = vmul.f32 %v1616, 0.7978846
        %v1625 = vmul.f32 %v1617, 0.7978846
        %v1626 = vmul.f32 %v1618, 0.7978846
        %v1627 = vtanh.pop %v1619
        %v1628 = vtanh.pop %v1620
        %v1629 = vtanh.pop %v1621
        %v1630 = vtanh.pop %v1622
        %v1631 = vtanh.pop %v1623
        %v1632 = vtanh.pop %v1624
        %v1633 = vtanh.pop %v1625
        %v1634 = vtanh.pop %v1626
        %v1635 = vadd.f32 %v1627, 1.0
        %v1636 = vadd.f32 %v1628, 1.0
        %v1637 = vadd.f32 %v1629, 1.0
        %v1638 = vadd.f32 %v1630, 1.0
        %v1639 = vadd.f32 %v1631, 1.0
        %v1640 = vadd.f32 %v1632, 1.0
        %v1641 = vadd.f32 %v1633, 1.0
        %v1642 = vadd.f32 %v1634, 1.0
        %v1643 = vmul.f32 %v1635, 0.5
        %v1644 = vmul.f32 %v1636, 0.5
        %v1645 = vmul.f32 %v1637, 0.5
        %v1646 = vmul.f32 %v1638, 0.5
        %v1647 = vmul.f32 %v1639, 0.5
        %v1648 = vmul.f32 %v1640, 0.5
        %v1649 = vmul.f32 %v1641, 0.5
        %v1650 = vmul.f32 %v1642, 0.5
        %v1651 = vmul.f32 %v1559, %v1643
        %v1652 = vmul.f32 %v1578, %v1644
        %v1653 = vmul.f32 %v1561, %v1645
        %v1654 = vmul.f32 %v1580, %v1646
        %v1655 = vmul.f32 %v1564, %v1647
        %v1656 = vmul.f32 %v1583, %v1648
        %v1657 = vmul.f32 %v1566, %v1649
        %v1658 = vmul.f32 %v1585, %v1650
        %v1659 = vpack.c.bf16 %v1653, %v1651
        %v1660 = vpack.c.bf16 %v1654, %v1652
        %v1661 = vpack.c.bf16 %v1657, %v1655
        %v1662 = vpack.c.bf16 %v1658, %v1656
        %v1663 = vld [vmem:[%s517] sm:$0xf]
        %v1664 = vld [vmem:[%s517 + $0x4] sm:$0xf]
        %v1665 = vld [vmem:[%s517 + $0x8] sm:$0xf]
        %v1666 = vld [vmem:[%s517 + $0xc] sm:$0xf]
        %v1667 = vld [vmem:[%s517 + $0x10] sm:$0xf]
        %v1668 = vld [vmem:[%s517 + $0x14] sm:$0xf]
        %v1669 = vld [vmem:[%s517 + $0x18] sm:$0xf]
        %v1670 = vld [vmem:[%s517 + $0x1c] sm:$0xf]
        %v1671 = vld [vmem:[%s517 + $0x20] sm:$0xf]
        %v1672 = vld [vmem:[%s517 + $0x24] sm:$0xf]
        %v1673 = vld [vmem:[%s517 + $0x28] sm:$0xf]
        %v1674 = vld [vmem:[%s517 + $0x2c] sm:$0xf]
        %v1675 = vld [vmem:[%s517 + $0x30] sm:$0xf]
        %v1676 = vld [vmem:[%s517 + $0x34] sm:$0xf]
        %v1677 = vld [vmem:[%s517 + $0x38] sm:$0xf]
        %v1678 = vld [vmem:[%s517 + $0x3c] sm:$0xf]
        %v1679 = vld [vmem:[%s517 + $0x40] sm:$0xf]
        %v1680 = vld [vmem:[%s517 + $0x44] sm:$0xf]
        %v1681 = vld [vmem:[%s517 + $0x48] sm:$0xf]
        %v1682 = vld [vmem:[%s517 + $0x4c] sm:$0xf]
        %v1683 = vld [vmem:[%s517 + $0x50] sm:$0xf]
        %v1684 = vld [vmem:[%s517 + $0x54] sm:$0xf]
        %v1685 = vld [vmem:[%s517 + $0x58] sm:$0xf]
        %v1686 = vld [vmem:[%s517 + $0x5c] sm:$0xf]
        %v1687 = vld [vmem:[%s517 + $0x60] sm:$0xf]
        %v1688 = vld [vmem:[%s517 + $0x64] sm:$0xf]
        %v1689 = vld [vmem:[%s517 + $0x68] sm:$0xf]
        %v1690 = vld [vmem:[%s517 + $0x6c] sm:$0xf]
        %v1691 = vld [vmem:[%s517 + $0x70] sm:$0xf]
        %v1692 = vld [vmem:[%s517 + $0x74] sm:$0xf]
        %v1693 = vld [vmem:[%s517 + $0x78] sm:$0xf]
        %v1694 = vld [vmem:[%s517 + $0x7c] sm:$0xf]
        %v1695 = vld [vmem:[%s620] sm:$0x1]
        %v1697 = vperm.slane %v1695, 0
        %v1731 = vunpack.c.l.b16 %v1663
        %v1732 = vunpack.c.l.b16 %v1664
        %v1733 = vunpack.c.l.b16 %v1665
        %v1734 = vunpack.c.l.b16 %v1666
        %v1735 = vunpack.c.l.b16 %v1667
        %v1736 = vunpack.c.l.b16 %v1668
        %v1737 = vunpack.c.l.b16 %v1669
        %v1738 = vunpack.c.l.b16 %v1670
        %v1739 = vunpack.c.l.b16 %v1671
        %v1740 = vunpack.c.l.b16 %v1672
        %v1741 = vunpack.c.l.b16 %v1673
        %v1742 = vunpack.c.l.b16 %v1674
        %v1743 = vunpack.c.l.b16 %v1675
        %v1744 = vunpack.c.l.b16 %v1676
        %v1745 = vunpack.c.l.b16 %v1677
        %v1746 = vunpack.c.l.b16 %v1678
        %v1747 = vunpack.c.l.b16 %v1679
        %v1748 = vunpack.c.l.b16 %v1680
        %v1749 = vunpack.c.l.b16 %v1681
        %v1750 = vunpack.c.l.b16 %v1682
        %v1751 = vunpack.c.l.b16 %v1683
        %v1752 = vunpack.c.l.b16 %v1684
        %v1753 = vunpack.c.l.b16 %v1685
        %v1754 = vunpack.c.l.b16 %v1686
        %v1755 = vunpack.c.l.b16 %v1687
        %v1756 = vunpack.c.l.b16 %v1688
        %v1757 = vunpack.c.l.b16 %v1689
        %v1758 = vunpack.c.l.b16 %v1690
        %v1759 = vunpack.c.l.b16 %v1691
        %v1760 = vunpack.c.l.b16 %v1692
        %v1761 = vunpack.c.l.b16 %v1693
        %v1762 = vunpack.c.l.b16 %v1694
        %v1763 = vpack.c.b16 %v1732, %v1731
        %v1764 = vpack.c.b16 %v1734, %v1733
        %v1765 = vpack.c.b16 %v1736, %v1735
        %v1766 = vpack.c.b16 %v1738, %v1737
        %v1767 = vpack.c.b16 %v1740, %v1739
        %v1768 = vpack.c.b16 %v1742, %v1741
        %v1769 = vpack.c.b16 %v1744, %v1743
        %v1770 = vpack.c.b16 %v1746, %v1745
        %v1771 = vpack.c.b16 %v1748, %v1747
        %v1772 = vpack.c.b16 %v1750, %v1749
        %v1773 = vpack.c.b16 %v1752, %v1751
        %v1774 = vpack.c.b16 %v1754, %v1753
        %v1775 = vpack.c.b16 %v1756, %v1755
        %v1776 = vpack.c.b16 %v1758, %v1757
        %v1777 = vpack.c.b16 %v1760, %v1759
        %v1778 = vpack.c.b16 %v1762, %v1761
        %1795 = vmatpush.bf16.msra.mxu0 %v1770
        %1796 = vmatpush.bf16.msra.mxu0 %v1769
        %1797 = vmatpush.bf16.msra.mxu0 %v1768
        %1798 = vmatpush.bf16.msra.mxu0 %v1767
        %1799 = vmatpush.bf16.msra.mxu0 %v1766
        %1800 = vmatpush.bf16.msra.mxu0 %v1765
        %1801 = vmatpush.bf16.msra.mxu0 %v1764
        %1802 = vmatpush.bf16.msra.mxu0 %v1763
        %1803 = vmatmul.bf16.gmra.mxu0 %v1659
        %v1804 = vpop.f32.mrf.mxu0
        %v1805 = vadd.f32 %v1697, %v1804
        %v1806 = vpop.f32.mrf.mxu0
        %v1807 = vadd.f32 %v1697, %v1806
        %1808 = vmatmul.bf16.gmra.mxu0 %v1661
        %v1809 = vpop.f32.mrf.mxu0
        %v1810 = vadd.f32 %v1697, %v1809
        %v1811 = vpop.f32.mrf.mxu0
        %v1812 = vadd.f32 %v1697, %v1811
        %1813 = vdwg.mxu0
        %1814 = vmatpush.bf16.msra.mxu0 %v1778
        %1815 = vmatpush.bf16.msra.mxu0 %v1777
        %1816 = vmatpush.bf16.msra.mxu0 %v1776
        %1817 = vmatpush.bf16.msra.mxu0 %v1775
        %1818 = vmatpush.bf16.msra.mxu0 %v1774
        %1819 = vmatpush.bf16.msra.mxu0 %v1773
        %1820 = vmatpush.bf16.msra.mxu0 %v1772
        %1821 = vmatpush.bf16.msra.mxu0 %v1771
        %1822 = vmatmul.bf16.gmra.mxu0 %v1660
        %v1823 = vpop.f32.mrf.mxu0
        %v1824 = vadd.f32 %v1805, %v1823
        %v1825 = vpop.f32.mrf.mxu0
        %v1826 = vadd.f32 %v1807, %v1825
        %1827 = vmatmul.bf16.gmra.mxu0 %v1662
        %v1828 = vpop.f32.mrf.mxu0
        %v1829 = vadd.f32 %v1810, %v1828
        %v1830 = vpop.f32.mrf.mxu0
        %v1831 = vadd.f32 %v1812, %v1830
        %1832 = vdwg.mxu0
        %v1833 = vld [vmem:[%s624] sm:$0x3]
        %v1834 = vadd.f32 %v1441, %v1824
        %v1835 = vadd.f32 %v1442, %v1826
        %v1836 = vadd.f32 %v1443, %v1829
        %v1837 = vadd.f32 %v1444, %v1831
        %1838 = vadd.xlane.f32.xlu0 %v1834
        %v1839 = vpop.xlane.xlu0 %1838
        %1840 = vadd.xlane.f32.xlu0 %v1835
        %v1841 = vpop.xlane.xlu0 %1840
        %1842 = vadd.xlane.f32.xlu0 %v1836
        %v1843 = vpop.xlane.xlu0 %1842
        %1844 = vadd.xlane.f32.xlu0 %v1837
        %v1845 = vpop.xlane.xlu0 %1844
        %v1846 = vmul.f32 %v1839, %v1362
        %v1847 = vmul.f32 %v1841, %v1362
        %v1848 = vmul.f32 %v1843, %v1362
        %v1849 = vmul.f32 %v1845, %v1362
        %v1850 = vsub.f32 %v1834, %v1846
        %v1851 = vsub.f32 %v1835, %v1847
        %v1852 = vsub.f32 %v1836, %v1848
        %v1853 = vsub.f32 %v1837, %v1849
        %v1854 = vmul.f32 %v1850, %v1850
        %v1855 = vmul.f32 %v1851, %v1851
        %v1856 = vmul.f32 %v1852, %v1852
        %v1857 = vmul.f32 %v1853, %v1853
        %1858 = vadd.xlane.f32.xlu0 %v1854
        %v1859 = vpop.xlane.xlu0 %1858
        %1860 = vadd.xlane.f32.xlu0 %v1855
        %v1861 = vpop.xlane.xlu0 %1860
        %1862 = vadd.xlane.f32.xlu0 %v1856
        %v1863 = vpop.xlane.xlu0 %1862
        %1864 = vadd.xlane.f32.xlu0 %v1857
        %v1865 = vpop.xlane.xlu0 %1864
        %v1866 = vmul.f32 %v1859, %v1362
        %v1867 = vmul.f32 %v1861, %v1362
        %v1868 = vmul.f32 %v1863, %v1362
        %v1869 = vmul.f32 %v1865, %v1362
        %v1870 = vadd.f32 %v1866, 1e-12
        %v1871 = vadd.f32 %v1867, 1e-12
        %v1872 = vadd.f32 %v1868, 1e-12
        %v1873 = vadd.f32 %v1869, 1e-12
        %v1874 = vrsqrt.pop %v1870
        %v1875 = vmul.f32 %v1874, %v1870
        %v1876 = vmul.f32 %v1875, %v1874
        %v1877 = vmul.f32 0.5, %v1876
        %v1878 = vsub.f32 1.5, %v1877
        %v1879 = vmul.f32 %v1874, %v1878
        %vm1880 = vweird.f32 %v1870
        %vm1881 = vweird.f32 %v1874
        %vm1882 = vmor %vm1880, %vm1881
        %v1883 = vsel %vm1882, %v1874, %v1879
        %v1884 = vrsqrt.pop %v1871
        %v1885 = vmul.f32 %v1884, %v1871
        %v1886 = vmul.f32 %v1885, %v1884
        %v1887 = vmul.f32 0.5, %v1886
        %v1888 = vsub.f32 1.5, %v1887
        %v1889 = vmul.f32 %v1884, %v1888
        %vm1890 = vweird.f32 %v1871
        %vm1891 = vweird.f32 %v1884
        %vm1892 = vmor %vm1890, %vm1891
        %v1893 = vsel %vm1892, %v1884, %v1889
        %v1894 = vrsqrt.pop %v1872
        %v1895 = vmul.f32 %v1894, %v1872
        %v1896 = vmul.f32 %v1895, %v1894
        %v1897 = vmul.f32 0.5, %v1896
        %v1898 = vsub.f32 1.5, %v1897
        %v1899 = vmul.f32 %v1894, %v1898
        %vm1900 = vweird.f32 %v1872
        %vm1901 = vweird.f32 %v1894
        %vm1902 = vmor %vm1900, %vm1901
        %v1903 = vsel %vm1902, %v1894, %v1899
        %v1904 = vrsqrt.pop %v1873
        %v1905 = vmul.f32 %v1904, %v1873
        %v1906 = vmul.f32 %v1905, %v1904
        %v1907 = vmul.f32 0.5, %v1906
        %v1908 = vsub.f32 1.5, %v1907
        %v1909 = vmul.f32 %v1904, %v1908
        %vm1910 = vweird.f32 %v1873
        %vm1911 = vweird.f32 %v1904
        %vm1912 = vmor %vm1910, %vm1911
        %v1913 = vsel %vm1912, %v1904, %v1909
        %v1914 = vmul.f32 %v1850, %v1883
        %v1915 = vmul.f32 %v1851, %v1893
        %v1916 = vmul.f32 %v1852, %v1903
        %v1917 = vmul.f32 %v1853, %v1913
        %v1918 = vperm.slane %v1833, 0
        %v1919 = vmul.f32 %v1914, %v1918
        %v1920 = vmul.f32 %v1915, %v1918
        %v1921 = vmul.f32 %v1916, %v1918
        %v1922 = vmul.f32 %v1917, %v1918
        %v1923 = vperm.slane %v1833, 1
        %v1924 = vadd.f32 %v1919, %v1923
        %v1925 = vadd.f32 %v1920, %v1923
        %v1926 = vadd.f32 %v1921, %v1923
        %v1927 = vadd.f32 %v1922, %v1923
        %1928 = vst [vmem:[#allocation7] sm:$0xff] %v1924
        %1929 = vst [vmem:[#allocation7 + $0x8] sm:$0xff] %v1925
        %1930 = vst [vmem:[#allocation7 + $0x10] sm:$0xff] %v1926
        %1931 = vst [vmem:[#allocation7 + $0x18] sm:$0xff] %v1927
        %p1932 = scmp.eq.s32.totalorder %s32, 1
        // Predicated region
        $region81: #{loss_path.3} parent=67 // pred_check
          %p1933 = pneg %p1932
        $region82: #{loss_path.3} parent=67 // pred_check_branch
          %1935 = sbr.rel (%p1933) target = $region84
        $region83: #{loss_path.3} parent=67 // pred_region
          %1936 = vst [vmem:[%s13] sm:$0x1] %v1924
          %1937 = vst [vmem:[%s13 + $0x1] sm:$0x1] %v1926
        $region84: #{loss_path.3} parent=67 // pred_fallthru
          _
        // Predicated region
        $region85: #{loss_path.3} parent=67 // pred_check
          %p1938 = pneg %p347
        $region86: #{loss_path.3} parent=67 // pred_check_branch
          %1940 = sbr.rel (%p1938) target = $region88
        $region87: #{loss_path.3} parent=67 // pred_region
          %1942 = vsyncadd [#allocation4], 0
          %s1943 = sshll.u32 [#allocation7], 4
          %s1944 = int_to_ptr.vmem [resolvable:$true] %s1943
          %s1945 = sshll.u32 %s12, 4
          %s1946 = int_to_ptr.hbm [resolvable:$true] %s1945
          %1951 = dma.vmem_to_hbm [thread:$0]  %s1944, 512, %s1946, [#allocation4], 128, 128, 8
        $region88: #{loss_path.3} parent=67 // pred_fallthru
          _
        // Predicated region
        $region89: #{loss_path.3} parent=67 // pred_check
          %p1952 = pneg %p368
        $region90: #{loss_path.3} parent=67 // pred_check_branch
          %1954 = sbr.rel (%p1952) target = $region92
        $region91: #{loss_path.3} parent=67 // pred_region
          _
        $region92: #{loss_path.3} parent=67 // pred_fallthru
          _
        // Predicated region
        $region93: #{loss_path.3} parent=67 // pred_check
          %p1955 = pneg %p347
        $region94: #{loss_path.3} parent=67 // pred_check_branch
          %1957 = sbr.rel (%p1955) target = $region96
        $region95: #{loss_path.3} parent=67 // pred_region
          %1959 = dma.done [#allocation4], 512
        $region96: #{loss_path.3} parent=67 // pred_fallthru
          _
        // Predicated region
        $region97: #{loss_path.3} parent=67 // pred_check
          %p1960 = pneg %p368
        $region98: #{loss_path.3} parent=67 // pred_check_branch
          %1962 = sbr.rel (%p1960) target = $region100
        $region99: #{loss_path.3} parent=67 // pred_region
          _
        $region100: #{loss_path.3} parent=67 // pred_fallthru
          _
      $region68: #{loss_path.3} parent=5 // pred_fallthru
        _
      %p1963 = scmp.le.s32.totalorder 2, %s27
      // Predicated region
      $region101: #{loss_path.3} parent=5 // pred_check
        %p1964 = pneg %p1963
      $region102: #{loss_path.3} parent=5 // pred_check_branch
        %1966 = sbr.rel (%p1964) target = $region104
      $region103: #{loss_path.3} parent=5 // pred_region
        %s1967 = ssub.s32 %s27, 2
      $region104: #{loss_path.3} parent=5 // pred_fallthru
        _
    $region6: #{loss_path.3} parent=1 // loop_footer
      %s31 = sadd.s32 1, %s27
    $region7: #{loss_path.3} parent=1 // loop_footer_branch
      %26 = sbr.rel target = $region3
    $region8: #{loss_path.3} parent=1 // loop_exit
      _
    %1968 = vsyncpa [#allocation3], 1
    %s1969 = scalar_lea.sflag [#allocation3], 1
    %1970 = vsyncpa %s1969, 1
    %1971 = vsyncpa [#allocation6], 1
    %s1972 = scalar_lea.sflag [#allocation6], 1
    %1973 = vsyncpa %s1972, 1
    %1974 = vsyncpa [#allocation4], 1
    %s1975 = scalar_lea.sflag [#allocation4], 1
    %1976 = vsyncpa %s1975, 1

</llo_original>
